<compile_context>
chip_gen: v5e
topology: v5e:2x2
jax: 0.10.0
libtpu: 0.0.40
codegen_flags: <defaults>
</compile_context>

<pallas_src>
import math

import jax
import jax.numpy as jnp
from jax import lax
from jax.experimental import pallas as pl
from jax.experimental.pallas import tpu as pltpu

# ---------------------------------------------------------------------------
# Small, module-consistent sizes.
# ---------------------------------------------------------------------------
SEQ_LEN = 16
PRED_LEN = 8
WINDOW_LEN = 4          # stored by the reference module but unused in forward()
N_CHOICES = 4
N_PARAMS = 3
PTS_MAX_LEN = PRED_LEN - 1                     # pred_len - 1
PTS_HIDDEN = (SEQ_LEN + PTS_MAX_LEN) // 2      # (seq_len + pts_max_len) // 2
TOTAL_LEN = SEQ_LEN + PRED_LEN
BATCH = 2

_VMEM_SPEC = pl.BlockSpec(memory_space=pltpu.MemorySpace.VMEM)


# ---------------------------------------------------------------------------
# In-kernel helpers.
# ---------------------------------------------------------------------------
def _gelu_exact(x):
    # torch.nn.GELU() default is the exact erf formulation.
    return 0.5 * x * (1.0 + lax.erf(x * (1.0 / math.sqrt(2.0))))


def _argmax_last_keepdims(v):
    """First-occurrence argmax along the last axis, keepdims=True (matches torch)."""
    n = v.shape[-1]
    iota = lax.broadcasted_iota(jnp.int32, v.shape, len(v.shape) - 1)
    mx = jnp.max(v, axis=-1, keepdims=True)
    return jnp.min(jnp.where(v == mx, iota, jnp.int32(n)), axis=-1, keepdims=True)


# ---------------------------------------------------------------------------
# The fused forward kernel (AR loop + residual blend).
# ---------------------------------------------------------------------------
def _forward_kernel(x_ref, wx_ref, bx_ref, w2_ref, b2_ref, bb_ref,
                    wselT_ref, bsel_ref, wres_ref, bres_ref, scale_ref,
                    out_ref):
    x = x_ref[...]                        # (B, S) f32 — original input
    wx = wx_ref[...]                      # (S, H + C*P) bf16  [pts_id[0] | component_lin]
    bx = bx_ref[...]                      # (1, H + C*P) f32
    w2 = w2_ref[...]                      # (H, PTS_MAX_LEN)   bf16
    b2 = b2_ref[...]                      # (1, PTS_MAX_LEN)   f32
    bb = bb_ref[...]                      # (C*P, C*T) bf16 block-diagonal basis
    wselT = wselT_ref[...]                # (1, T) f32  (select_lin weight, transposed)
    bsel = bsel_ref[...]                  # (1, 1) f32
    scale = scale_ref[...]                # (1, T) f32  (res_scale)

    B = x.shape[0]
    t_pred = lax.broadcasted_iota(jnp.int32, (B, PRED_LEN), 1)   # lane index

    win = x                                            # sliding seq_len window
    out_buf = jnp.zeros((B, PRED_LEN), jnp.float32)    # generated values
    cursor = jnp.zeros((B, 1), jnp.int32)              # #values appended per row

    # Each active row appends >= 1 value per step, so PRED_LEN steps suffice;
    # finished rows are fully masked (identical to the reference while-loop).
    for _ in range(PRED_LEN):
        active = cursor < PRED_LEN                                   # (B, 1)

        # ---- fused pts_id[0] + component_lin on the current window --------
        xw = jnp.dot(win.astype(jnp.bfloat16), wx,
                     preferred_element_type=jnp.float32) + bx        # (B, H+CP)

        # ---- _generate_points: GELU -> Linear -> argmax + 1 ---------------
        h = _gelu_exact(xw[:, :PTS_HIDDEN])
        logits = jnp.dot(h.astype(jnp.bfloat16), w2,
                         preferred_element_type=jnp.float32) + b2    # (B, PTS_MAX_LEN)
        n = _argmax_last_keepdims(logits) + 1                        # (B,1) in [1,7]

        # ---- _generate (synthetic) + _combine_by_pts ----------------------
        # TODO(synk): `_generate` is abstract in the PyTorch module; here each
        # choice's params are expanded onto a fixed polynomial basis over
        # pred_len via one block-diagonal matmul.
        p_flat = xw[:, PTS_HIDDEN:]                                  # (B, C*P)
        preds_all = jnp.dot(p_flat.astype(jnp.bfloat16), bb,
                            preferred_element_type=jnp.float32)      # (B, C*T)

        # choice weights via VPU multiply + lane reduce (no N=1 matmuls);
        # strict '>' keeps first-occurrence tie-break like torch.argmax (CPU).
        best_val = None
        best_idx = jnp.zeros((B, 1), jnp.int32)
        for c in range(N_CHOICES):
            pd_c = preds_all[:, c * PRED_LEN:(c + 1) * PRED_LEN]     # (B, T)
            w_c = jnp.sum(pd_c * wselT, axis=-1, keepdims=True) + bsel
            if c == 0:
                best_val = w_c
            else:
                better = w_c > best_val
                best_val = jnp.where(better, w_c, best_val)
                best_idx = jnp.where(better, jnp.int32(c), best_idx)

        pred = jnp.zeros((B, PRED_LEN), jnp.float32)
        for c in range(N_CHOICES):
            pd_c = preds_all[:, c * PRED_LEN:(c + 1) * PRED_LEN]
            pred = pred + pd_c * (best_idx == c).astype(jnp.float32)

        # ---- append pred[:, :n] at the per-row cursor (masked, clamped) ---
        shifted = jnp.zeros((B, PRED_LEN), jnp.float32)
        for j in range(PTS_MAX_LEN):                 # n <= PTS_MAX_LEN
            shifted = shifted + pred[:, j:j + 1] * (
                t_pred == cursor + j).astype(jnp.float32)
        wmask = active & (t_pred >= cursor) & (t_pred < cursor + n)
        out_buf = jnp.where(wmask, shifted, out_buf)

        # ---- slide the window by n values ---------------------------------
        # new window = concat(win, pred[:n])[-seq_len:]; since n <= 7 < seq_len
        # this equals concat(win, pred)[n : n+seq_len] — pick the candidate
        # for each possible (static) shift and select by n.
        combined = jnp.concatenate([win, pred], axis=-1)             # (B, S+T)
        new_win = win
        for nn in range(1, PTS_MAX_LEN + 1):
            cand = combined[:, nn:nn + SEQ_LEN]
            new_win = jnp.where(active & (n == nn), cand, new_win)
        win = new_win
        cursor = jnp.where(active, cursor + n, cursor)

    # ---- residual blend epilogue: (1 - res_scale)*out + res_scale*res_lin(x)
    residual = jnp.dot(x.astype(jnp.bfloat16), wres_ref[...],
                       preferred_element_type=jnp.float32) + bres_ref[...]
    out_ref[...] = (1.0 - scale) * out_buf + scale * residual


# ---------------------------------------------------------------------------
# pallas_call wrapper.
# ---------------------------------------------------------------------------
@jax.jit
def _forward_call(x, wx, bx, w2, b2, bb, wselT, bsel, wres, bres, scale):
    B = x.shape[0]
    return pl.pallas_call(
        _forward_kernel,
        out_shape=jax.ShapeDtypeStruct((B, PRED_LEN), jnp.float32),
        in_specs=[_VMEM_SPEC] * 11,
        out_specs=_VMEM_SPEC,
    )(x, wx, bx, w2, b2, bb, wselT, bsel, wres, bres, scale)


# ---------------------------------------------------------------------------
# Module-equivalent wrapper (parameters + forward).
# ---------------------------------------------------------------------------
class PointEstimatorPallas:
    def __init__(self, key):
        def linear(k, fan_in, fan_out):
            kw, kb = jax.random.split(k)
            bound = 1.0 / math.sqrt(fan_in)
            w = jax.random.uniform(kw, (fan_in, fan_out), jnp.float32, -bound, bound)
            b = jax.random.uniform(kb, (1, fan_out), jnp.float32, -bound, bound)
            return w, b

        k1, k2, k3, k4, k5 = jax.random.split(key, 5)
        w1, b1 = linear(k1, SEQ_LEN, PTS_HIDDEN)               # pts_id[0]
        w2, b2 = linear(k2, PTS_HIDDEN, PTS_MAX_LEN)           # pts_id[2]
        wc, bc = linear(k3, SEQ_LEN, N_CHOICES * N_PARAMS)     # component_lin
        wsel, bsel = linear(k4, PRED_LEN, 1)                   # select_lin
        wres, bres = linear(k5, SEQ_LEN, PRED_LEN)             # res_lin

        # Fused x-projection: [pts_id[0] | component_lin]  -> one MXU pass.
        self.wx = jnp.concatenate([w1, wc], axis=1).astype(jnp.bfloat16)  # (S, 23)
        self.bx = jnp.concatenate([b1, bc], axis=1)                        # (1, 23)
        self.w2 = w2.astype(jnp.bfloat16)
        self.b2 = b2

        # Fixed polynomial basis used by the synthetic `_generate`, expanded
        # into a block-diagonal matrix so all choices are one MXU pass.
        t = (jnp.arange(PRED_LEN, dtype=jnp.float32) + 1.0) / PRED_LEN
        p = jnp.arange(N_PARAMS, dtype=jnp.float32)
        basis = t[None, :] ** p[:, None]                                   # (NP, T)
        self.bb = jnp.kron(jnp.eye(N_CHOICES, dtype=jnp.float32),
                           basis).astype(jnp.bfloat16)                     # (C*NP, C*T)

        self.wselT = wsel.T                                                # (1, T)
        self.bsel = bsel                                                   # (1, 1)
        self.wres = wres.astype(jnp.bfloat16)
        self.bres = bres
        self.res_scale = jnp.zeros((1, PRED_LEN), jnp.float32)             # res_scale

    def forward(self, x):
        x = jnp.asarray(x, jnp.float32)
        return _forward_call(x, self.wx, self.bx, self.w2, self.b2, self.bb,
                             self.wselT, self.bsel, self.wres, self.bres,
                             self.res_scale)


if __name__ == "__main__":
    key = jax.random.PRNGKey(0)
    k_param, k_x = jax.random.split(key)
    model = PointEstimatorPallas(k_param)

    x = jax.random.normal(k_x, (BATCH, SEQ_LEN), jnp.float32)
    y = model.forward(x)
    y = jax.block_until_ready(y)
    assert y.shape == (BATCH, PRED_LEN) and y.dtype == jnp.float32
    print("KERNEL_OK")
</pallas_src>

<mosaic_0001>
module attributes {stable_mosaic.version = 11 : i64} {
  func.func @_forward_kernel(%arg0: memref<2x16xf32, #tpu.memory_space<vmem>>, %arg1: memref<16x23xbf16, #tpu.memory_space<vmem>>, %arg2: memref<1x23xf32, #tpu.memory_space<vmem>>, %arg3: memref<11x7xbf16, #tpu.memory_space<vmem>>, %arg4: memref<1x7xf32, #tpu.memory_space<vmem>>, %arg5: memref<12x32xbf16, #tpu.memory_space<vmem>>, %arg6: memref<1x8xf32, #tpu.memory_space<vmem>>, %arg7: memref<1x1xf32, #tpu.memory_space<vmem>>, %arg8: memref<16x8xbf16, #tpu.memory_space<vmem>>, %arg9: memref<1x8xf32, #tpu.memory_space<vmem>>, %arg10: memref<1x8xf32, #tpu.memory_space<vmem>>, %arg11: memref<2x8xf32, #tpu.memory_space<vmem>>) attributes {dimension_semantics = [], scalar_prefetch = 0 : i64, scratch_operands = 0 : i64, tpu.core_type = #tpu.core_type<tc>} {
    %c0 = arith.constant 0 : index
    %c0_0 = arith.constant 0 : index
    %0 = vector.load %arg0[%c0, %c0_0] : memref<2x16xf32, #tpu.memory_space<vmem>>, vector<2x16xf32>
    %c0_1 = arith.constant 0 : index
    %c0_2 = arith.constant 0 : index
    %1 = vector.load %arg1[%c0_1, %c0_2] : memref<16x23xbf16, #tpu.memory_space<vmem>>, vector<16x23xbf16>
    %c0_3 = arith.constant 0 : index
    %c0_4 = arith.constant 0 : index
    %2 = vector.load %arg2[%c0_3, %c0_4] : memref<1x23xf32, #tpu.memory_space<vmem>>, vector<1x23xf32>
    %c0_5 = arith.constant 0 : index
    %c0_6 = arith.constant 0 : index
    %3 = vector.load %arg3[%c0_5, %c0_6] : memref<11x7xbf16, #tpu.memory_space<vmem>>, vector<11x7xbf16>
    %c0_7 = arith.constant 0 : index
    %c0_8 = arith.constant 0 : index
    %4 = vector.load %arg4[%c0_7, %c0_8] : memref<1x7xf32, #tpu.memory_space<vmem>>, vector<1x7xf32>
    %c0_9 = arith.constant 0 : index
    %c0_10 = arith.constant 0 : index
    %5 = vector.load %arg5[%c0_9, %c0_10] : memref<12x32xbf16, #tpu.memory_space<vmem>>, vector<12x32xbf16>
    %c0_11 = arith.constant 0 : index
    %c0_12 = arith.constant 0 : index
    %6 = vector.load %arg6[%c0_11, %c0_12] : memref<1x8xf32, #tpu.memory_space<vmem>>, vector<1x8xf32>
    %c0_13 = arith.constant 0 : index
    %c0_14 = arith.constant 0 : index
    %7 = vector.load %arg7[%c0_13, %c0_14] : memref<1x1xf32, #tpu.memory_space<vmem>>, vector<1x1xf32>
    %c0_15 = arith.constant 0 : index
    %c0_16 = arith.constant 0 : index
    %8 = vector.load %arg10[%c0_15, %c0_16] : memref<1x8xf32, #tpu.memory_space<vmem>>, vector<1x8xf32>
    %9 = tpu.iota {dimensions = array<i32: 1>} : vector<2x8xi32>
    %cst = arith.constant 0.000000e+00 : f32
    %10 = vector.broadcast %cst : f32 to vector<2x8xf32>
    %c0_i32 = arith.constant 0 : i32
    %11 = vector.broadcast %c0_i32 : i32 to vector<2x1xi32>
    %c8_i32 = arith.constant 8 : i32
    %12 = vector.broadcast %c8_i32 : i32 to vector<2x1xi32>
    %13 = arith.cmpi slt, %11, %12 : vector<2x1xi32>
    %14 = arith.truncf %0 : vector<2x16xf32> to vector<2x16xbf16>
    %cst_17 = arith.constant dense<0.000000e+00> : vector<2x23xf32>
    %15 = tpu.matmul %14, %1, %cst_17 {dimension_numbers = #tpu.dot_dimension_numbers<[1], [0], [0], [1], [0, 0, 1, 1], [], []>} : vector<2x16xbf16>, vector<16x23xbf16>, vector<2x23xf32> -> vector<2x23xf32>
    %16 = vector.broadcast %2 : vector<1x23xf32> to vector<2x23xf32>
    %17 = arith.addf %15, %16 : vector<2x23xf32>
    %18 = vector.extract_strided_slice %17 {offsets = [0, 0], sizes = [2, 11], strides = [1, 1]} : vector<2x23xf32> to vector<2x11xf32>
    %cst_18 = arith.constant 5.000000e-01 : f32
    %19 = vector.broadcast %cst_18 : f32 to vector<2x11xf32>
    %20 = arith.mulf %19, %18 : vector<2x11xf32>
    %cst_19 = arith.constant 0.707106769 : f32
    %21 = vector.broadcast %cst_19 : f32 to vector<2x11xf32>
    %22 = arith.mulf %18, %21 : vector<2x11xf32>
    %23 = math.erf %22 : vector<2x11xf32>
    %cst_20 = arith.constant 1.000000e+00 : f32
    %24 = vector.broadcast %cst_20 : f32 to vector<2x11xf32>
    %25 = arith.addf %24, %23 : vector<2x11xf32>
    %26 = arith.mulf %20, %25 : vector<2x11xf32>
    %27 = arith.truncf %26 : vector<2x11xf32> to vector<2x11xbf16>
    %cst_21 = arith.constant dense<0.000000e+00> : vector<2x7xf32>
    %28 = tpu.matmul %27, %3, %cst_21 {dimension_numbers = #tpu.dot_dimension_numbers<[1], [0], [0], [1], [0, 0, 1, 1], [], []>} : vector<2x11xbf16>, vector<11x7xbf16>, vector<2x7xf32> -> vector<2x7xf32>
    %29 = vector.broadcast %4 : vector<1x7xf32> to vector<2x7xf32>
    %30 = arith.addf %28, %29 : vector<2x7xf32>
    %31 = tpu.iota {dimensions = array<i32: 1>} : vector<2x7xi32>
    %cst_22 = arith.constant dense<0xFF800000> : vector<2xf32>
    %32 = vector.multi_reduction <maximumf>, %30, %cst_22 [1] : vector<2x7xf32> to vector<2xf32>
    %33 = vector.shape_cast %32 : vector<2xf32> to vector<2x1xf32>
    %34 = vector.broadcast %33 : vector<2x1xf32> to vector<2x7xf32>
    %35 = arith.cmpf oeq, %30, %34 : vector<2x7xf32>
    %c7_i32 = arith.constant 7 : i32
    %36 = vector.broadcast %c7_i32 : i32 to vector<2x7xi32>
    %37 = arith.select %35, %31, %36 : vector<2x7xi1>, vector<2x7xi32>
    %cst_23 = arith.constant dense<2147483647> : vector<2xi32>
    %38 = vector.multi_reduction <minsi>, %37, %cst_23 [1] : vector<2x7xi32> to vector<2xi32>
    %39 = vector.shape_cast %38 : vector<2xi32> to vector<2x1xi32>
    %c1_i32 = arith.constant 1 : i32
    %40 = vector.broadcast %c1_i32 : i32 to vector<2x1xi32>
    %41 = arith.addi %39, %40 : vector<2x1xi32>
    %42 = vector.extract_strided_slice %17 {offsets = [0, 11], sizes = [2, 12], strides = [1, 1]} : vector<2x23xf32> to vector<2x12xf32>
    %43 = arith.truncf %42 : vector<2x12xf32> to vector<2x12xbf16>
    %cst_24 = arith.constant dense<0.000000e+00> : vector<2x32xf32>
    %44 = tpu.matmul %43, %5, %cst_24 {dimension_numbers = #tpu.dot_dimension_numbers<[1], [0], [0], [1], [0, 0, 1, 1], [], []>} : vector<2x12xbf16>, vector<12x32xbf16>, vector<2x32xf32> -> vector<2x32xf32>
    %c0_i32_25 = arith.constant 0 : i32
    %45 = vector.broadcast %c0_i32_25 : i32 to vector<2x1xi32>
    %46 = vector.extract_strided_slice %44 {offsets = [0, 0], sizes = [2, 8], strides = [1, 1]} : vector<2x32xf32> to vector<2x8xf32>
    %47 = vector.broadcast %6 : vector<1x8xf32> to vector<2x8xf32>
    %48 = arith.mulf %46, %47 : vector<2x8xf32>
    %cst_26 = arith.constant dense<0.000000e+00> : vector<2xf32>
    %49 = vector.multi_reduction <add>, %48, %cst_26 [1] : vector<2x8xf32> to vector<2xf32>
    %50 = vector.shape_cast %49 : vector<2xf32> to vector<2x1xf32>
    %51 = vector.broadcast %7 : vector<1x1xf32> to vector<2x1xf32>
    %52 = arith.addf %50, %51 : vector<2x1xf32>
    %53 = vector.extract_strided_slice %44 {offsets = [0, 8], sizes = [2, 8], strides = [1, 1]} : vector<2x32xf32> to vector<2x8xf32>
    %54 = vector.broadcast %6 : vector<1x8xf32> to vector<2x8xf32>
    %55 = arith.mulf %53, %54 : vector<2x8xf32>
    %cst_27 = arith.constant dense<0.000000e+00> : vector<2xf32>
    %56 = vector.multi_reduction <add>, %55, %cst_27 [1] : vector<2x8xf32> to vector<2xf32>
    %57 = vector.shape_cast %56 : vector<2xf32> to vector<2x1xf32>
    %58 = vector.broadcast %7 : vector<1x1xf32> to vector<2x1xf32>
    %59 = arith.addf %57, %58 : vector<2x1xf32>
    %60 = arith.cmpf ogt, %59, %52 : vector<2x1xf32>
    %61 = arith.select %60, %59, %52 : vector<2x1xi1>, vector<2x1xf32>
    %c1_i32_28 = arith.constant 1 : i32
    %62 = vector.broadcast %c1_i32_28 : i32 to vector<2x1xi32>
    %63 = arith.select %60, %62, %45 : vector<2x1xi1>, vector<2x1xi32>
    %64 = vector.extract_strided_slice %44 {offsets = [0, 16], sizes = [2, 8], strides = [1, 1]} : vector<2x32xf32> to vector<2x8xf32>
    %65 = vector.broadcast %6 : vector<1x8xf32> to vector<2x8xf32>
    %66 = arith.mulf %64, %65 : vector<2x8xf32>
    %cst_29 = arith.constant dense<0.000000e+00> : vector<2xf32>
    %67 = vector.multi_reduction <add>, %66, %cst_29 [1] : vector<2x8xf32> to vector<2xf32>
    %68 = vector.shape_cast %67 : vector<2xf32> to vector<2x1xf32>
    %69 = vector.broadcast %7 : vector<1x1xf32> to vector<2x1xf32>
    %70 = arith.addf %68, %69 : vector<2x1xf32>
    %71 = arith.cmpf ogt, %70, %61 : vector<2x1xf32>
    %72 = arith.select %71, %70, %61 : vector<2x1xi1>, vector<2x1xf32>
    %c2_i32 = arith.constant 2 : i32
    %73 = vector.broadcast %c2_i32 : i32 to vector<2x1xi32>
    %74 = arith.select %71, %73, %63 : vector<2x1xi1>, vector<2x1xi32>
    %75 = vector.extract_strided_slice %44 {offsets = [0, 24], sizes = [2, 8], strides = [1, 1]} : vector<2x32xf32> to vector<2x8xf32>
    %76 = vector.broadcast %6 : vector<1x8xf32> to vector<2x8xf32>
    %77 = arith.mulf %75, %76 : vector<2x8xf32>
    %cst_30 = arith.constant dense<0.000000e+00> : vector<2xf32>
    %78 = vector.multi_reduction <add>, %77, %cst_30 [1] : vector<2x8xf32> to vector<2xf32>
    %79 = vector.shape_cast %78 : vector<2xf32> to vector<2x1xf32>
    %80 = vector.broadcast %7 : vector<1x1xf32> to vector<2x1xf32>
    %81 = arith.addf %79, %80 : vector<2x1xf32>
    %82 = arith.cmpf ogt, %81, %72 : vector<2x1xf32>
    %c3_i32 = arith.constant 3 : i32
    %83 = vector.broadcast %c3_i32 : i32 to vector<2x1xi32>
    %84 = arith.select %82, %83, %74 : vector<2x1xi1>, vector<2x1xi32>
    %cst_31 = arith.constant 0.000000e+00 : f32
    %85 = vector.broadcast %cst_31 : f32 to vector<2x8xf32>
    %86 = vector.extract_strided_slice %44 {offsets = [0, 0], sizes = [2, 8], strides = [1, 1]} : vector<2x32xf32> to vector<2x8xf32>
    %c0_i32_32 = arith.constant 0 : i32
    %87 = vector.broadcast %c0_i32_32 : i32 to vector<2x1xi32>
    %88 = arith.cmpi eq, %84, %87 : vector<2x1xi32>
    %89 = arith.extui %88 : vector<2x1xi1> to vector<2x1xi32>
    %90 = arith.sitofp %89 : vector<2x1xi32> to vector<2x1xf32>
    %91 = vector.broadcast %90 : vector<2x1xf32> to vector<2x8xf32>
    %92 = arith.mulf %86, %91 : vector<2x8xf32>
    %93 = arith.addf %85, %92 : vector<2x8xf32>
    %94 = vector.extract_strided_slice %44 {offsets = [0, 8], sizes = [2, 8], strides = [1, 1]} : vector<2x32xf32> to vector<2x8xf32>
    %c1_i32_33 = arith.constant 1 : i32
    %95 = vector.broadcast %c1_i32_33 : i32 to vector<2x1xi32>
    %96 = arith.cmpi eq, %84, %95 : vector<2x1xi32>
    %97 = arith.extui %96 : vector<2x1xi1> to vector<2x1xi32>
    %98 = arith.sitofp %97 : vector<2x1xi32> to vector<2x1xf32>
    %99 = vector.broadcast %98 : vector<2x1xf32> to vector<2x8xf32>
    %100 = arith.mulf %94, %99 : vector<2x8xf32>
    %101 = arith.addf %93, %100 : vector<2x8xf32>
    %102 = vector.extract_strided_slice %44 {offsets = [0, 16], sizes = [2, 8], strides = [1, 1]} : vector<2x32xf32> to vector<2x8xf32>
    %c2_i32_34 = arith.constant 2 : i32
    %103 = vector.broadcast %c2_i32_34 : i32 to vector<2x1xi32>
    %104 = arith.cmpi eq, %84, %103 : vector<2x1xi32>
    %105 = arith.extui %104 : vector<2x1xi1> to vector<2x1xi32>
    %106 = arith.sitofp %105 : vector<2x1xi32> to vector<2x1xf32>
    %107 = vector.broadcast %106 : vector<2x1xf32> to vector<2x8xf32>
    %108 = arith.mulf %102, %107 : vector<2x8xf32>
    %109 = arith.addf %101, %108 : vector<2x8xf32>
    %110 = vector.extract_strided_slice %44 {offsets = [0, 24], sizes = [2, 8], strides = [1, 1]} : vector<2x32xf32> to vector<2x8xf32>
    %c3_i32_35 = arith.constant 3 : i32
    %111 = vector.broadcast %c3_i32_35 : i32 to vector<2x1xi32>
    %112 = arith.cmpi eq, %84, %111 : vector<2x1xi32>
    %113 = arith.extui %112 : vector<2x1xi1> to vector<2x1xi32>
    %114 = arith.sitofp %113 : vector<2x1xi32> to vector<2x1xf32>
    %115 = vector.broadcast %114 : vector<2x1xf32> to vector<2x8xf32>
    %116 = arith.mulf %110, %115 : vector<2x8xf32>
    %117 = arith.addf %109, %116 : vector<2x8xf32>
    %cst_36 = arith.constant 0.000000e+00 : f32
    %118 = vector.broadcast %cst_36 : f32 to vector<2x8xf32>
    %119 = vector.extract_strided_slice %117 {offsets = [0, 0], sizes = [2, 1], strides = [1, 1]} : vector<2x8xf32> to vector<2x1xf32>
    %c0_i32_37 = arith.constant 0 : i32
    %120 = vector.broadcast %c0_i32_37 : i32 to vector<2x1xi32>
    %121 = arith.addi %11, %120 : vector<2x1xi32>
    %122 = vector.broadcast %121 : vector<2x1xi32> to vector<2x8xi32>
    %123 = arith.cmpi eq, %9, %122 : vector<2x8xi32>
    %124 = arith.extui %123 : vector<2x8xi1> to vector<2x8xi32>
    %125 = arith.sitofp %124 : vector<2x8xi32> to vector<2x8xf32>
    %126 = vector.broadcast %119 : vector<2x1xf32> to vector<2x8xf32>
    %127 = arith.mulf %126, %125 : vector<2x8xf32>
    %128 = arith.addf %118, %127 : vector<2x8xf32>
    %129 = vector.extract_strided_slice %117 {offsets = [0, 1], sizes = [2, 1], strides = [1, 1]} : vector<2x8xf32> to vector<2x1xf32>
    %c1_i32_38 = arith.constant 1 : i32
    %130 = vector.broadcast %c1_i32_38 : i32 to vector<2x1xi32>
    %131 = arith.addi %11, %130 : vector<2x1xi32>
    %132 = vector.broadcast %131 : vector<2x1xi32> to vector<2x8xi32>
    %133 = arith.cmpi eq, %9, %132 : vector<2x8xi32>
    %134 = arith.extui %133 : vector<2x8xi1> to vector<2x8xi32>
    %135 = arith.sitofp %134 : vector<2x8xi32> to vector<2x8xf32>
    %136 = vector.broadcast %129 : vector<2x1xf32> to vector<2x8xf32>
    %137 = arith.mulf %136, %135 : vector<2x8xf32>
    %138 = arith.addf %128, %137 : vector<2x8xf32>
    %139 = vector.extract_strided_slice %117 {offsets = [0, 2], sizes = [2, 1], strides = [1, 1]} : vector<2x8xf32> to vector<2x1xf32>
    %c2_i32_39 = arith.constant 2 : i32
    %140 = vector.broadcast %c2_i32_39 : i32 to vector<2x1xi32>
    %141 = arith.addi %11, %140 : vector<2x1xi32>
    %142 = vector.broadcast %141 : vector<2x1xi32> to vector<2x8xi32>
    %143 = arith.cmpi eq, %9, %142 : vector<2x8xi32>
    %144 = arith.extui %143 : vector<2x8xi1> to vector<2x8xi32>
    %145 = arith.sitofp %144 : vector<2x8xi32> to vector<2x8xf32>
    %146 = vector.broadcast %139 : vector<2x1xf32> to vector<2x8xf32>
    %147 = arith.mulf %146, %145 : vector<2x8xf32>
    %148 = arith.addf %138, %147 : vector<2x8xf32>
    %149 = vector.extract_strided_slice %117 {offsets = [0, 3], sizes = [2, 1], strides = [1, 1]} : vector<2x8xf32> to vector<2x1xf32>
    %c3_i32_40 = arith.constant 3 : i32
    %150 = vector.broadcast %c3_i32_40 : i32 to vector<2x1xi32>
    %151 = arith.addi %11, %150 : vector<2x1xi32>
    %152 = vector.broadcast %151 : vector<2x1xi32> to vector<2x8xi32>
    %153 = arith.cmpi eq, %9, %152 : vector<2x8xi32>
    %154 = arith.extui %153 : vector<2x8xi1> to vector<2x8xi32>
    %155 = arith.sitofp %154 : vector<2x8xi32> to vector<2x8xf32>
    %156 = vector.broadcast %149 : vector<2x1xf32> to vector<2x8xf32>
    %157 = arith.mulf %156, %155 : vector<2x8xf32>
    %158 = arith.addf %148, %157 : vector<2x8xf32>
    %159 = vector.extract_strided_slice %117 {offsets = [0, 4], sizes = [2, 1], strides = [1, 1]} : vector<2x8xf32> to vector<2x1xf32>
    %c4_i32 = arith.constant 4 : i32
    %160 = vector.broadcast %c4_i32 : i32 to vector<2x1xi32>
    %161 = arith.addi %11, %160 : vector<2x1xi32>
    %162 = vector.broadcast %161 : vector<2x1xi32> to vector<2x8xi32>
    %163 = arith.cmpi eq, %9, %162 : vector<2x8xi32>
    %164 = arith.extui %163 : vector<2x8xi1> to vector<2x8xi32>
    %165 = arith.sitofp %164 : vector<2x8xi32> to vector<2x8xf32>
    %166 = vector.broadcast %159 : vector<2x1xf32> to vector<2x8xf32>
    %167 = arith.mulf %166, %165 : vector<2x8xf32>
    %168 = arith.addf %158, %167 : vector<2x8xf32>
    %169 = vector.extract_strided_slice %117 {offsets = [0, 5], sizes = [2, 1], strides = [1, 1]} : vector<2x8xf32> to vector<2x1xf32>
    %c5_i32 = arith.constant 5 : i32
    %170 = vector.broadcast %c5_i32 : i32 to vector<2x1xi32>
    %171 = arith.addi %11, %170 : vector<2x1xi32>
    %172 = vector.broadcast %171 : vector<2x1xi32> to vector<2x8xi32>
    %173 = arith.cmpi eq, %9, %172 : vector<2x8xi32>
    %174 = arith.extui %173 : vector<2x8xi1> to vector<2x8xi32>
    %175 = arith.sitofp %174 : vector<2x8xi32> to vector<2x8xf32>
    %176 = vector.broadcast %169 : vector<2x1xf32> to vector<2x8xf32>
    %177 = arith.mulf %176, %175 : vector<2x8xf32>
    %178 = arith.addf %168, %177 : vector<2x8xf32>
    %179 = vector.extract_strided_slice %117 {offsets = [0, 6], sizes = [2, 1], strides = [1, 1]} : vector<2x8xf32> to vector<2x1xf32>
    %c6_i32 = arith.constant 6 : i32
    %180 = vector.broadcast %c6_i32 : i32 to vector<2x1xi32>
    %181 = arith.addi %11, %180 : vector<2x1xi32>
    %182 = vector.broadcast %181 : vector<2x1xi32> to vector<2x8xi32>
    %183 = arith.cmpi eq, %9, %182 : vector<2x8xi32>
    %184 = arith.extui %183 : vector<2x8xi1> to vector<2x8xi32>
    %185 = arith.sitofp %184 : vector<2x8xi32> to vector<2x8xf32>
    %186 = vector.broadcast %179 : vector<2x1xf32> to vector<2x8xf32>
    %187 = arith.mulf %186, %185 : vector<2x8xf32>
    %188 = arith.addf %178, %187 : vector<2x8xf32>
    %189 = vector.broadcast %11 : vector<2x1xi32> to vector<2x8xi32>
    %190 = arith.cmpi sge, %9, %189 : vector<2x8xi32>
    %191 = vector.broadcast %13 : vector<2x1xi1> to vector<2x8xi1>
    %192 = arith.andi %191, %190 : vector<2x8xi1>
    %193 = arith.addi %11, %41 : vector<2x1xi32>
    %194 = vector.broadcast %193 : vector<2x1xi32> to vector<2x8xi32>
    %195 = arith.cmpi slt, %9, %194 : vector<2x8xi32>
    %196 = arith.andi %192, %195 : vector<2x8xi1>
    %197 = arith.select %196, %188, %10 : vector<2x8xi1>, vector<2x8xf32>
    %198 = tpu.concatenate %0, %117 in 1 : vector<2x16xf32>, vector<2x8xf32> -> vector<2x24xf32>
    %199 = vector.extract_strided_slice %198 {offsets = [0, 1], sizes = [2, 16], strides = [1, 1]} : vector<2x24xf32> to vector<2x16xf32>
    %c1_i32_41 = arith.constant 1 : i32
    %200 = vector.broadcast %c1_i32_41 : i32 to vector<2x1xi32>
    %201 = arith.cmpi eq, %41, %200 : vector<2x1xi32>
    %202 = arith.andi %13, %201 : vector<2x1xi1>
    %203 = vector.shape_cast %202 : vector<2x1xi1> to vector<2x1xi1>
    %204 = vector.broadcast %203 : vector<2x1xi1> to vector<2x16xi1>
    %205 = arith.select %204, %199, %0 : vector<2x16xi1>, vector<2x16xf32>
    %206 = vector.extract_strided_slice %198 {offsets = [0, 2], sizes = [2, 16], strides = [1, 1]} : vector<2x24xf32> to vector<2x16xf32>
    %c2_i32_42 = arith.constant 2 : i32
    %207 = vector.broadcast %c2_i32_42 : i32 to vector<2x1xi32>
    %208 = arith.cmpi eq, %41, %207 : vector<2x1xi32>
    %209 = arith.andi %13, %208 : vector<2x1xi1>
    %210 = vector.shape_cast %209 : vector<2x1xi1> to vector<2x1xi1>
    %211 = vector.broadcast %210 : vector<2x1xi1> to vector<2x16xi1>
    %212 = arith.select %211, %206, %205 : vector<2x16xi1>, vector<2x16xf32>
    %213 = vector.extract_strided_slice %198 {offsets = [0, 3], sizes = [2, 16], strides = [1, 1]} : vector<2x24xf32> to vector<2x16xf32>
    %c3_i32_43 = arith.constant 3 : i32
    %214 = vector.broadcast %c3_i32_43 : i32 to vector<2x1xi32>
    %215 = arith.cmpi eq, %41, %214 : vector<2x1xi32>
    %216 = arith.andi %13, %215 : vector<2x1xi1>
    %217 = vector.shape_cast %216 : vector<2x1xi1> to vector<2x1xi1>
    %218 = vector.broadcast %217 : vector<2x1xi1> to vector<2x16xi1>
    %219 = arith.select %218, %213, %212 : vector<2x16xi1>, vector<2x16xf32>
    %220 = vector.extract_strided_slice %198 {offsets = [0, 4], sizes = [2, 16], strides = [1, 1]} : vector<2x24xf32> to vector<2x16xf32>
    %c4_i32_44 = arith.constant 4 : i32
    %221 = vector.broadcast %c4_i32_44 : i32 to vector<2x1xi32>
    %222 = arith.cmpi eq, %41, %221 : vector<2x1xi32>
    %223 = arith.andi %13, %222 : vector<2x1xi1>
    %224 = vector.shape_cast %223 : vector<2x1xi1> to vector<2x1xi1>
    %225 = vector.broadcast %224 : vector<2x1xi1> to vector<2x16xi1>
    %226 = arith.select %225, %220, %219 : vector<2x16xi1>, vector<2x16xf32>
    %227 = vector.extract_strided_slice %198 {offsets = [0, 5], sizes = [2, 16], strides = [1, 1]} : vector<2x24xf32> to vector<2x16xf32>
    %c5_i32_45 = arith.constant 5 : i32
    %228 = vector.broadcast %c5_i32_45 : i32 to vector<2x1xi32>
    %229 = arith.cmpi eq, %41, %228 : vector<2x1xi32>
    %230 = arith.andi %13, %229 : vector<2x1xi1>
    %231 = vector.shape_cast %230 : vector<2x1xi1> to vector<2x1xi1>
    %232 = vector.broadcast %231 : vector<2x1xi1> to vector<2x16xi1>
    %233 = arith.select %232, %227, %226 : vector<2x16xi1>, vector<2x16xf32>
    %234 = vector.extract_strided_slice %198 {offsets = [0, 6], sizes = [2, 16], strides = [1, 1]} : vector<2x24xf32> to vector<2x16xf32>
    %c6_i32_46 = arith.constant 6 : i32
    %235 = vector.broadcast %c6_i32_46 : i32 to vector<2x1xi32>
    %236 = arith.cmpi eq, %41, %235 : vector<2x1xi32>
    %237 = arith.andi %13, %236 : vector<2x1xi1>
    %238 = vector.shape_cast %237 : vector<2x1xi1> to vector<2x1xi1>
    %239 = vector.broadcast %238 : vector<2x1xi1> to vector<2x16xi1>
    %240 = arith.select %239, %234, %233 : vector<2x16xi1>, vector<2x16xf32>
    %241 = vector.extract_strided_slice %198 {offsets = [0, 7], sizes = [2, 16], strides = [1, 1]} : vector<2x24xf32> to vector<2x16xf32>
    %c7_i32_47 = arith.constant 7 : i32
    %242 = vector.broadcast %c7_i32_47 : i32 to vector<2x1xi32>
    %243 = arith.cmpi eq, %41, %242 : vector<2x1xi32>
    %244 = arith.andi %13, %243 : vector<2x1xi1>
    %245 = vector.shape_cast %244 : vector<2x1xi1> to vector<2x1xi1>
    %246 = vector.broadcast %245 : vector<2x1xi1> to vector<2x16xi1>
    %247 = arith.select %246, %241, %240 : vector<2x16xi1>, vector<2x16xf32>
    %248 = arith.addi %11, %41 : vector<2x1xi32>
    %249 = arith.select %13, %248, %11 : vector<2x1xi1>, vector<2x1xi32>
    %c8_i32_48 = arith.constant 8 : i32
    %250 = vector.broadcast %c8_i32_48 : i32 to vector<2x1xi32>
    %251 = arith.cmpi slt, %249, %250 : vector<2x1xi32>
    %252 = arith.truncf %247 : vector<2x16xf32> to vector<2x16xbf16>
    %cst_49 = arith.constant dense<0.000000e+00> : vector<2x23xf32>
    %253 = tpu.matmul %252, %1, %cst_49 {dimension_numbers = #tpu.dot_dimension_numbers<[1], [0], [0], [1], [0, 0, 1, 1], [], []>} : vector<2x16xbf16>, vector<16x23xbf16>, vector<2x23xf32> -> vector<2x23xf32>
    %254 = vector.broadcast %2 : vector<1x23xf32> to vector<2x23xf32>
    %255 = arith.addf %253, %254 : vector<2x23xf32>
    %256 = vector.extract_strided_slice %255 {offsets = [0, 0], sizes = [2, 11], strides = [1, 1]} : vector<2x23xf32> to vector<2x11xf32>
    %cst_50 = arith.constant 5.000000e-01 : f32
    %257 = vector.broadcast %cst_50 : f32 to vector<2x11xf32>
    %258 = arith.mulf %257, %256 : vector<2x11xf32>
    %cst_51 = arith.constant 0.707106769 : f32
    %259 = vector.broadcast %cst_51 : f32 to vector<2x11xf32>
    %260 = arith.mulf %256, %259 : vector<2x11xf32>
    %261 = math.erf %260 : vector<2x11xf32>
    %cst_52 = arith.constant 1.000000e+00 : f32
    %262 = vector.broadcast %cst_52 : f32 to vector<2x11xf32>
    %263 = arith.addf %262, %261 : vector<2x11xf32>
    %264 = arith.mulf %258, %263 : vector<2x11xf32>
    %265 = arith.truncf %264 : vector<2x11xf32> to vector<2x11xbf16>
    %cst_53 = arith.constant dense<0.000000e+00> : vector<2x7xf32>
    %266 = tpu.matmul %265, %3, %cst_53 {dimension_numbers = #tpu.dot_dimension_numbers<[1], [0], [0], [1], [0, 0, 1, 1], [], []>} : vector<2x11xbf16>, vector<11x7xbf16>, vector<2x7xf32> -> vector<2x7xf32>
    %267 = vector.broadcast %4 : vector<1x7xf32> to vector<2x7xf32>
    %268 = arith.addf %266, %267 : vector<2x7xf32>
    %269 = tpu.iota {dimensions = array<i32: 1>} : vector<2x7xi32>
    %cst_54 = arith.constant dense<0xFF800000> : vector<2xf32>
    %270 = vector.multi_reduction <maximumf>, %268, %cst_54 [1] : vector<2x7xf32> to vector<2xf32>
    %271 = vector.shape_cast %270 : vector<2xf32> to vector<2x1xf32>
    %272 = vector.broadcast %271 : vector<2x1xf32> to vector<2x7xf32>
    %273 = arith.cmpf oeq, %268, %272 : vector<2x7xf32>
    %c7_i32_55 = arith.constant 7 : i32
    %274 = vector.broadcast %c7_i32_55 : i32 to vector<2x7xi32>
    %275 = arith.select %273, %269, %274 : vector<2x7xi1>, vector<2x7xi32>
    %cst_56 = arith.constant dense<2147483647> : vector<2xi32>
    %276 = vector.multi_reduction <minsi>, %275, %cst_56 [1] : vector<2x7xi32> to vector<2xi32>
    %277 = vector.shape_cast %276 : vector<2xi32> to vector<2x1xi32>
    %c1_i32_57 = arith.constant 1 : i32
    %278 = vector.broadcast %c1_i32_57 : i32 to vector<2x1xi32>
    %279 = arith.addi %277, %278 : vector<2x1xi32>
    %280 = vector.extract_strided_slice %255 {offsets = [0, 11], sizes = [2, 12], strides = [1, 1]} : vector<2x23xf32> to vector<2x12xf32>
    %281 = arith.truncf %280 : vector<2x12xf32> to vector<2x12xbf16>
    %cst_58 = arith.constant dense<0.000000e+00> : vector<2x32xf32>
    %282 = tpu.matmul %281, %5, %cst_58 {dimension_numbers = #tpu.dot_dimension_numbers<[1], [0], [0], [1], [0, 0, 1, 1], [], []>} : vector<2x12xbf16>, vector<12x32xbf16>, vector<2x32xf32> -> vector<2x32xf32>
    %c0_i32_59 = arith.constant 0 : i32
    %283 = vector.broadcast %c0_i32_59 : i32 to vector<2x1xi32>
    %284 = vector.extract_strided_slice %282 {offsets = [0, 0], sizes = [2, 8], strides = [1, 1]} : vector<2x32xf32> to vector<2x8xf32>
    %285 = vector.broadcast %6 : vector<1x8xf32> to vector<2x8xf32>
    %286 = arith.mulf %284, %285 : vector<2x8xf32>
    %cst_60 = arith.constant dense<0.000000e+00> : vector<2xf32>
    %287 = vector.multi_reduction <add>, %286, %cst_60 [1] : vector<2x8xf32> to vector<2xf32>
    %288 = vector.shape_cast %287 : vector<2xf32> to vector<2x1xf32>
    %289 = vector.broadcast %7 : vector<1x1xf32> to vector<2x1xf32>
    %290 = arith.addf %288, %289 : vector<2x1xf32>
    %291 = vector.extract_strided_slice %282 {offsets = [0, 8], sizes = [2, 8], strides = [1, 1]} : vector<2x32xf32> to vector<2x8xf32>
    %292 = vector.broadcast %6 : vector<1x8xf32> to vector<2x8xf32>
    %293 = arith.mulf %291, %292 : vector<2x8xf32>
    %cst_61 = arith.constant dense<0.000000e+00> : vector<2xf32>
    %294 = vector.multi_reduction <add>, %293, %cst_61 [1] : vector<2x8xf32> to vector<2xf32>
    %295 = vector.shape_cast %294 : vector<2xf32> to vector<2x1xf32>
    %296 = vector.broadcast %7 : vector<1x1xf32> to vector<2x1xf32>
    %297 = arith.addf %295, %296 : vector<2x1xf32>
    %298 = arith.cmpf ogt, %297, %290 : vector<2x1xf32>
    %299 = arith.select %298, %297, %290 : vector<2x1xi1>, vector<2x1xf32>
    %c1_i32_62 = arith.constant 1 : i32
    %300 = vector.broadcast %c1_i32_62 : i32 to vector<2x1xi32>
    %301 = arith.select %298, %300, %283 : vector<2x1xi1>, vector<2x1xi32>
    %302 = vector.extract_strided_slice %282 {offsets = [0, 16], sizes = [2, 8], strides = [1, 1]} : vector<2x32xf32> to vector<2x8xf32>
    %303 = vector.broadcast %6 : vector<1x8xf32> to vector<2x8xf32>
    %304 = arith.mulf %302, %303 : vector<2x8xf32>
    %cst_63 = arith.constant dense<0.000000e+00> : vector<2xf32>
    %305 = vector.multi_reduction <add>, %304, %cst_63 [1] : vector<2x8xf32> to vector<2xf32>
    %306 = vector.shape_cast %305 : vector<2xf32> to vector<2x1xf32>
    %307 = vector.broadcast %7 : vector<1x1xf32> to vector<2x1xf32>
    %308 = arith.addf %306, %307 : vector<2x1xf32>
    %309 = arith.cmpf ogt, %308, %299 : vector<2x1xf32>
    %310 = arith.select %309, %308, %299 : vector<2x1xi1>, vector<2x1xf32>
    %c2_i32_64 = arith.constant 2 : i32
    %311 = vector.broadcast %c2_i32_64 : i32 to vector<2x1xi32>
    %312 = arith.select %309, %311, %301 : vector<2x1xi1>, vector<2x1xi32>
    %313 = vector.extract_strided_slice %282 {offsets = [0, 24], sizes = [2, 8], strides = [1, 1]} : vector<2x32xf32> to vector<2x8xf32>
    %314 = vector.broadcast %6 : vector<1x8xf32> to vector<2x8xf32>
    %315 = arith.mulf %313, %314 : vector<2x8xf32>
    %cst_65 = arith.constant dense<0.000000e+00> : vector<2xf32>
    %316 = vector.multi_reduction <add>, %315, %cst_65 [1] : vector<2x8xf32> to vector<2xf32>
    %317 = vector.shape_cast %316 : vector<2xf32> to vector<2x1xf32>
    %318 = vector.broadcast %7 : vector<1x1xf32> to vector<2x1xf32>
    %319 = arith.addf %317, %318 : vector<2x1xf32>
    %320 = arith.cmpf ogt, %319, %310 : vector<2x1xf32>
    %c3_i32_66 = arith.constant 3 : i32
    %321 = vector.broadcast %c3_i32_66 : i32 to vector<2x1xi32>
    %322 = arith.select %320, %321, %312 : vector<2x1xi1>, vector<2x1xi32>
    %cst_67 = arith.constant 0.000000e+00 : f32
    %323 = vector.broadcast %cst_67 : f32 to vector<2x8xf32>
    %324 = vector.extract_strided_slice %282 {offsets = [0, 0], sizes = [2, 8], strides = [1, 1]} : vector<2x32xf32> to vector<2x8xf32>
    %c0_i32_68 = arith.constant 0 : i32
    %325 = vector.broadcast %c0_i32_68 : i32 to vector<2x1xi32>
    %326 = arith.cmpi eq, %322, %325 : vector<2x1xi32>
    %327 = arith.extui %326 : vector<2x1xi1> to vector<2x1xi32>
    %328 = arith.sitofp %327 : vector<2x1xi32> to vector<2x1xf32>
    %329 = vector.broadcast %328 : vector<2x1xf32> to vector<2x8xf32>
    %330 = arith.mulf %324, %329 : vector<2x8xf32>
    %331 = arith.addf %323, %330 : vector<2x8xf32>
    %332 = vector.extract_strided_slice %282 {offsets = [0, 8], sizes = [2, 8], strides = [1, 1]} : vector<2x32xf32> to vector<2x8xf32>
    %c1_i32_69 = arith.constant 1 : i32
    %333 = vector.broadcast %c1_i32_69 : i32 to vector<2x1xi32>
    %334 = arith.cmpi eq, %322, %333 : vector<2x1xi32>
    %335 = arith.extui %334 : vector<2x1xi1> to vector<2x1xi32>
    %336 = arith.sitofp %335 : vector<2x1xi32> to vector<2x1xf32>
    %337 = vector.broadcast %336 : vector<2x1xf32> to vector<2x8xf32>
    %338 = arith.mulf %332, %337 : vector<2x8xf32>
    %339 = arith.addf %331, %338 : vector<2x8xf32>
    %340 = vector.extract_strided_slice %282 {offsets = [0, 16], sizes = [2, 8], strides = [1, 1]} : vector<2x32xf32> to vector<2x8xf32>
    %c2_i32_70 = arith.constant 2 : i32
    %341 = vector.broadcast %c2_i32_70 : i32 to vector<2x1xi32>
    %342 = arith.cmpi eq, %322, %341 : vector<2x1xi32>
    %343 = arith.extui %342 : vector<2x1xi1> to vector<2x1xi32>
    %344 = arith.sitofp %343 : vector<2x1xi32> to vector<2x1xf32>
    %345 = vector.broadcast %344 : vector<2x1xf32> to vector<2x8xf32>
    %346 = arith.mulf %340, %345 : vector<2x8xf32>
    %347 = arith.addf %339, %346 : vector<2x8xf32>
    %348 = vector.extract_strided_slice %282 {offsets = [0, 24], sizes = [2, 8], strides = [1, 1]} : vector<2x32xf32> to vector<2x8xf32>
    %c3_i32_71 = arith.constant 3 : i32
    %349 = vector.broadcast %c3_i32_71 : i32 to vector<2x1xi32>
    %350 = arith.cmpi eq, %322, %349 : vector<2x1xi32>
    %351 = arith.extui %350 : vector<2x1xi1> to vector<2x1xi32>
    %352 = arith.sitofp %351 : vector<2x1xi32> to vector<2x1xf32>
    %353 = vector.broadcast %352 : vector<2x1xf32> to vector<2x8xf32>
    %354 = arith.mulf %348, %353 : vector<2x8xf32>
    %355 = arith.addf %347, %354 : vector<2x8xf32>
    %cst_72 = arith.constant 0.000000e+00 : f32
    %356 = vector.broadcast %cst_72 : f32 to vector<2x8xf32>
    %357 = vector.extract_strided_slice %355 {offsets = [0, 0], sizes = [2, 1], strides = [1, 1]} : vector<2x8xf32> to vector<2x1xf32>
    %c0_i32_73 = arith.constant 0 : i32
    %358 = vector.broadcast %c0_i32_73 : i32 to vector<2x1xi32>
    %359 = arith.addi %249, %358 : vector<2x1xi32>
    %360 = vector.broadcast %359 : vector<2x1xi32> to vector<2x8xi32>
    %361 = arith.cmpi eq, %9, %360 : vector<2x8xi32>
    %362 = arith.extui %361 : vector<2x8xi1> to vector<2x8xi32>
    %363 = arith.sitofp %362 : vector<2x8xi32> to vector<2x8xf32>
    %364 = vector.broadcast %357 : vector<2x1xf32> to vector<2x8xf32>
    %365 = arith.mulf %364, %363 : vector<2x8xf32>
    %366 = arith.addf %356, %365 : vector<2x8xf32>
    %367 = vector.extract_strided_slice %355 {offsets = [0, 1], sizes = [2, 1], strides = [1, 1]} : vector<2x8xf32> to vector<2x1xf32>
    %c1_i32_74 = arith.constant 1 : i32
    %368 = vector.broadcast %c1_i32_74 : i32 to vector<2x1xi32>
    %369 = arith.addi %249, %368 : vector<2x1xi32>
    %370 = vector.broadcast %369 : vector<2x1xi32> to vector<2x8xi32>
    %371 = arith.cmpi eq, %9, %370 : vector<2x8xi32>
    %372 = arith.extui %371 : vector<2x8xi1> to vector<2x8xi32>
    %373 = arith.sitofp %372 : vector<2x8xi32> to vector<2x8xf32>
    %374 = vector.broadcast %367 : vector<2x1xf32> to vector<2x8xf32>
    %375 = arith.mulf %374, %373 : vector<2x8xf32>
    %376 = arith.addf %366, %375 : vector<2x8xf32>
    %377 = vector.extract_strided_slice %355 {offsets = [0, 2], sizes = [2, 1], strides = [1, 1]} : vector<2x8xf32> to vector<2x1xf32>
    %c2_i32_75 = arith.constant 2 : i32
    %378 = vector.broadcast %c2_i32_75 : i32 to vector<2x1xi32>
    %379 = arith.addi %249, %378 : vector<2x1xi32>
    %380 = vector.broadcast %379 : vector<2x1xi32> to vector<2x8xi32>
    %381 = arith.cmpi eq, %9, %380 : vector<2x8xi32>
    %382 = arith.extui %381 : vector<2x8xi1> to vector<2x8xi32>
    %383 = arith.sitofp %382 : vector<2x8xi32> to vector<2x8xf32>
    %384 = vector.broadcast %377 : vector<2x1xf32> to vector<2x8xf32>
    %385 = arith.mulf %384, %383 : vector<2x8xf32>
    %386 = arith.addf %376, %385 : vector<2x8xf32>
    %387 = vector.extract_strided_slice %355 {offsets = [0, 3], sizes = [2, 1], strides = [1, 1]} : vector<2x8xf32> to vector<2x1xf32>
    %c3_i32_76 = arith.constant 3 : i32
    %388 = vector.broadcast %c3_i32_76 : i32 to vector<2x1xi32>
    %389 = arith.addi %249, %388 : vector<2x1xi32>
    %390 = vector.broadcast %389 : vector<2x1xi32> to vector<2x8xi32>
    %391 = arith.cmpi eq, %9, %390 : vector<2x8xi32>
    %392 = arith.extui %391 : vector<2x8xi1> to vector<2x8xi32>
    %393 = arith.sitofp %392 : vector<2x8xi32> to vector<2x8xf32>
    %394 = vector.broadcast %387 : vector<2x1xf32> to vector<2x8xf32>
    %395 = arith.mulf %394, %393 : vector<2x8xf32>
    %396 = arith.addf %386, %395 : vector<2x8xf32>
    %397 = vector.extract_strided_slice %355 {offsets = [0, 4], sizes = [2, 1], strides = [1, 1]} : vector<2x8xf32> to vector<2x1xf32>
    %c4_i32_77 = arith.constant 4 : i32
    %398 = vector.broadcast %c4_i32_77 : i32 to vector<2x1xi32>
    %399 = arith.addi %249, %398 : vector<2x1xi32>
    %400 = vector.broadcast %399 : vector<2x1xi32> to vector<2x8xi32>
    %401 = arith.cmpi eq, %9, %400 : vector<2x8xi32>
    %402 = arith.extui %401 : vector<2x8xi1> to vector<2x8xi32>
    %403 = arith.sitofp %402 : vector<2x8xi32> to vector<2x8xf32>
    %404 = vector.broadcast %397 : vector<2x1xf32> to vector<2x8xf32>
    %405 = arith.mulf %404, %403 : vector<2x8xf32>
    %406 = arith.addf %396, %405 : vector<2x8xf32>
    %407 = vector.extract_strided_slice %355 {offsets = [0, 5], sizes = [2, 1], strides = [1, 1]} : vector<2x8xf32> to vector<2x1xf32>
    %c5_i32_78 = arith.constant 5 : i32
    %408 = vector.broadcast %c5_i32_78 : i32 to vector<2x1xi32>
    %409 = arith.addi %249, %408 : vector<2x1xi32>
    %410 = vector.broadcast %409 : vector<2x1xi32> to vector<2x8xi32>
    %411 = arith.cmpi eq, %9, %410 : vector<2x8xi32>
    %412 = arith.extui %411 : vector<2x8xi1> to vector<2x8xi32>
    %413 = arith.sitofp %412 : vector<2x8xi32> to vector<2x8xf32>
    %414 = vector.broadcast %407 : vector<2x1xf32> to vector<2x8xf32>
    %415 = arith.mulf %414, %413 : vector<2x8xf32>
    %416 = arith.addf %406, %415 : vector<2x8xf32>
    %417 = vector.extract_strided_slice %355 {offsets = [0, 6], sizes = [2, 1], strides = [1, 1]} : vector<2x8xf32> to vector<2x1xf32>
    %c6_i32_79 = arith.constant 6 : i32
    %418 = vector.broadcast %c6_i32_79 : i32 to vector<2x1xi32>
    %419 = arith.addi %249, %418 : vector<2x1xi32>
    %420 = vector.broadcast %419 : vector<2x1xi32> to vector<2x8xi32>
    %421 = arith.cmpi eq, %9, %420 : vector<2x8xi32>
    %422 = arith.extui %421 : vector<2x8xi1> to vector<2x8xi32>
    %423 = arith.sitofp %422 : vector<2x8xi32> to vector<2x8xf32>
    %424 = vector.broadcast %417 : vector<2x1xf32> to vector<2x8xf32>
    %425 = arith.mulf %424, %423 : vector<2x8xf32>
    %426 = arith.addf %416, %425 : vector<2x8xf32>
    %427 = vector.broadcast %249 : vector<2x1xi32> to vector<2x8xi32>
    %428 = arith.cmpi sge, %9, %427 : vector<2x8xi32>
    %429 = vector.broadcast %251 : vector<2x1xi1> to vector<2x8xi1>
    %430 = arith.andi %429, %428 : vector<2x8xi1>
    %431 = arith.addi %249, %279 : vector<2x1xi32>
    %432 = vector.broadcast %431 : vector<2x1xi32> to vector<2x8xi32>
    %433 = arith.cmpi slt, %9, %432 : vector<2x8xi32>
    %434 = arith.andi %430, %433 : vector<2x8xi1>
    %435 = arith.select %434, %426, %197 : vector<2x8xi1>, vector<2x8xf32>
    %436 = tpu.concatenate %247, %355 in 1 : vector<2x16xf32>, vector<2x8xf32> -> vector<2x24xf32>
    %437 = vector.extract_strided_slice %436 {offsets = [0, 1], sizes = [2, 16], strides = [1, 1]} : vector<2x24xf32> to vector<2x16xf32>
    %c1_i32_80 = arith.constant 1 : i32
    %438 = vector.broadcast %c1_i32_80 : i32 to vector<2x1xi32>
    %439 = arith.cmpi eq, %279, %438 : vector<2x1xi32>
    %440 = arith.andi %251, %439 : vector<2x1xi1>
    %441 = vector.shape_cast %440 : vector<2x1xi1> to vector<2x1xi1>
    %442 = vector.broadcast %441 : vector<2x1xi1> to vector<2x16xi1>
    %443 = arith.select %442, %437, %247 : vector<2x16xi1>, vector<2x16xf32>
    %444 = vector.extract_strided_slice %436 {offsets = [0, 2], sizes = [2, 16], strides = [1, 1]} : vector<2x24xf32> to vector<2x16xf32>
    %c2_i32_81 = arith.constant 2 : i32
    %445 = vector.broadcast %c2_i32_81 : i32 to vector<2x1xi32>
    %446 = arith.cmpi eq, %279, %445 : vector<2x1xi32>
    %447 = arith.andi %251, %446 : vector<2x1xi1>
    %448 = vector.shape_cast %447 : vector<2x1xi1> to vector<2x1xi1>
    %449 = vector.broadcast %448 : vector<2x1xi1> to vector<2x16xi1>
    %450 = arith.select %449, %444, %443 : vector<2x16xi1>, vector<2x16xf32>
    %451 = vector.extract_strided_slice %436 {offsets = [0, 3], sizes = [2, 16], strides = [1, 1]} : vector<2x24xf32> to vector<2x16xf32>
    %c3_i32_82 = arith.constant 3 : i32
    %452 = vector.broadcast %c3_i32_82 : i32 to vector<2x1xi32>
    %453 = arith.cmpi eq, %279, %452 : vector<2x1xi32>
    %454 = arith.andi %251, %453 : vector<2x1xi1>
    %455 = vector.shape_cast %454 : vector<2x1xi1> to vector<2x1xi1>
    %456 = vector.broadcast %455 : vector<2x1xi1> to vector<2x16xi1>
    %457 = arith.select %456, %451, %450 : vector<2x16xi1>, vector<2x16xf32>
    %458 = vector.extract_strided_slice %436 {offsets = [0, 4], sizes = [2, 16], strides = [1, 1]} : vector<2x24xf32> to vector<2x16xf32>
    %c4_i32_83 = arith.constant 4 : i32
    %459 = vector.broadcast %c4_i32_83 : i32 to vector<2x1xi32>
    %460 = arith.cmpi eq, %279, %459 : vector<2x1xi32>
    %461 = arith.andi %251, %460 : vector<2x1xi1>
    %462 = vector.shape_cast %461 : vector<2x1xi1> to vector<2x1xi1>
    %463 = vector.broadcast %462 : vector<2x1xi1> to vector<2x16xi1>
    %464 = arith.select %463, %458, %457 : vector<2x16xi1>, vector<2x16xf32>
    %465 = vector.extract_strided_slice %436 {offsets = [0, 5], sizes = [2, 16], strides = [1, 1]} : vector<2x24xf32> to vector<2x16xf32>
    %c5_i32_84 = arith.constant 5 : i32
    %466 = vector.broadcast %c5_i32_84 : i32 to vector<2x1xi32>
    %467 = arith.cmpi eq, %279, %466 : vector<2x1xi32>
    %468 = arith.andi %251, %467 : vector<2x1xi1>
    %469 = vector.shape_cast %468 : vector<2x1xi1> to vector<2x1xi1>
    %470 = vector.broadcast %469 : vector<2x1xi1> to vector<2x16xi1>
    %471 = arith.select %470, %465, %464 : vector<2x16xi1>, vector<2x16xf32>
    %472 = vector.extract_strided_slice %436 {offsets = [0, 6], sizes = [2, 16], strides = [1, 1]} : vector<2x24xf32> to vector<2x16xf32>
    %c6_i32_85 = arith.constant 6 : i32
    %473 = vector.broadcast %c6_i32_85 : i32 to vector<2x1xi32>
    %474 = arith.cmpi eq, %279, %473 : vector<2x1xi32>
    %475 = arith.andi %251, %474 : vector<2x1xi1>
    %476 = vector.shape_cast %475 : vector<2x1xi1> to vector<2x1xi1>
    %477 = vector.broadcast %476 : vector<2x1xi1> to vector<2x16xi1>
    %478 = arith.select %477, %472, %471 : vector<2x16xi1>, vector<2x16xf32>
    %479 = vector.extract_strided_slice %436 {offsets = [0, 7], sizes = [2, 16], strides = [1, 1]} : vector<2x24xf32> to vector<2x16xf32>
    %c7_i32_86 = arith.constant 7 : i32
    %480 = vector.broadcast %c7_i32_86 : i32 to vector<2x1xi32>
    %481 = arith.cmpi eq, %279, %480 : vector<2x1xi32>
    %482 = arith.andi %251, %481 : vector<2x1xi1>
    %483 = vector.shape_cast %482 : vector<2x1xi1> to vector<2x1xi1>
    %484 = vector.broadcast %483 : vector<2x1xi1> to vector<2x16xi1>
    %485 = arith.select %484, %479, %478 : vector<2x16xi1>, vector<2x16xf32>
    %486 = arith.addi %249, %279 : vector<2x1xi32>
    %487 = arith.select %251, %486, %249 : vector<2x1xi1>, vector<2x1xi32>
    %c8_i32_87 = arith.constant 8 : i32
    %488 = vector.broadcast %c8_i32_87 : i32 to vector<2x1xi32>
    %489 = arith.cmpi slt, %487, %488 : vector<2x1xi32>
    %490 = arith.truncf %485 : vector<2x16xf32> to vector<2x16xbf16>
    %cst_88 = arith.constant dense<0.000000e+00> : vector<2x23xf32>
    %491 = tpu.matmul %490, %1, %cst_88 {dimension_numbers = #tpu.dot_dimension_numbers<[1], [0], [0], [1], [0, 0, 1, 1], [], []>} : vector<2x16xbf16>, vector<16x23xbf16>, vector<2x23xf32> -> vector<2x23xf32>
    %492 = vector.broadcast %2 : vector<1x23xf32> to vector<2x23xf32>
    %493 = arith.addf %491, %492 : vector<2x23xf32>
    %494 = vector.extract_strided_slice %493 {offsets = [0, 0], sizes = [2, 11], strides = [1, 1]} : vector<2x23xf32> to vector<2x11xf32>
    %cst_89 = arith.constant 5.000000e-01 : f32
    %495 = vector.broadcast %cst_89 : f32 to vector<2x11xf32>
    %496 = arith.mulf %495, %494 : vector<2x11xf32>
    %cst_90 = arith.constant 0.707106769 : f32
    %497 = vector.broadcast %cst_90 : f32 to vector<2x11xf32>
    %498 = arith.mulf %494, %497 : vector<2x11xf32>
    %499 = math.erf %498 : vector<2x11xf32>
    %cst_91 = arith.constant 1.000000e+00 : f32
    %500 = vector.broadcast %cst_91 : f32 to vector<2x11xf32>
    %501 = arith.addf %500, %499 : vector<2x11xf32>
    %502 = arith.mulf %496, %501 : vector<2x11xf32>
    %503 = arith.truncf %502 : vector<2x11xf32> to vector<2x11xbf16>
    %cst_92 = arith.constant dense<0.000000e+00> : vector<2x7xf32>
    %504 = tpu.matmul %503, %3, %cst_92 {dimension_numbers = #tpu.dot_dimension_numbers<[1], [0], [0], [1], [0, 0, 1, 1], [], []>} : vector<2x11xbf16>, vector<11x7xbf16>, vector<2x7xf32> -> vector<2x7xf32>
    %505 = vector.broadcast %4 : vector<1x7xf32> to vector<2x7xf32>
    %506 = arith.addf %504, %505 : vector<2x7xf32>
    %507 = tpu.iota {dimensions = array<i32: 1>} : vector<2x7xi32>
    %cst_93 = arith.constant dense<0xFF800000> : vector<2xf32>
    %508 = vector.multi_reduction <maximumf>, %506, %cst_93 [1] : vector<2x7xf32> to vector<2xf32>
    %509 = vector.shape_cast %508 : vector<2xf32> to vector<2x1xf32>
    %510 = vector.broadcast %509 : vector<2x1xf32> to vector<2x7xf32>
    %511 = arith.cmpf oeq, %506, %510 : vector<2x7xf32>
    %c7_i32_94 = arith.constant 7 : i32
    %512 = vector.broadcast %c7_i32_94 : i32 to vector<2x7xi32>
    %513 = arith.select %511, %507, %512 : vector<2x7xi1>, vector<2x7xi32>
    %cst_95 = arith.constant dense<2147483647> : vector<2xi32>
    %514 = vector.multi_reduction <minsi>, %513, %cst_95 [1] : vector<2x7xi32> to vector<2xi32>
    %515 = vector.shape_cast %514 : vector<2xi32> to vector<2x1xi32>
    %c1_i32_96 = arith.constant 1 : i32
    %516 = vector.broadcast %c1_i32_96 : i32 to vector<2x1xi32>
    %517 = arith.addi %515, %516 : vector<2x1xi32>
    %518 = vector.extract_strided_slice %493 {offsets = [0, 11], sizes = [2, 12], strides = [1, 1]} : vector<2x23xf32> to vector<2x12xf32>
    %519 = arith.truncf %518 : vector<2x12xf32> to vector<2x12xbf16>
    %cst_97 = arith.constant dense<0.000000e+00> : vector<2x32xf32>
    %520 = tpu.matmul %519, %5, %cst_97 {dimension_numbers = #tpu.dot_dimension_numbers<[1], [0], [0], [1], [0, 0, 1, 1], [], []>} : vector<2x12xbf16>, vector<12x32xbf16>, vector<2x32xf32> -> vector<2x32xf32>
    %c0_i32_98 = arith.constant 0 : i32
    %521 = vector.broadcast %c0_i32_98 : i32 to vector<2x1xi32>
    %522 = vector.extract_strided_slice %520 {offsets = [0, 0], sizes = [2, 8], strides = [1, 1]} : vector<2x32xf32> to vector<2x8xf32>
    %523 = vector.broadcast %6 : vector<1x8xf32> to vector<2x8xf32>
    %524 = arith.mulf %522, %523 : vector<2x8xf32>
    %cst_99 = arith.constant dense<0.000000e+00> : vector<2xf32>
    %525 = vector.multi_reduction <add>, %524, %cst_99 [1] : vector<2x8xf32> to vector<2xf32>
    %526 = vector.shape_cast %525 : vector<2xf32> to vector<2x1xf32>
    %527 = vector.broadcast %7 : vector<1x1xf32> to vector<2x1xf32>
    %528 = arith.addf %526, %527 : vector<2x1xf32>
    %529 = vector.extract_strided_slice %520 {offsets = [0, 8], sizes = [2, 8], strides = [1, 1]} : vector<2x32xf32> to vector<2x8xf32>
    %530 = vector.broadcast %6 : vector<1x8xf32> to vector<2x8xf32>
    %531 = arith.mulf %529, %530 : vector<2x8xf32>
    %cst_100 = arith.constant dense<0.000000e+00> : vector<2xf32>
    %532 = vector.multi_reduction <add>, %531, %cst_100 [1] : vector<2x8xf32> to vector<2xf32>
    %533 = vector.shape_cast %532 : vector<2xf32> to vector<2x1xf32>
    %534 = vector.broadcast %7 : vector<1x1xf32> to vector<2x1xf32>
    %535 = arith.addf %533, %534 : vector<2x1xf32>
    %536 = arith.cmpf ogt, %535, %528 : vector<2x1xf32>
    %537 = arith.select %536, %535, %528 : vector<2x1xi1>, vector<2x1xf32>
    %c1_i32_101 = arith.constant 1 : i32
    %538 = vector.broadcast %c1_i32_101 : i32 to vector<2x1xi32>
    %539 = arith.select %536, %538, %521 : vector<2x1xi1>, vector<2x1xi32>
    %540 = vector.extract_strided_slice %520 {offsets = [0, 16], sizes = [2, 8], strides = [1, 1]} : vector<2x32xf32> to vector<2x8xf32>
    %541 = vector.broadcast %6 : vector<1x8xf32> to vector<2x8xf32>
    %542 = arith.mulf %540, %541 : vector<2x8xf32>
    %cst_102 = arith.constant dense<0.000000e+00> : vector<2xf32>
    %543 = vector.multi_reduction <add>, %542, %cst_102 [1] : vector<2x8xf32> to vector<2xf32>
    %544 = vector.shape_cast %543 : vector<2xf32> to vector<2x1xf32>
    %545 = vector.broadcast %7 : vector<1x1xf32> to vector<2x1xf32>
    %546 = arith.addf %544, %545 : vector<2x1xf32>
    %547 = arith.cmpf ogt, %546, %537 : vector<2x1xf32>
    %548 = arith.select %547, %546, %537 : vector<2x1xi1>, vector<2x1xf32>
    %c2_i32_103 = arith.constant 2 : i32
    %549 = vector.broadcast %c2_i32_103 : i32 to vector<2x1xi32>
    %550 = arith.select %547, %549, %539 : vector<2x1xi1>, vector<2x1xi32>
    %551 = vector.extract_strided_slice %520 {offsets = [0, 24], sizes = [2, 8], strides = [1, 1]} : vector<2x32xf32> to vector<2x8xf32>
    %552 = vector.broadcast %6 : vector<1x8xf32> to vector<2x8xf32>
    %553 = arith.mulf %551, %552 : vector<2x8xf32>
    %cst_104 = arith.constant dense<0.000000e+00> : vector<2xf32>
    %554 = vector.multi_reduction <add>, %553, %cst_104 [1] : vector<2x8xf32> to vector<2xf32>
    %555 = vector.shape_cast %554 : vector<2xf32> to vector<2x1xf32>
    %556 = vector.broadcast %7 : vector<1x1xf32> to vector<2x1xf32>
    %557 = arith.addf %555, %556 : vector<2x1xf32>
    %558 = arith.cmpf ogt, %557, %548 : vector<2x1xf32>
    %c3_i32_105 = arith.constant 3 : i32
    %559 = vector.broadcast %c3_i32_105 : i32 to vector<2x1xi32>
    %560 = arith.select %558, %559, %550 : vector<2x1xi1>, vector<2x1xi32>
    %cst_106 = arith.constant 0.000000e+00 : f32
    %561 = vector.broadcast %cst_106 : f32 to vector<2x8xf32>
    %562 = vector.extract_strided_slice %520 {offsets = [0, 0], sizes = [2, 8], strides = [1, 1]} : vector<2x32xf32> to vector<2x8xf32>
    %c0_i32_107 = arith.constant 0 : i32
    %563 = vector.broadcast %c0_i32_107 : i32 to vector<2x1xi32>
    %564 = arith.cmpi eq, %560, %563 : vector<2x1xi32>
    %565 = arith.extui %564 : vector<2x1xi1> to vector<2x1xi32>
    %566 = arith.sitofp %565 : vector<2x1xi32> to vector<2x1xf32>
    %567 = vector.broadcast %566 : vector<2x1xf32> to vector<2x8xf32>
    %568 = arith.mulf %562, %567 : vector<2x8xf32>
    %569 = arith.addf %561, %568 : vector<2x8xf32>
    %570 = vector.extract_strided_slice %520 {offsets = [0, 8], sizes = [2, 8], strides = [1, 1]} : vector<2x32xf32> to vector<2x8xf32>
    %c1_i32_108 = arith.constant 1 : i32
    %571 = vector.broadcast %c1_i32_108 : i32 to vector<2x1xi32>
    %572 = arith.cmpi eq, %560, %571 : vector<2x1xi32>
    %573 = arith.extui %572 : vector<2x1xi1> to vector<2x1xi32>
    %574 = arith.sitofp %573 : vector<2x1xi32> to vector<2x1xf32>
    %575 = vector.broadcast %574 : vector<2x1xf32> to vector<2x8xf32>
    %576 = arith.mulf %570, %575 : vector<2x8xf32>
    %577 = arith.addf %569, %576 : vector<2x8xf32>
    %578 = vector.extract_strided_slice %520 {offsets = [0, 16], sizes = [2, 8], strides = [1, 1]} : vector<2x32xf32> to vector<2x8xf32>
    %c2_i32_109 = arith.constant 2 : i32
    %579 = vector.broadcast %c2_i32_109 : i32 to vector<2x1xi32>
    %580 = arith.cmpi eq, %560, %579 : vector<2x1xi32>
    %581 = arith.extui %580 : vector<2x1xi1> to vector<2x1xi32>
    %582 = arith.sitofp %581 : vector<2x1xi32> to vector<2x1xf32>
    %583 = vector.broadcast %582 : vector<2x1xf32> to vector<2x8xf32>
    %584 = arith.mulf %578, %583 : vector<2x8xf32>
    %585 = arith.addf %577, %584 : vector<2x8xf32>
    %586 = vector.extract_strided_slice %520 {offsets = [0, 24], sizes = [2, 8], strides = [1, 1]} : vector<2x32xf32> to vector<2x8xf32>
    %c3_i32_110 = arith.constant 3 : i32
    %587 = vector.broadcast %c3_i32_110 : i32 to vector<2x1xi32>
    %588 = arith.cmpi eq, %560, %587 : vector<2x1xi32>
    %589 = arith.extui %588 : vector<2x1xi1> to vector<2x1xi32>
    %590 = arith.sitofp %589 : vector<2x1xi32> to vector<2x1xf32>
    %591 = vector.broadcast %590 : vector<2x1xf32> to vector<2x8xf32>
    %592 = arith.mulf %586, %591 : vector<2x8xf32>
    %593 = arith.addf %585, %592 : vector<2x8xf32>
    %cst_111 = arith.constant 0.000000e+00 : f32
    %594 = vector.broadcast %cst_111 : f32 to vector<2x8xf32>
    %595 = vector.extract_strided_slice %593 {offsets = [0, 0], sizes = [2, 1], strides = [1, 1]} : vector<2x8xf32> to vector<2x1xf32>
    %c0_i32_112 = arith.constant 0 : i32
    %596 = vector.broadcast %c0_i32_112 : i32 to vector<2x1xi32>
    %597 = arith.addi %487, %596 : vector<2x1xi32>
    %598 = vector.broadcast %597 : vector<2x1xi32> to vector<2x8xi32>
    %599 = arith.cmpi eq, %9, %598 : vector<2x8xi32>
    %600 = arith.extui %599 : vector<2x8xi1> to vector<2x8xi32>
    %601 = arith.sitofp %600 : vector<2x8xi32> to vector<2x8xf32>
    %602 = vector.broadcast %595 : vector<2x1xf32> to vector<2x8xf32>
    %603 = arith.mulf %602, %601 : vector<2x8xf32>
    %604 = arith.addf %594, %603 : vector<2x8xf32>
    %605 = vector.extract_strided_slice %593 {offsets = [0, 1], sizes = [2, 1], strides = [1, 1]} : vector<2x8xf32> to vector<2x1xf32>
    %c1_i32_113 = arith.constant 1 : i32
    %606 = vector.broadcast %c1_i32_113 : i32 to vector<2x1xi32>
    %607 = arith.addi %487, %606 : vector<2x1xi32>
    %608 = vector.broadcast %607 : vector<2x1xi32> to vector<2x8xi32>
    %609 = arith.cmpi eq, %9, %608 : vector<2x8xi32>
    %610 = arith.extui %609 : vector<2x8xi1> to vector<2x8xi32>
    %611 = arith.sitofp %610 : vector<2x8xi32> to vector<2x8xf32>
    %612 = vector.broadcast %605 : vector<2x1xf32> to vector<2x8xf32>
    %613 = arith.mulf %612, %611 : vector<2x8xf32>
    %614 = arith.addf %604, %613 : vector<2x8xf32>
    %615 = vector.extract_strided_slice %593 {offsets = [0, 2], sizes = [2, 1], strides = [1, 1]} : vector<2x8xf32> to vector<2x1xf32>
    %c2_i32_114 = arith.constant 2 : i32
    %616 = vector.broadcast %c2_i32_114 : i32 to vector<2x1xi32>
    %617 = arith.addi %487, %616 : vector<2x1xi32>
    %618 = vector.broadcast %617 : vector<2x1xi32> to vector<2x8xi32>
    %619 = arith.cmpi eq, %9, %618 : vector<2x8xi32>
    %620 = arith.extui %619 : vector<2x8xi1> to vector<2x8xi32>
    %621 = arith.sitofp %620 : vector<2x8xi32> to vector<2x8xf32>
    %622 = vector.broadcast %615 : vector<2x1xf32> to vector<2x8xf32>
    %623 = arith.mulf %622, %621 : vector<2x8xf32>
    %624 = arith.addf %614, %623 : vector<2x8xf32>
    %625 = vector.extract_strided_slice %593 {offsets = [0, 3], sizes = [2, 1], strides = [1, 1]} : vector<2x8xf32> to vector<2x1xf32>
    %c3_i32_115 = arith.constant 3 : i32
    %626 = vector.broadcast %c3_i32_115 : i32 to vector<2x1xi32>
    %627 = arith.addi %487, %626 : vector<2x1xi32>
    %628 = vector.broadcast %627 : vector<2x1xi32> to vector<2x8xi32>
    %629 = arith.cmpi eq, %9, %628 : vector<2x8xi32>
    %630 = arith.extui %629 : vector<2x8xi1> to vector<2x8xi32>
    %631 = arith.sitofp %630 : vector<2x8xi32> to vector<2x8xf32>
    %632 = vector.broadcast %625 : vector<2x1xf32> to vector<2x8xf32>
    %633 = arith.mulf %632, %631 : vector<2x8xf32>
    %634 = arith.addf %624, %633 : vector<2x8xf32>
    %635 = vector.extract_strided_slice %593 {offsets = [0, 4], sizes = [2, 1], strides = [1, 1]} : vector<2x8xf32> to vector<2x1xf32>
    %c4_i32_116 = arith.constant 4 : i32
    %636 = vector.broadcast %c4_i32_116 : i32 to vector<2x1xi32>
    %637 = arith.addi %487, %636 : vector<2x1xi32>
    %638 = vector.broadcast %637 : vector<2x1xi32> to vector<2x8xi32>
    %639 = arith.cmpi eq, %9, %638 : vector<2x8xi32>
    %640 = arith.extui %639 : vector<2x8xi1> to vector<2x8xi32>
    %641 = arith.sitofp %640 : vector<2x8xi32> to vector<2x8xf32>
    %642 = vector.broadcast %635 : vector<2x1xf32> to vector<2x8xf32>
    %643 = arith.mulf %642, %641 : vector<2x8xf32>
    %644 = arith.addf %634, %643 : vector<2x8xf32>
    %645 = vector.extract_strided_slice %593 {offsets = [0, 5], sizes = [2, 1], strides = [1, 1]} : vector<2x8xf32> to vector<2x1xf32>
    %c5_i32_117 = arith.constant 5 : i32
    %646 = vector.broadcast %c5_i32_117 : i32 to vector<2x1xi32>
    %647 = arith.addi %487, %646 : vector<2x1xi32>
    %648 = vector.broadcast %647 : vector<2x1xi32> to vector<2x8xi32>
    %649 = arith.cmpi eq, %9, %648 : vector<2x8xi32>
    %650 = arith.extui %649 : vector<2x8xi1> to vector<2x8xi32>
    %651 = arith.sitofp %650 : vector<2x8xi32> to vector<2x8xf32>
    %652 = vector.broadcast %645 : vector<2x1xf32> to vector<2x8xf32>
    %653 = arith.mulf %652, %651 : vector<2x8xf32>
    %654 = arith.addf %644, %653 : vector<2x8xf32>
    %655 = vector.extract_strided_slice %593 {offsets = [0, 6], sizes = [2, 1], strides = [1, 1]} : vector<2x8xf32> to vector<2x1xf32>
    %c6_i32_118 = arith.constant 6 : i32
    %656 = vector.broadcast %c6_i32_118 : i32 to vector<2x1xi32>
    %657 = arith.addi %487, %656 : vector<2x1xi32>
    %658 = vector.broadcast %657 : vector<2x1xi32> to vector<2x8xi32>
    %659 = arith.cmpi eq, %9, %658 : vector<2x8xi32>
    %660 = arith.extui %659 : vector<2x8xi1> to vector<2x8xi32>
    %661 = arith.sitofp %660 : vector<2x8xi32> to vector<2x8xf32>
    %662 = vector.broadcast %655 : vector<2x1xf32> to vector<2x8xf32>
    %663 = arith.mulf %662, %661 : vector<2x8xf32>
    %664 = arith.addf %654, %663 : vector<2x8xf32>
    %665 = vector.broadcast %487 : vector<2x1xi32> to vector<2x8xi32>
    %666 = arith.cmpi sge, %9, %665 : vector<2x8xi32>
    %667 = vector.broadcast %489 : vector<2x1xi1> to vector<2x8xi1>
    %668 = arith.andi %667, %666 : vector<2x8xi1>
    %669 = arith.addi %487, %517 : vector<2x1xi32>
    %670 = vector.broadcast %669 : vector<2x1xi32> to vector<2x8xi32>
    %671 = arith.cmpi slt, %9, %670 : vector<2x8xi32>
    %672 = arith.andi %668, %671 : vector<2x8xi1>
    %673 = arith.select %672, %664, %435 : vector<2x8xi1>, vector<2x8xf32>
    %674 = tpu.concatenate %485, %593 in 1 : vector<2x16xf32>, vector<2x8xf32> -> vector<2x24xf32>
    %675 = vector.extract_strided_slice %674 {offsets = [0, 1], sizes = [2, 16], strides = [1, 1]} : vector<2x24xf32> to vector<2x16xf32>
    %c1_i32_119 = arith.constant 1 : i32
    %676 = vector.broadcast %c1_i32_119 : i32 to vector<2x1xi32>
    %677 = arith.cmpi eq, %517, %676 : vector<2x1xi32>
    %678 = arith.andi %489, %677 : vector<2x1xi1>
    %679 = vector.shape_cast %678 : vector<2x1xi1> to vector<2x1xi1>
    %680 = vector.broadcast %679 : vector<2x1xi1> to vector<2x16xi1>
    %681 = arith.select %680, %675, %485 : vector<2x16xi1>, vector<2x16xf32>
    %682 = vector.extract_strided_slice %674 {offsets = [0, 2], sizes = [2, 16], strides = [1, 1]} : vector<2x24xf32> to vector<2x16xf32>
    %c2_i32_120 = arith.constant 2 : i32
    %683 = vector.broadcast %c2_i32_120 : i32 to vector<2x1xi32>
    %684 = arith.cmpi eq, %517, %683 : vector<2x1xi32>
    %685 = arith.andi %489, %684 : vector<2x1xi1>
    %686 = vector.shape_cast %685 : vector<2x1xi1> to vector<2x1xi1>
    %687 = vector.broadcast %686 : vector<2x1xi1> to vector<2x16xi1>
    %688 = arith.select %687, %682, %681 : vector<2x16xi1>, vector<2x16xf32>
    %689 = vector.extract_strided_slice %674 {offsets = [0, 3], sizes = [2, 16], strides = [1, 1]} : vector<2x24xf32> to vector<2x16xf32>
    %c3_i32_121 = arith.constant 3 : i32
    %690 = vector.broadcast %c3_i32_121 : i32 to vector<2x1xi32>
    %691 = arith.cmpi eq, %517, %690 : vector<2x1xi32>
    %692 = arith.andi %489, %691 : vector<2x1xi1>
    %693 = vector.shape_cast %692 : vector<2x1xi1> to vector<2x1xi1>
    %694 = vector.broadcast %693 : vector<2x1xi1> to vector<2x16xi1>
    %695 = arith.select %694, %689, %688 : vector<2x16xi1>, vector<2x16xf32>
    %696 = vector.extract_strided_slice %674 {offsets = [0, 4], sizes = [2, 16], strides = [1, 1]} : vector<2x24xf32> to vector<2x16xf32>
    %c4_i32_122 = arith.constant 4 : i32
    %697 = vector.broadcast %c4_i32_122 : i32 to vector<2x1xi32>
    %698 = arith.cmpi eq, %517, %697 : vector<2x1xi32>
    %699 = arith.andi %489, %698 : vector<2x1xi1>
    %700 = vector.shape_cast %699 : vector<2x1xi1> to vector<2x1xi1>
    %701 = vector.broadcast %700 : vector<2x1xi1> to vector<2x16xi1>
    %702 = arith.select %701, %696, %695 : vector<2x16xi1>, vector<2x16xf32>
    %703 = vector.extract_strided_slice %674 {offsets = [0, 5], sizes = [2, 16], strides = [1, 1]} : vector<2x24xf32> to vector<2x16xf32>
    %c5_i32_123 = arith.constant 5 : i32
    %704 = vector.broadcast %c5_i32_123 : i32 to vector<2x1xi32>
    %705 = arith.cmpi eq, %517, %704 : vector<2x1xi32>
    %706 = arith.andi %489, %705 : vector<2x1xi1>
    %707 = vector.shape_cast %706 : vector<2x1xi1> to vector<2x1xi1>
    %708 = vector.broadcast %707 : vector<2x1xi1> to vector<2x16xi1>
    %709 = arith.select %708, %703, %702 : vector<2x16xi1>, vector<2x16xf32>
    %710 = vector.extract_strided_slice %674 {offsets = [0, 6], sizes = [2, 16], strides = [1, 1]} : vector<2x24xf32> to vector<2x16xf32>
    %c6_i32_124 = arith.constant 6 : i32
    %711 = vector.broadcast %c6_i32_124 : i32 to vector<2x1xi32>
    %712 = arith.cmpi eq, %517, %711 : vector<2x1xi32>
    %713 = arith.andi %489, %712 : vector<2x1xi1>
    %714 = vector.shape_cast %713 : vector<2x1xi1> to vector<2x1xi1>
    %715 = vector.broadcast %714 : vector<2x1xi1> to vector<2x16xi1>
    %716 = arith.select %715, %710, %709 : vector<2x16xi1>, vector<2x16xf32>
    %717 = vector.extract_strided_slice %674 {offsets = [0, 7], sizes = [2, 16], strides = [1, 1]} : vector<2x24xf32> to vector<2x16xf32>
    %c7_i32_125 = arith.constant 7 : i32
    %718 = vector.broadcast %c7_i32_125 : i32 to vector<2x1xi32>
    %719 = arith.cmpi eq, %517, %718 : vector<2x1xi32>
    %720 = arith.andi %489, %719 : vector<2x1xi1>
    %721 = vector.shape_cast %720 : vector<2x1xi1> to vector<2x1xi1>
    %722 = vector.broadcast %721 : vector<2x1xi1> to vector<2x16xi1>
    %723 = arith.select %722, %717, %716 : vector<2x16xi1>, vector<2x16xf32>
    %724 = arith.addi %487, %517 : vector<2x1xi32>
    %725 = arith.select %489, %724, %487 : vector<2x1xi1>, vector<2x1xi32>
    %c8_i32_126 = arith.constant 8 : i32
    %726 = vector.broadcast %c8_i32_126 : i32 to vector<2x1xi32>
    %727 = arith.cmpi slt, %725, %726 : vector<2x1xi32>
    %728 = arith.truncf %723 : vector<2x16xf32> to vector<2x16xbf16>
    %cst_127 = arith.constant dense<0.000000e+00> : vector<2x23xf32>
    %729 = tpu.matmul %728, %1, %cst_127 {dimension_numbers = #tpu.dot_dimension_numbers<[1], [0], [0], [1], [0, 0, 1, 1], [], []>} : vector<2x16xbf16>, vector<16x23xbf16>, vector<2x23xf32> -> vector<2x23xf32>
    %730 = vector.broadcast %2 : vector<1x23xf32> to vector<2x23xf32>
    %731 = arith.addf %729, %730 : vector<2x23xf32>
    %732 = vector.extract_strided_slice %731 {offsets = [0, 0], sizes = [2, 11], strides = [1, 1]} : vector<2x23xf32> to vector<2x11xf32>
    %cst_128 = arith.constant 5.000000e-01 : f32
    %733 = vector.broadcast %cst_128 : f32 to vector<2x11xf32>
    %734 = arith.mulf %733, %732 : vector<2x11xf32>
    %cst_129 = arith.constant 0.707106769 : f32
    %735 = vector.broadcast %cst_129 : f32 to vector<2x11xf32>
    %736 = arith.mulf %732, %735 : vector<2x11xf32>
    %737 = math.erf %736 : vector<2x11xf32>
    %cst_130 = arith.constant 1.000000e+00 : f32
    %738 = vector.broadcast %cst_130 : f32 to vector<2x11xf32>
    %739 = arith.addf %738, %737 : vector<2x11xf32>
    %740 = arith.mulf %734, %739 : vector<2x11xf32>
    %741 = arith.truncf %740 : vector<2x11xf32> to vector<2x11xbf16>
    %cst_131 = arith.constant dense<0.000000e+00> : vector<2x7xf32>
    %742 = tpu.matmul %741, %3, %cst_131 {dimension_numbers = #tpu.dot_dimension_numbers<[1], [0], [0], [1], [0, 0, 1, 1], [], []>} : vector<2x11xbf16>, vector<11x7xbf16>, vector<2x7xf32> -> vector<2x7xf32>
    %743 = vector.broadcast %4 : vector<1x7xf32> to vector<2x7xf32>
    %744 = arith.addf %742, %743 : vector<2x7xf32>
    %745 = tpu.iota {dimensions = array<i32: 1>} : vector<2x7xi32>
    %cst_132 = arith.constant dense<0xFF800000> : vector<2xf32>
    %746 = vector.multi_reduction <maximumf>, %744, %cst_132 [1] : vector<2x7xf32> to vector<2xf32>
    %747 = vector.shape_cast %746 : vector<2xf32> to vector<2x1xf32>
    %748 = vector.broadcast %747 : vector<2x1xf32> to vector<2x7xf32>
    %749 = arith.cmpf oeq, %744, %748 : vector<2x7xf32>
    %c7_i32_133 = arith.constant 7 : i32
    %750 = vector.broadcast %c7_i32_133 : i32 to vector<2x7xi32>
    %751 = arith.select %749, %745, %750 : vector<2x7xi1>, vector<2x7xi32>
    %cst_134 = arith.constant dense<2147483647> : vector<2xi32>
    %752 = vector.multi_reduction <minsi>, %751, %cst_134 [1] : vector<2x7xi32> to vector<2xi32>
    %753 = vector.shape_cast %752 : vector<2xi32> to vector<2x1xi32>
    %c1_i32_135 = arith.constant 1 : i32
    %754 = vector.broadcast %c1_i32_135 : i32 to vector<2x1xi32>
    %755 = arith.addi %753, %754 : vector<2x1xi32>
    %756 = vector.extract_strided_slice %731 {offsets = [0, 11], sizes = [2, 12], strides = [1, 1]} : vector<2x23xf32> to vector<2x12xf32>
    %757 = arith.truncf %756 : vector<2x12xf32> to vector<2x12xbf16>
    %cst_136 = arith.constant dense<0.000000e+00> : vector<2x32xf32>
    %758 = tpu.matmul %757, %5, %cst_136 {dimension_numbers = #tpu.dot_dimension_numbers<[1], [0], [0], [1], [0, 0, 1, 1], [], []>} : vector<2x12xbf16>, vector<12x32xbf16>, vector<2x32xf32> -> vector<2x32xf32>
    %c0_i32_137 = arith.constant 0 : i32
    %759 = vector.broadcast %c0_i32_137 : i32 to vector<2x1xi32>
    %760 = vector.extract_strided_slice %758 {offsets = [0, 0], sizes = [2, 8], strides = [1, 1]} : vector<2x32xf32> to vector<2x8xf32>
    %761 = vector.broadcast %6 : vector<1x8xf32> to vector<2x8xf32>
    %762 = arith.mulf %760, %761 : vector<2x8xf32>
    %cst_138 = arith.constant dense<0.000000e+00> : vector<2xf32>
    %763 = vector.multi_reduction <add>, %762, %cst_138 [1] : vector<2x8xf32> to vector<2xf32>
    %764 = vector.shape_cast %763 : vector<2xf32> to vector<2x1xf32>
    %765 = vector.broadcast %7 : vector<1x1xf32> to vector<2x1xf32>
    %766 = arith.addf %764, %765 : vector<2x1xf32>
    %767 = vector.extract_strided_slice %758 {offsets = [0, 8], sizes = [2, 8], strides = [1, 1]} : vector<2x32xf32> to vector<2x8xf32>
    %768 = vector.broadcast %6 : vector<1x8xf32> to vector<2x8xf32>
    %769 = arith.mulf %767, %768 : vector<2x8xf32>
    %cst_139 = arith.constant dense<0.000000e+00> : vector<2xf32>
    %770 = vector.multi_reduction <add>, %769, %cst_139 [1] : vector<2x8xf32> to vector<2xf32>
    %771 = vector.shape_cast %770 : vector<2xf32> to vector<2x1xf32>
    %772 = vector.broadcast %7 : vector<1x1xf32> to vector<2x1xf32>
    %773 = arith.addf %771, %772 : vector<2x1xf32>
    %774 = arith.cmpf ogt, %773, %766 : vector<2x1xf32>
    %775 = arith.select %774, %773, %766 : vector<2x1xi1>, vector<2x1xf32>
    %c1_i32_140 = arith.constant 1 : i32
    %776 = vector.broadcast %c1_i32_140 : i32 to vector<2x1xi32>
    %777 = arith.select %774, %776, %759 : vector<2x1xi1>, vector<2x1xi32>
    %778 = vector.extract_strided_slice %758 {offsets = [0, 16], sizes = [2, 8], strides = [1, 1]} : vector<2x32xf32> to vector<2x8xf32>
    %779 = vector.broadcast %6 : vector<1x8xf32> to vector<2x8xf32>
    %780 = arith.mulf %778, %779 : vector<2x8xf32>
    %cst_141 = arith.constant dense<0.000000e+00> : vector<2xf32>
    %781 = vector.multi_reduction <add>, %780, %cst_141 [1] : vector<2x8xf32> to vector<2xf32>
    %782 = vector.shape_cast %781 : vector<2xf32> to vector<2x1xf32>
    %783 = vector.broadcast %7 : vector<1x1xf32> to vector<2x1xf32>
    %784 = arith.addf %782, %783 : vector<2x1xf32>
    %785 = arith.cmpf ogt, %784, %775 : vector<2x1xf32>
    %786 = arith.select %785, %784, %775 : vector<2x1xi1>, vector<2x1xf32>
    %c2_i32_142 = arith.constant 2 : i32
    %787 = vector.broadcast %c2_i32_142 : i32 to vector<2x1xi32>
    %788 = arith.select %785, %787, %777 : vector<2x1xi1>, vector<2x1xi32>
    %789 = vector.extract_strided_slice %758 {offsets = [0, 24], sizes = [2, 8], strides = [1, 1]} : vector<2x32xf32> to vector<2x8xf32>
    %790 = vector.broadcast %6 : vector<1x8xf32> to vector<2x8xf32>
    %791 = arith.mulf %789, %790 : vector<2x8xf32>
    %cst_143 = arith.constant dense<0.000000e+00> : vector<2xf32>
    %792 = vector.multi_reduction <add>, %791, %cst_143 [1] : vector<2x8xf32> to vector<2xf32>
    %793 = vector.shape_cast %792 : vector<2xf32> to vector<2x1xf32>
    %794 = vector.broadcast %7 : vector<1x1xf32> to vector<2x1xf32>
    %795 = arith.addf %793, %794 : vector<2x1xf32>
    %796 = arith.cmpf ogt, %795, %786 : vector<2x1xf32>
    %c3_i32_144 = arith.constant 3 : i32
    %797 = vector.broadcast %c3_i32_144 : i32 to vector<2x1xi32>
    %798 = arith.select %796, %797, %788 : vector<2x1xi1>, vector<2x1xi32>
    %cst_145 = arith.constant 0.000000e+00 : f32
    %799 = vector.broadcast %cst_145 : f32 to vector<2x8xf32>
    %800 = vector.extract_strided_slice %758 {offsets = [0, 0], sizes = [2, 8], strides = [1, 1]} : vector<2x32xf32> to vector<2x8xf32>
    %c0_i32_146 = arith.constant 0 : i32
    %801 = vector.broadcast %c0_i32_146 : i32 to vector<2x1xi32>
    %802 = arith.cmpi eq, %798, %801 : vector<2x1xi32>
    %803 = arith.extui %802 : vector<2x1xi1> to vector<2x1xi32>
    %804 = arith.sitofp %803 : vector<2x1xi32> to vector<2x1xf32>
    %805 = vector.broadcast %804 : vector<2x1xf32> to vector<2x8xf32>
    %806 = arith.mulf %800, %805 : vector<2x8xf32>
    %807 = arith.addf %799, %806 : vector<2x8xf32>
    %808 = vector.extract_strided_slice %758 {offsets = [0, 8], sizes = [2, 8], strides = [1, 1]} : vector<2x32xf32> to vector<2x8xf32>
    %c1_i32_147 = arith.constant 1 : i32
    %809 = vector.broadcast %c1_i32_147 : i32 to vector<2x1xi32>
    %810 = arith.cmpi eq, %798, %809 : vector<2x1xi32>
    %811 = arith.extui %810 : vector<2x1xi1> to vector<2x1xi32>
    %812 = arith.sitofp %811 : vector<2x1xi32> to vector<2x1xf32>
    %813 = vector.broadcast %812 : vector<2x1xf32> to vector<2x8xf32>
    %814 = arith.mulf %808, %813 : vector<2x8xf32>
    %815 = arith.addf %807, %814 : vector<2x8xf32>
    %816 = vector.extract_strided_slice %758 {offsets = [0, 16], sizes = [2, 8], strides = [1, 1]} : vector<2x32xf32> to vector<2x8xf32>
    %c2_i32_148 = arith.constant 2 : i32
    %817 = vector.broadcast %c2_i32_148 : i32 to vector<2x1xi32>
    %818 = arith.cmpi eq, %798, %817 : vector<2x1xi32>
    %819 = arith.extui %818 : vector<2x1xi1> to vector<2x1xi32>
    %820 = arith.sitofp %819 : vector<2x1xi32> to vector<2x1xf32>
    %821 = vector.broadcast %820 : vector<2x1xf32> to vector<2x8xf32>
    %822 = arith.mulf %816, %821 : vector<2x8xf32>
    %823 = arith.addf %815, %822 : vector<2x8xf32>
    %824 = vector.extract_strided_slice %758 {offsets = [0, 24], sizes = [2, 8], strides = [1, 1]} : vector<2x32xf32> to vector<2x8xf32>
    %c3_i32_149 = arith.constant 3 : i32
    %825 = vector.broadcast %c3_i32_149 : i32 to vector<2x1xi32>
    %826 = arith.cmpi eq, %798, %825 : vector<2x1xi32>
    %827 = arith.extui %826 : vector<2x1xi1> to vector<2x1xi32>
    %828 = arith.sitofp %827 : vector<2x1xi32> to vector<2x1xf32>
    %829 = vector.broadcast %828 : vector<2x1xf32> to vector<2x8xf32>
    %830 = arith.mulf %824, %829 : vector<2x8xf32>
    %831 = arith.addf %823, %830 : vector<2x8xf32>
    %cst_150 = arith.constant 0.000000e+00 : f32
    %832 = vector.broadcast %cst_150 : f32 to vector<2x8xf32>
    %833 = vector.extract_strided_slice %831 {offsets = [0, 0], sizes = [2, 1], strides = [1, 1]} : vector<2x8xf32> to vector<2x1xf32>
    %c0_i32_151 = arith.constant 0 : i32
    %834 = vector.broadcast %c0_i32_151 : i32 to vector<2x1xi32>
    %835 = arith.addi %725, %834 : vector<2x1xi32>
    %836 = vector.broadcast %835 : vector<2x1xi32> to vector<2x8xi32>
    %837 = arith.cmpi eq, %9, %836 : vector<2x8xi32>
    %838 = arith.extui %837 : vector<2x8xi1> to vector<2x8xi32>
    %839 = arith.sitofp %838 : vector<2x8xi32> to vector<2x8xf32>
    %840 = vector.broadcast %833 : vector<2x1xf32> to vector<2x8xf32>
    %841 = arith.mulf %840, %839 : vector<2x8xf32>
    %842 = arith.addf %832, %841 : vector<2x8xf32>
    %843 = vector.extract_strided_slice %831 {offsets = [0, 1], sizes = [2, 1], strides = [1, 1]} : vector<2x8xf32> to vector<2x1xf32>
    %c1_i32_152 = arith.constant 1 : i32
    %844 = vector.broadcast %c1_i32_152 : i32 to vector<2x1xi32>
    %845 = arith.addi %725, %844 : vector<2x1xi32>
    %846 = vector.broadcast %845 : vector<2x1xi32> to vector<2x8xi32>
    %847 = arith.cmpi eq, %9, %846 : vector<2x8xi32>
    %848 = arith.extui %847 : vector<2x8xi1> to vector<2x8xi32>
    %849 = arith.sitofp %848 : vector<2x8xi32> to vector<2x8xf32>
    %850 = vector.broadcast %843 : vector<2x1xf32> to vector<2x8xf32>
    %851 = arith.mulf %850, %849 : vector<2x8xf32>
    %852 = arith.addf %842, %851 : vector<2x8xf32>
    %853 = vector.extract_strided_slice %831 {offsets = [0, 2], sizes = [2, 1], strides = [1, 1]} : vector<2x8xf32> to vector<2x1xf32>
    %c2_i32_153 = arith.constant 2 : i32
    %854 = vector.broadcast %c2_i32_153 : i32 to vector<2x1xi32>
    %855 = arith.addi %725, %854 : vector<2x1xi32>
    %856 = vector.broadcast %855 : vector<2x1xi32> to vector<2x8xi32>
    %857 = arith.cmpi eq, %9, %856 : vector<2x8xi32>
    %858 = arith.extui %857 : vector<2x8xi1> to vector<2x8xi32>
    %859 = arith.sitofp %858 : vector<2x8xi32> to vector<2x8xf32>
    %860 = vector.broadcast %853 : vector<2x1xf32> to vector<2x8xf32>
    %861 = arith.mulf %860, %859 : vector<2x8xf32>
    %862 = arith.addf %852, %861 : vector<2x8xf32>
    %863 = vector.extract_strided_slice %831 {offsets = [0, 3], sizes = [2, 1], strides = [1, 1]} : vector<2x8xf32> to vector<2x1xf32>
    %c3_i32_154 = arith.constant 3 : i32
    %864 = vector.broadcast %c3_i32_154 : i32 to vector<2x1xi32>
    %865 = arith.addi %725, %864 : vector<2x1xi32>
    %866 = vector.broadcast %865 : vector<2x1xi32> to vector<2x8xi32>
    %867 = arith.cmpi eq, %9, %866 : vector<2x8xi32>
    %868 = arith.extui %867 : vector<2x8xi1> to vector<2x8xi32>
    %869 = arith.sitofp %868 : vector<2x8xi32> to vector<2x8xf32>
    %870 = vector.broadcast %863 : vector<2x1xf32> to vector<2x8xf32>
    %871 = arith.mulf %870, %869 : vector<2x8xf32>
    %872 = arith.addf %862, %871 : vector<2x8xf32>
    %873 = vector.extract_strided_slice %831 {offsets = [0, 4], sizes = [2, 1], strides = [1, 1]} : vector<2x8xf32> to vector<2x1xf32>
    %c4_i32_155 = arith.constant 4 : i32
    %874 = vector.broadcast %c4_i32_155 : i32 to vector<2x1xi32>
    %875 = arith.addi %725, %874 : vector<2x1xi32>
    %876 = vector.broadcast %875 : vector<2x1xi32> to vector<2x8xi32>
    %877 = arith.cmpi eq, %9, %876 : vector<2x8xi32>
    %878 = arith.extui %877 : vector<2x8xi1> to vector<2x8xi32>
    %879 = arith.sitofp %878 : vector<2x8xi32> to vector<2x8xf32>
    %880 = vector.broadcast %873 : vector<2x1xf32> to vector<2x8xf32>
    %881 = arith.mulf %880, %879 : vector<2x8xf32>
    %882 = arith.addf %872, %881 : vector<2x8xf32>
    %883 = vector.extract_strided_slice %831 {offsets = [0, 5], sizes = [2, 1], strides = [1, 1]} : vector<2x8xf32> to vector<2x1xf32>
    %c5_i32_156 = arith.constant 5 : i32
    %884 = vector.broadcast %c5_i32_156 : i32 to vector<2x1xi32>
    %885 = arith.addi %725, %884 : vector<2x1xi32>
    %886 = vector.broadcast %885 : vector<2x1xi32> to vector<2x8xi32>
    %887 = arith.cmpi eq, %9, %886 : vector<2x8xi32>
    %888 = arith.extui %887 : vector<2x8xi1> to vector<2x8xi32>
    %889 = arith.sitofp %888 : vector<2x8xi32> to vector<2x8xf32>
    %890 = vector.broadcast %883 : vector<2x1xf32> to vector<2x8xf32>
    %891 = arith.mulf %890, %889 : vector<2x8xf32>
    %892 = arith.addf %882, %891 : vector<2x8xf32>
    %893 = vector.extract_strided_slice %831 {offsets = [0, 6], sizes = [2, 1], strides = [1, 1]} : vector<2x8xf32> to vector<2x1xf32>
    %c6_i32_157 = arith.constant 6 : i32
    %894 = vector.broadcast %c6_i32_157 : i32 to vector<2x1xi32>
    %895 = arith.addi %725, %894 : vector<2x1xi32>
    %896 = vector.broadcast %895 : vector<2x1xi32> to vector<2x8xi32>
    %897 = arith.cmpi eq, %9, %896 : vector<2x8xi32>
    %898 = arith.extui %897 : vector<2x8xi1> to vector<2x8xi32>
    %899 = arith.sitofp %898 : vector<2x8xi32> to vector<2x8xf32>
    %900 = vector.broadcast %893 : vector<2x1xf32> to vector<2x8xf32>
    %901 = arith.mulf %900, %899 : vector<2x8xf32>
    %902 = arith.addf %892, %901 : vector<2x8xf32>
    %903 = vector.broadcast %725 : vector<2x1xi32> to vector<2x8xi32>
    %904 = arith.cmpi sge, %9, %903 : vector<2x8xi32>
    %905 = vector.broadcast %727 : vector<2x1xi1> to vector<2x8xi1>
    %906 = arith.andi %905, %904 : vector<2x8xi1>
    %907 = arith.addi %725, %755 : vector<2x1xi32>
    %908 = vector.broadcast %907 : vector<2x1xi32> to vector<2x8xi32>
    %909 = arith.cmpi slt, %9, %908 : vector<2x8xi32>
    %910 = arith.andi %906, %909 : vector<2x8xi1>
    %911 = arith.select %910, %902, %673 : vector<2x8xi1>, vector<2x8xf32>
    %912 = tpu.concatenate %723, %831 in 1 : vector<2x16xf32>, vector<2x8xf32> -> vector<2x24xf32>
    %913 = vector.extract_strided_slice %912 {offsets = [0, 1], sizes = [2, 16], strides = [1, 1]} : vector<2x24xf32> to vector<2x16xf32>
    %c1_i32_158 = arith.constant 1 : i32
    %914 = vector.broadcast %c1_i32_158 : i32 to vector<2x1xi32>
    %915 = arith.cmpi eq, %755, %914 : vector<2x1xi32>
    %916 = arith.andi %727, %915 : vector<2x1xi1>
    %917 = vector.shape_cast %916 : vector<2x1xi1> to vector<2x1xi1>
    %918 = vector.broadcast %917 : vector<2x1xi1> to vector<2x16xi1>
    %919 = arith.select %918, %913, %723 : vector<2x16xi1>, vector<2x16xf32>
    %920 = vector.extract_strided_slice %912 {offsets = [0, 2], sizes = [2, 16], strides = [1, 1]} : vector<2x24xf32> to vector<2x16xf32>
    %c2_i32_159 = arith.constant 2 : i32
    %921 = vector.broadcast %c2_i32_159 : i32 to vector<2x1xi32>
    %922 = arith.cmpi eq, %755, %921 : vector<2x1xi32>
    %923 = arith.andi %727, %922 : vector<2x1xi1>
    %924 = vector.shape_cast %923 : vector<2x1xi1> to vector<2x1xi1>
    %925 = vector.broadcast %924 : vector<2x1xi1> to vector<2x16xi1>
    %926 = arith.select %925, %920, %919 : vector<2x16xi1>, vector<2x16xf32>
    %927 = vector.extract_strided_slice %912 {offsets = [0, 3], sizes = [2, 16], strides = [1, 1]} : vector<2x24xf32> to vector<2x16xf32>
    %c3_i32_160 = arith.constant 3 : i32
    %928 = vector.broadcast %c3_i32_160 : i32 to vector<2x1xi32>
    %929 = arith.cmpi eq, %755, %928 : vector<2x1xi32>
    %930 = arith.andi %727, %929 : vector<2x1xi1>
    %931 = vector.shape_cast %930 : vector<2x1xi1> to vector<2x1xi1>
    %932 = vector.broadcast %931 : vector<2x1xi1> to vector<2x16xi1>
    %933 = arith.select %932, %927, %926 : vector<2x16xi1>, vector<2x16xf32>
    %934 = vector.extract_strided_slice %912 {offsets = [0, 4], sizes = [2, 16], strides = [1, 1]} : vector<2x24xf32> to vector<2x16xf32>
    %c4_i32_161 = arith.constant 4 : i32
    %935 = vector.broadcast %c4_i32_161 : i32 to vector<2x1xi32>
    %936 = arith.cmpi eq, %755, %935 : vector<2x1xi32>
    %937 = arith.andi %727, %936 : vector<2x1xi1>
    %938 = vector.shape_cast %937 : vector<2x1xi1> to vector<2x1xi1>
    %939 = vector.broadcast %938 : vector<2x1xi1> to vector<2x16xi1>
    %940 = arith.select %939, %934, %933 : vector<2x16xi1>, vector<2x16xf32>
    %941 = vector.extract_strided_slice %912 {offsets = [0, 5], sizes = [2, 16], strides = [1, 1]} : vector<2x24xf32> to vector<2x16xf32>
    %c5_i32_162 = arith.constant 5 : i32
    %942 = vector.broadcast %c5_i32_162 : i32 to vector<2x1xi32>
    %943 = arith.cmpi eq, %755, %942 : vector<2x1xi32>
    %944 = arith.andi %727, %943 : vector<2x1xi1>
    %945 = vector.shape_cast %944 : vector<2x1xi1> to vector<2x1xi1>
    %946 = vector.broadcast %945 : vector<2x1xi1> to vector<2x16xi1>
    %947 = arith.select %946, %941, %940 : vector<2x16xi1>, vector<2x16xf32>
    %948 = vector.extract_strided_slice %912 {offsets = [0, 6], sizes = [2, 16], strides = [1, 1]} : vector<2x24xf32> to vector<2x16xf32>
    %c6_i32_163 = arith.constant 6 : i32
    %949 = vector.broadcast %c6_i32_163 : i32 to vector<2x1xi32>
    %950 = arith.cmpi eq, %755, %949 : vector<2x1xi32>
    %951 = arith.andi %727, %950 : vector<2x1xi1>
    %952 = vector.shape_cast %951 : vector<2x1xi1> to vector<2x1xi1>
    %953 = vector.broadcast %952 : vector<2x1xi1> to vector<2x16xi1>
    %954 = arith.select %953, %948, %947 : vector<2x16xi1>, vector<2x16xf32>
    %955 = vector.extract_strided_slice %912 {offsets = [0, 7], sizes = [2, 16], strides = [1, 1]} : vector<2x24xf32> to vector<2x16xf32>
    %c7_i32_164 = arith.constant 7 : i32
    %956 = vector.broadcast %c7_i32_164 : i32 to vector<2x1xi32>
    %957 = arith.cmpi eq, %755, %956 : vector<2x1xi32>
    %958 = arith.andi %727, %957 : vector<2x1xi1>
    %959 = vector.shape_cast %958 : vector<2x1xi1> to vector<2x1xi1>
    %960 = vector.broadcast %959 : vector<2x1xi1> to vector<2x16xi1>
    %961 = arith.select %960, %955, %954 : vector<2x16xi1>, vector<2x16xf32>
    %962 = arith.addi %725, %755 : vector<2x1xi32>
    %963 = arith.select %727, %962, %725 : vector<2x1xi1>, vector<2x1xi32>
    %c8_i32_165 = arith.constant 8 : i32
    %964 = vector.broadcast %c8_i32_165 : i32 to vector<2x1xi32>
    %965 = arith.cmpi slt, %963, %964 : vector<2x1xi32>
    %966 = arith.truncf %961 : vector<2x16xf32> to vector<2x16xbf16>
    %cst_166 = arith.constant dense<0.000000e+00> : vector<2x23xf32>
    %967 = tpu.matmul %966, %1, %cst_166 {dimension_numbers = #tpu.dot_dimension_numbers<[1], [0], [0], [1], [0, 0, 1, 1], [], []>} : vector<2x16xbf16>, vector<16x23xbf16>, vector<2x23xf32> -> vector<2x23xf32>
    %968 = vector.broadcast %2 : vector<1x23xf32> to vector<2x23xf32>
    %969 = arith.addf %967, %968 : vector<2x23xf32>
    %970 = vector.extract_strided_slice %969 {offsets = [0, 0], sizes = [2, 11], strides = [1, 1]} : vector<2x23xf32> to vector<2x11xf32>
    %cst_167 = arith.constant 5.000000e-01 : f32
    %971 = vector.broadcast %cst_167 : f32 to vector<2x11xf32>
    %972 = arith.mulf %971, %970 : vector<2x11xf32>
    %cst_168 = arith.constant 0.707106769 : f32
    %973 = vector.broadcast %cst_168 : f32 to vector<2x11xf32>
    %974 = arith.mulf %970, %973 : vector<2x11xf32>
    %975 = math.erf %974 : vector<2x11xf32>
    %cst_169 = arith.constant 1.000000e+00 : f32
    %976 = vector.broadcast %cst_169 : f32 to vector<2x11xf32>
    %977 = arith.addf %976, %975 : vector<2x11xf32>
    %978 = arith.mulf %972, %977 : vector<2x11xf32>
    %979 = arith.truncf %978 : vector<2x11xf32> to vector<2x11xbf16>
    %cst_170 = arith.constant dense<0.000000e+00> : vector<2x7xf32>
    %980 = tpu.matmul %979, %3, %cst_170 {dimension_numbers = #tpu.dot_dimension_numbers<[1], [0], [0], [1], [0, 0, 1, 1], [], []>} : vector<2x11xbf16>, vector<11x7xbf16>, vector<2x7xf32> -> vector<2x7xf32>
    %981 = vector.broadcast %4 : vector<1x7xf32> to vector<2x7xf32>
    %982 = arith.addf %980, %981 : vector<2x7xf32>
    %983 = tpu.iota {dimensions = array<i32: 1>} : vector<2x7xi32>
    %cst_171 = arith.constant dense<0xFF800000> : vector<2xf32>
    %984 = vector.multi_reduction <maximumf>, %982, %cst_171 [1] : vector<2x7xf32> to vector<2xf32>
    %985 = vector.shape_cast %984 : vector<2xf32> to vector<2x1xf32>
    %986 = vector.broadcast %985 : vector<2x1xf32> to vector<2x7xf32>
    %987 = arith.cmpf oeq, %982, %986 : vector<2x7xf32>
    %c7_i32_172 = arith.constant 7 : i32
    %988 = vector.broadcast %c7_i32_172 : i32 to vector<2x7xi32>
    %989 = arith.select %987, %983, %988 : vector<2x7xi1>, vector<2x7xi32>
    %cst_173 = arith.constant dense<2147483647> : vector<2xi32>
    %990 = vector.multi_reduction <minsi>, %989, %cst_173 [1] : vector<2x7xi32> to vector<2xi32>
    %991 = vector.shape_cast %990 : vector<2xi32> to vector<2x1xi32>
    %c1_i32_174 = arith.constant 1 : i32
    %992 = vector.broadcast %c1_i32_174 : i32 to vector<2x1xi32>
    %993 = arith.addi %991, %992 : vector<2x1xi32>
    %994 = vector.extract_strided_slice %969 {offsets = [0, 11], sizes = [2, 12], strides = [1, 1]} : vector<2x23xf32> to vector<2x12xf32>
    %995 = arith.truncf %994 : vector<2x12xf32> to vector<2x12xbf16>
    %cst_175 = arith.constant dense<0.000000e+00> : vector<2x32xf32>
    %996 = tpu.matmul %995, %5, %cst_175 {dimension_numbers = #tpu.dot_dimension_numbers<[1], [0], [0], [1], [0, 0, 1, 1], [], []>} : vector<2x12xbf16>, vector<12x32xbf16>, vector<2x32xf32> -> vector<2x32xf32>
    %c0_i32_176 = arith.constant 0 : i32
    %997 = vector.broadcast %c0_i32_176 : i32 to vector<2x1xi32>
    %998 = vector.extract_strided_slice %996 {offsets = [0, 0], sizes = [2, 8], strides = [1, 1]} : vector<2x32xf32> to vector<2x8xf32>
    %999 = vector.broadcast %6 : vector<1x8xf32> to vector<2x8xf32>
    %1000 = arith.mulf %998, %999 : vector<2x8xf32>
    %cst_177 = arith.constant dense<0.000000e+00> : vector<2xf32>
    %1001 = vector.multi_reduction <add>, %1000, %cst_177 [1] : vector<2x8xf32> to vector<2xf32>
    %1002 = vector.shape_cast %1001 : vector<2xf32> to vector<2x1xf32>
    %1003 = vector.broadcast %7 : vector<1x1xf32> to vector<2x1xf32>
    %1004 = arith.addf %1002, %1003 : vector<2x1xf32>
    %1005 = vector.extract_strided_slice %996 {offsets = [0, 8], sizes = [2, 8], strides = [1, 1]} : vector<2x32xf32> to vector<2x8xf32>
    %1006 = vector.broadcast %6 : vector<1x8xf32> to vector<2x8xf32>
    %1007 = arith.mulf %1005, %1006 : vector<2x8xf32>
    %cst_178 = arith.constant dense<0.000000e+00> : vector<2xf32>
    %1008 = vector.multi_reduction <add>, %1007, %cst_178 [1] : vector<2x8xf32> to vector<2xf32>
    %1009 = vector.shape_cast %1008 : vector<2xf32> to vector<2x1xf32>
    %1010 = vector.broadcast %7 : vector<1x1xf32> to vector<2x1xf32>
    %1011 = arith.addf %1009, %1010 : vector<2x1xf32>
    %1012 = arith.cmpf ogt, %1011, %1004 : vector<2x1xf32>
    %1013 = arith.select %1012, %1011, %1004 : vector<2x1xi1>, vector<2x1xf32>
    %c1_i32_179 = arith.constant 1 : i32
    %1014 = vector.broadcast %c1_i32_179 : i32 to vector<2x1xi32>
    %1015 = arith.select %1012, %1014, %997 : vector<2x1xi1>, vector<2x1xi32>
    %1016 = vector.extract_strided_slice %996 {offsets = [0, 16], sizes = [2, 8], strides = [1, 1]} : vector<2x32xf32> to vector<2x8xf32>
    %1017 = vector.broadcast %6 : vector<1x8xf32> to vector<2x8xf32>
    %1018 = arith.mulf %1016, %1017 : vector<2x8xf32>
    %cst_180 = arith.constant dense<0.000000e+00> : vector<2xf32>
    %1019 = vector.multi_reduction <add>, %1018, %cst_180 [1] : vector<2x8xf32> to vector<2xf32>
    %1020 = vector.shape_cast %1019 : vector<2xf32> to vector<2x1xf32>
    %1021 = vector.broadcast %7 : vector<1x1xf32> to vector<2x1xf32>
    %1022 = arith.addf %1020, %1021 : vector<2x1xf32>
    %1023 = arith.cmpf ogt, %1022, %1013 : vector<2x1xf32>
    %1024 = arith.select %1023, %1022, %1013 : vector<2x1xi1>, vector<2x1xf32>
    %c2_i32_181 = arith.constant 2 : i32
    %1025 = vector.broadcast %c2_i32_181 : i32 to vector<2x1xi32>
    %1026 = arith.select %1023, %1025, %1015 : vector<2x1xi1>, vector<2x1xi32>
    %1027 = vector.extract_strided_slice %996 {offsets = [0, 24], sizes = [2, 8], strides = [1, 1]} : vector<2x32xf32> to vector<2x8xf32>
    %1028 = vector.broadcast %6 : vector<1x8xf32> to vector<2x8xf32>
    %1029 = arith.mulf %1027, %1028 : vector<2x8xf32>
    %cst_182 = arith.constant dense<0.000000e+00> : vector<2xf32>
    %1030 = vector.multi_reduction <add>, %1029, %cst_182 [1] : vector<2x8xf32> to vector<2xf32>
    %1031 = vector.shape_cast %1030 : vector<2xf32> to vector<2x1xf32>
    %1032 = vector.broadcast %7 : vector<1x1xf32> to vector<2x1xf32>
    %1033 = arith.addf %1031, %1032 : vector<2x1xf32>
    %1034 = arith.cmpf ogt, %1033, %1024 : vector<2x1xf32>
    %c3_i32_183 = arith.constant 3 : i32
    %1035 = vector.broadcast %c3_i32_183 : i32 to vector<2x1xi32>
    %1036 = arith.select %1034, %1035, %1026 : vector<2x1xi1>, vector<2x1xi32>
    %cst_184 = arith.constant 0.000000e+00 : f32
    %1037 = vector.broadcast %cst_184 : f32 to vector<2x8xf32>
    %1038 = vector.extract_strided_slice %996 {offsets = [0, 0], sizes = [2, 8], strides = [1, 1]} : vector<2x32xf32> to vector<2x8xf32>
    %c0_i32_185 = arith.constant 0 : i32
    %1039 = vector.broadcast %c0_i32_185 : i32 to vector<2x1xi32>
    %1040 = arith.cmpi eq, %1036, %1039 : vector<2x1xi32>
    %1041 = arith.extui %1040 : vector<2x1xi1> to vector<2x1xi32>
    %1042 = arith.sitofp %1041 : vector<2x1xi32> to vector<2x1xf32>
    %1043 = vector.broadcast %1042 : vector<2x1xf32> to vector<2x8xf32>
    %1044 = arith.mulf %1038, %1043 : vector<2x8xf32>
    %1045 = arith.addf %1037, %1044 : vector<2x8xf32>
    %1046 = vector.extract_strided_slice %996 {offsets = [0, 8], sizes = [2, 8], strides = [1, 1]} : vector<2x32xf32> to vector<2x8xf32>
    %c1_i32_186 = arith.constant 1 : i32
    %1047 = vector.broadcast %c1_i32_186 : i32 to vector<2x1xi32>
    %1048 = arith.cmpi eq, %1036, %1047 : vector<2x1xi32>
    %1049 = arith.extui %1048 : vector<2x1xi1> to vector<2x1xi32>
    %1050 = arith.sitofp %1049 : vector<2x1xi32> to vector<2x1xf32>
    %1051 = vector.broadcast %1050 : vector<2x1xf32> to vector<2x8xf32>
    %1052 = arith.mulf %1046, %1051 : vector<2x8xf32>
    %1053 = arith.addf %1045, %1052 : vector<2x8xf32>
    %1054 = vector.extract_strided_slice %996 {offsets = [0, 16], sizes = [2, 8], strides = [1, 1]} : vector<2x32xf32> to vector<2x8xf32>
    %c2_i32_187 = arith.constant 2 : i32
    %1055 = vector.broadcast %c2_i32_187 : i32 to vector<2x1xi32>
    %1056 = arith.cmpi eq, %1036, %1055 : vector<2x1xi32>
    %1057 = arith.extui %1056 : vector<2x1xi1> to vector<2x1xi32>
    %1058 = arith.sitofp %1057 : vector<2x1xi32> to vector<2x1xf32>
    %1059 = vector.broadcast %1058 : vector<2x1xf32> to vector<2x8xf32>
    %1060 = arith.mulf %1054, %1059 : vector<2x8xf32>
    %1061 = arith.addf %1053, %1060 : vector<2x8xf32>
    %1062 = vector.extract_strided_slice %996 {offsets = [0, 24], sizes = [2, 8], strides = [1, 1]} : vector<2x32xf32> to vector<2x8xf32>
    %c3_i32_188 = arith.constant 3 : i32
    %1063 = vector.broadcast %c3_i32_188 : i32 to vector<2x1xi32>
    %1064 = arith.cmpi eq, %1036, %1063 : vector<2x1xi32>
    %1065 = arith.extui %1064 : vector<2x1xi1> to vector<2x1xi32>
    %1066 = arith.sitofp %1065 : vector<2x1xi32> to vector<2x1xf32>
    %1067 = vector.broadcast %1066 : vector<2x1xf32> to vector<2x8xf32>
    %1068 = arith.mulf %1062, %1067 : vector<2x8xf32>
    %1069 = arith.addf %1061, %1068 : vector<2x8xf32>
    %cst_189 = arith.constant 0.000000e+00 : f32
    %1070 = vector.broadcast %cst_189 : f32 to vector<2x8xf32>
    %1071 = vector.extract_strided_slice %1069 {offsets = [0, 0], sizes = [2, 1], strides = [1, 1]} : vector<2x8xf32> to vector<2x1xf32>
    %c0_i32_190 = arith.constant 0 : i32
    %1072 = vector.broadcast %c0_i32_190 : i32 to vector<2x1xi32>
    %1073 = arith.addi %963, %1072 : vector<2x1xi32>
    %1074 = vector.broadcast %1073 : vector<2x1xi32> to vector<2x8xi32>
    %1075 = arith.cmpi eq, %9, %1074 : vector<2x8xi32>
    %1076 = arith.extui %1075 : vector<2x8xi1> to vector<2x8xi32>
    %1077 = arith.sitofp %1076 : vector<2x8xi32> to vector<2x8xf32>
    %1078 = vector.broadcast %1071 : vector<2x1xf32> to vector<2x8xf32>
    %1079 = arith.mulf %1078, %1077 : vector<2x8xf32>
    %1080 = arith.addf %1070, %1079 : vector<2x8xf32>
    %1081 = vector.extract_strided_slice %1069 {offsets = [0, 1], sizes = [2, 1], strides = [1, 1]} : vector<2x8xf32> to vector<2x1xf32>
    %c1_i32_191 = arith.constant 1 : i32
    %1082 = vector.broadcast %c1_i32_191 : i32 to vector<2x1xi32>
    %1083 = arith.addi %963, %1082 : vector<2x1xi32>
    %1084 = vector.broadcast %1083 : vector<2x1xi32> to vector<2x8xi32>
    %1085 = arith.cmpi eq, %9, %1084 : vector<2x8xi32>
    %1086 = arith.extui %1085 : vector<2x8xi1> to vector<2x8xi32>
    %1087 = arith.sitofp %1086 : vector<2x8xi32> to vector<2x8xf32>
    %1088 = vector.broadcast %1081 : vector<2x1xf32> to vector<2x8xf32>
    %1089 = arith.mulf %1088, %1087 : vector<2x8xf32>
    %1090 = arith.addf %1080, %1089 : vector<2x8xf32>
    %1091 = vector.extract_strided_slice %1069 {offsets = [0, 2], sizes = [2, 1], strides = [1, 1]} : vector<2x8xf32> to vector<2x1xf32>
    %c2_i32_192 = arith.constant 2 : i32
    %1092 = vector.broadcast %c2_i32_192 : i32 to vector<2x1xi32>
    %1093 = arith.addi %963, %1092 : vector<2x1xi32>
    %1094 = vector.broadcast %1093 : vector<2x1xi32> to vector<2x8xi32>
    %1095 = arith.cmpi eq, %9, %1094 : vector<2x8xi32>
    %1096 = arith.extui %1095 : vector<2x8xi1> to vector<2x8xi32>
    %1097 = arith.sitofp %1096 : vector<2x8xi32> to vector<2x8xf32>
    %1098 = vector.broadcast %1091 : vector<2x1xf32> to vector<2x8xf32>
    %1099 = arith.mulf %1098, %1097 : vector<2x8xf32>
    %1100 = arith.addf %1090, %1099 : vector<2x8xf32>
    %1101 = vector.extract_strided_slice %1069 {offsets = [0, 3], sizes = [2, 1], strides = [1, 1]} : vector<2x8xf32> to vector<2x1xf32>
    %c3_i32_193 = arith.constant 3 : i32
    %1102 = vector.broadcast %c3_i32_193 : i32 to vector<2x1xi32>
    %1103 = arith.addi %963, %1102 : vector<2x1xi32>
    %1104 = vector.broadcast %1103 : vector<2x1xi32> to vector<2x8xi32>
    %1105 = arith.cmpi eq, %9, %1104 : vector<2x8xi32>
    %1106 = arith.extui %1105 : vector<2x8xi1> to vector<2x8xi32>
    %1107 = arith.sitofp %1106 : vector<2x8xi32> to vector<2x8xf32>
    %1108 = vector.broadcast %1101 : vector<2x1xf32> to vector<2x8xf32>
    %1109 = arith.mulf %1108, %1107 : vector<2x8xf32>
    %1110 = arith.addf %1100, %1109 : vector<2x8xf32>
    %1111 = vector.extract_strided_slice %1069 {offsets = [0, 4], sizes = [2, 1], strides = [1, 1]} : vector<2x8xf32> to vector<2x1xf32>
    %c4_i32_194 = arith.constant 4 : i32
    %1112 = vector.broadcast %c4_i32_194 : i32 to vector<2x1xi32>
    %1113 = arith.addi %963, %1112 : vector<2x1xi32>
    %1114 = vector.broadcast %1113 : vector<2x1xi32> to vector<2x8xi32>
    %1115 = arith.cmpi eq, %9, %1114 : vector<2x8xi32>
    %1116 = arith.extui %1115 : vector<2x8xi1> to vector<2x8xi32>
    %1117 = arith.sitofp %1116 : vector<2x8xi32> to vector<2x8xf32>
    %1118 = vector.broadcast %1111 : vector<2x1xf32> to vector<2x8xf32>
    %1119 = arith.mulf %1118, %1117 : vector<2x8xf32>
    %1120 = arith.addf %1110, %1119 : vector<2x8xf32>
    %1121 = vector.extract_strided_slice %1069 {offsets = [0, 5], sizes = [2, 1], strides = [1, 1]} : vector<2x8xf32> to vector<2x1xf32>
    %c5_i32_195 = arith.constant 5 : i32
    %1122 = vector.broadcast %c5_i32_195 : i32 to vector<2x1xi32>
    %1123 = arith.addi %963, %1122 : vector<2x1xi32>
    %1124 = vector.broadcast %1123 : vector<2x1xi32> to vector<2x8xi32>
    %1125 = arith.cmpi eq, %9, %1124 : vector<2x8xi32>
    %1126 = arith.extui %1125 : vector<2x8xi1> to vector<2x8xi32>
    %1127 = arith.sitofp %1126 : vector<2x8xi32> to vector<2x8xf32>
    %1128 = vector.broadcast %1121 : vector<2x1xf32> to vector<2x8xf32>
    %1129 = arith.mulf %1128, %1127 : vector<2x8xf32>
    %1130 = arith.addf %1120, %1129 : vector<2x8xf32>
    %1131 = vector.extract_strided_slice %1069 {offsets = [0, 6], sizes = [2, 1], strides = [1, 1]} : vector<2x8xf32> to vector<2x1xf32>
    %c6_i32_196 = arith.constant 6 : i32
    %1132 = vector.broadcast %c6_i32_196 : i32 to vector<2x1xi32>
    %1133 = arith.addi %963, %1132 : vector<2x1xi32>
    %1134 = vector.broadcast %1133 : vector<2x1xi32> to vector<2x8xi32>
    %1135 = arith.cmpi eq, %9, %1134 : vector<2x8xi32>
    %1136 = arith.extui %1135 : vector<2x8xi1> to vector<2x8xi32>
    %1137 = arith.sitofp %1136 : vector<2x8xi32> to vector<2x8xf32>
    %1138 = vector.broadcast %1131 : vector<2x1xf32> to vector<2x8xf32>
    %1139 = arith.mulf %1138, %1137 : vector<2x8xf32>
    %1140 = arith.addf %1130, %1139 : vector<2x8xf32>
    %1141 = vector.broadcast %963 : vector<2x1xi32> to vector<2x8xi32>
    %1142 = arith.cmpi sge, %9, %1141 : vector<2x8xi32>
    %1143 = vector.broadcast %965 : vector<2x1xi1> to vector<2x8xi1>
    %1144 = arith.andi %1143, %1142 : vector<2x8xi1>
    %1145 = arith.addi %963, %993 : vector<2x1xi32>
    %1146 = vector.broadcast %1145 : vector<2x1xi32> to vector<2x8xi32>
    %1147 = arith.cmpi slt, %9, %1146 : vector<2x8xi32>
    %1148 = arith.andi %1144, %1147 : vector<2x8xi1>
    %1149 = arith.select %1148, %1140, %911 : vector<2x8xi1>, vector<2x8xf32>
    %1150 = tpu.concatenate %961, %1069 in 1 : vector<2x16xf32>, vector<2x8xf32> -> vector<2x24xf32>
    %1151 = vector.extract_strided_slice %1150 {offsets = [0, 1], sizes = [2, 16], strides = [1, 1]} : vector<2x24xf32> to vector<2x16xf32>
    %c1_i32_197 = arith.constant 1 : i32
    %1152 = vector.broadcast %c1_i32_197 : i32 to vector<2x1xi32>
    %1153 = arith.cmpi eq, %993, %1152 : vector<2x1xi32>
    %1154 = arith.andi %965, %1153 : vector<2x1xi1>
    %1155 = vector.shape_cast %1154 : vector<2x1xi1> to vector<2x1xi1>
    %1156 = vector.broadcast %1155 : vector<2x1xi1> to vector<2x16xi1>
    %1157 = arith.select %1156, %1151, %961 : vector<2x16xi1>, vector<2x16xf32>
    %1158 = vector.extract_strided_slice %1150 {offsets = [0, 2], sizes = [2, 16], strides = [1, 1]} : vector<2x24xf32> to vector<2x16xf32>
    %c2_i32_198 = arith.constant 2 : i32
    %1159 = vector.broadcast %c2_i32_198 : i32 to vector<2x1xi32>
    %1160 = arith.cmpi eq, %993, %1159 : vector<2x1xi32>
    %1161 = arith.andi %965, %1160 : vector<2x1xi1>
    %1162 = vector.shape_cast %1161 : vector<2x1xi1> to vector<2x1xi1>
    %1163 = vector.broadcast %1162 : vector<2x1xi1> to vector<2x16xi1>
    %1164 = arith.select %1163, %1158, %1157 : vector<2x16xi1>, vector<2x16xf32>
    %1165 = vector.extract_strided_slice %1150 {offsets = [0, 3], sizes = [2, 16], strides = [1, 1]} : vector<2x24xf32> to vector<2x16xf32>
    %c3_i32_199 = arith.constant 3 : i32
    %1166 = vector.broadcast %c3_i32_199 : i32 to vector<2x1xi32>
    %1167 = arith.cmpi eq, %993, %1166 : vector<2x1xi32>
    %1168 = arith.andi %965, %1167 : vector<2x1xi1>
    %1169 = vector.shape_cast %1168 : vector<2x1xi1> to vector<2x1xi1>
    %1170 = vector.broadcast %1169 : vector<2x1xi1> to vector<2x16xi1>
    %1171 = arith.select %1170, %1165, %1164 : vector<2x16xi1>, vector<2x16xf32>
    %1172 = vector.extract_strided_slice %1150 {offsets = [0, 4], sizes = [2, 16], strides = [1, 1]} : vector<2x24xf32> to vector<2x16xf32>
    %c4_i32_200 = arith.constant 4 : i32
    %1173 = vector.broadcast %c4_i32_200 : i32 to vector<2x1xi32>
    %1174 = arith.cmpi eq, %993, %1173 : vector<2x1xi32>
    %1175 = arith.andi %965, %1174 : vector<2x1xi1>
    %1176 = vector.shape_cast %1175 : vector<2x1xi1> to vector<2x1xi1>
    %1177 = vector.broadcast %1176 : vector<2x1xi1> to vector<2x16xi1>
    %1178 = arith.select %1177, %1172, %1171 : vector<2x16xi1>, vector<2x16xf32>
    %1179 = vector.extract_strided_slice %1150 {offsets = [0, 5], sizes = [2, 16], strides = [1, 1]} : vector<2x24xf32> to vector<2x16xf32>
    %c5_i32_201 = arith.constant 5 : i32
    %1180 = vector.broadcast %c5_i32_201 : i32 to vector<2x1xi32>
    %1181 = arith.cmpi eq, %993, %1180 : vector<2x1xi32>
    %1182 = arith.andi %965, %1181 : vector<2x1xi1>
    %1183 = vector.shape_cast %1182 : vector<2x1xi1> to vector<2x1xi1>
    %1184 = vector.broadcast %1183 : vector<2x1xi1> to vector<2x16xi1>
    %1185 = arith.select %1184, %1179, %1178 : vector<2x16xi1>, vector<2x16xf32>
    %1186 = vector.extract_strided_slice %1150 {offsets = [0, 6], sizes = [2, 16], strides = [1, 1]} : vector<2x24xf32> to vector<2x16xf32>
    %c6_i32_202 = arith.constant 6 : i32
    %1187 = vector.broadcast %c6_i32_202 : i32 to vector<2x1xi32>
    %1188 = arith.cmpi eq, %993, %1187 : vector<2x1xi32>
    %1189 = arith.andi %965, %1188 : vector<2x1xi1>
    %1190 = vector.shape_cast %1189 : vector<2x1xi1> to vector<2x1xi1>
    %1191 = vector.broadcast %1190 : vector<2x1xi1> to vector<2x16xi1>
    %1192 = arith.select %1191, %1186, %1185 : vector<2x16xi1>, vector<2x16xf32>
    %1193 = vector.extract_strided_slice %1150 {offsets = [0, 7], sizes = [2, 16], strides = [1, 1]} : vector<2x24xf32> to vector<2x16xf32>
    %c7_i32_203 = arith.constant 7 : i32
    %1194 = vector.broadcast %c7_i32_203 : i32 to vector<2x1xi32>
    %1195 = arith.cmpi eq, %993, %1194 : vector<2x1xi32>
    %1196 = arith.andi %965, %1195 : vector<2x1xi1>
    %1197 = vector.shape_cast %1196 : vector<2x1xi1> to vector<2x1xi1>
    %1198 = vector.broadcast %1197 : vector<2x1xi1> to vector<2x16xi1>
    %1199 = arith.select %1198, %1193, %1192 : vector<2x16xi1>, vector<2x16xf32>
    %1200 = arith.addi %963, %993 : vector<2x1xi32>
    %1201 = arith.select %965, %1200, %963 : vector<2x1xi1>, vector<2x1xi32>
    %c8_i32_204 = arith.constant 8 : i32
    %1202 = vector.broadcast %c8_i32_204 : i32 to vector<2x1xi32>
    %1203 = arith.cmpi slt, %1201, %1202 : vector<2x1xi32>
    %1204 = arith.truncf %1199 : vector<2x16xf32> to vector<2x16xbf16>
    %cst_205 = arith.constant dense<0.000000e+00> : vector<2x23xf32>
    %1205 = tpu.matmul %1204, %1, %cst_205 {dimension_numbers = #tpu.dot_dimension_numbers<[1], [0], [0], [1], [0, 0, 1, 1], [], []>} : vector<2x16xbf16>, vector<16x23xbf16>, vector<2x23xf32> -> vector<2x23xf32>
    %1206 = vector.broadcast %2 : vector<1x23xf32> to vector<2x23xf32>
    %1207 = arith.addf %1205, %1206 : vector<2x23xf32>
    %1208 = vector.extract_strided_slice %1207 {offsets = [0, 0], sizes = [2, 11], strides = [1, 1]} : vector<2x23xf32> to vector<2x11xf32>
    %cst_206 = arith.constant 5.000000e-01 : f32
    %1209 = vector.broadcast %cst_206 : f32 to vector<2x11xf32>
    %1210 = arith.mulf %1209, %1208 : vector<2x11xf32>
    %cst_207 = arith.constant 0.707106769 : f32
    %1211 = vector.broadcast %cst_207 : f32 to vector<2x11xf32>
    %1212 = arith.mulf %1208, %1211 : vector<2x11xf32>
    %1213 = math.erf %1212 : vector<2x11xf32>
    %cst_208 = arith.constant 1.000000e+00 : f32
    %1214 = vector.broadcast %cst_208 : f32 to vector<2x11xf32>
    %1215 = arith.addf %1214, %1213 : vector<2x11xf32>
    %1216 = arith.mulf %1210, %1215 : vector<2x11xf32>
    %1217 = arith.truncf %1216 : vector<2x11xf32> to vector<2x11xbf16>
    %cst_209 = arith.constant dense<0.000000e+00> : vector<2x7xf32>
    %1218 = tpu.matmul %1217, %3, %cst_209 {dimension_numbers = #tpu.dot_dimension_numbers<[1], [0], [0], [1], [0, 0, 1, 1], [], []>} : vector<2x11xbf16>, vector<11x7xbf16>, vector<2x7xf32> -> vector<2x7xf32>
    %1219 = vector.broadcast %4 : vector<1x7xf32> to vector<2x7xf32>
    %1220 = arith.addf %1218, %1219 : vector<2x7xf32>
    %1221 = tpu.iota {dimensions = array<i32: 1>} : vector<2x7xi32>
    %cst_210 = arith.constant dense<0xFF800000> : vector<2xf32>
    %1222 = vector.multi_reduction <maximumf>, %1220, %cst_210 [1] : vector<2x7xf32> to vector<2xf32>
    %1223 = vector.shape_cast %1222 : vector<2xf32> to vector<2x1xf32>
    %1224 = vector.broadcast %1223 : vector<2x1xf32> to vector<2x7xf32>
    %1225 = arith.cmpf oeq, %1220, %1224 : vector<2x7xf32>
    %c7_i32_211 = arith.constant 7 : i32
    %1226 = vector.broadcast %c7_i32_211 : i32 to vector<2x7xi32>
    %1227 = arith.select %1225, %1221, %1226 : vector<2x7xi1>, vector<2x7xi32>
    %cst_212 = arith.constant dense<2147483647> : vector<2xi32>
    %1228 = vector.multi_reduction <minsi>, %1227, %cst_212 [1] : vector<2x7xi32> to vector<2xi32>
    %1229 = vector.shape_cast %1228 : vector<2xi32> to vector<2x1xi32>
    %c1_i32_213 = arith.constant 1 : i32
    %1230 = vector.broadcast %c1_i32_213 : i32 to vector<2x1xi32>
    %1231 = arith.addi %1229, %1230 : vector<2x1xi32>
    %1232 = vector.extract_strided_slice %1207 {offsets = [0, 11], sizes = [2, 12], strides = [1, 1]} : vector<2x23xf32> to vector<2x12xf32>
    %1233 = arith.truncf %1232 : vector<2x12xf32> to vector<2x12xbf16>
    %cst_214 = arith.constant dense<0.000000e+00> : vector<2x32xf32>
    %1234 = tpu.matmul %1233, %5, %cst_214 {dimension_numbers = #tpu.dot_dimension_numbers<[1], [0], [0], [1], [0, 0, 1, 1], [], []>} : vector<2x12xbf16>, vector<12x32xbf16>, vector<2x32xf32> -> vector<2x32xf32>
    %c0_i32_215 = arith.constant 0 : i32
    %1235 = vector.broadcast %c0_i32_215 : i32 to vector<2x1xi32>
    %1236 = vector.extract_strided_slice %1234 {offsets = [0, 0], sizes = [2, 8], strides = [1, 1]} : vector<2x32xf32> to vector<2x8xf32>
    %1237 = vector.broadcast %6 : vector<1x8xf32> to vector<2x8xf32>
    %1238 = arith.mulf %1236, %1237 : vector<2x8xf32>
    %cst_216 = arith.constant dense<0.000000e+00> : vector<2xf32>
    %1239 = vector.multi_reduction <add>, %1238, %cst_216 [1] : vector<2x8xf32> to vector<2xf32>
    %1240 = vector.shape_cast %1239 : vector<2xf32> to vector<2x1xf32>
    %1241 = vector.broadcast %7 : vector<1x1xf32> to vector<2x1xf32>
    %1242 = arith.addf %1240, %1241 : vector<2x1xf32>
    %1243 = vector.extract_strided_slice %1234 {offsets = [0, 8], sizes = [2, 8], strides = [1, 1]} : vector<2x32xf32> to vector<2x8xf32>
    %1244 = vector.broadcast %6 : vector<1x8xf32> to vector<2x8xf32>
    %1245 = arith.mulf %1243, %1244 : vector<2x8xf32>
    %cst_217 = arith.constant dense<0.000000e+00> : vector<2xf32>
    %1246 = vector.multi_reduction <add>, %1245, %cst_217 [1] : vector<2x8xf32> to vector<2xf32>
    %1247 = vector.shape_cast %1246 : vector<2xf32> to vector<2x1xf32>
    %1248 = vector.broadcast %7 : vector<1x1xf32> to vector<2x1xf32>
    %1249 = arith.addf %1247, %1248 : vector<2x1xf32>
    %1250 = arith.cmpf ogt, %1249, %1242 : vector<2x1xf32>
    %1251 = arith.select %1250, %1249, %1242 : vector<2x1xi1>, vector<2x1xf32>
    %c1_i32_218 = arith.constant 1 : i32
    %1252 = vector.broadcast %c1_i32_218 : i32 to vector<2x1xi32>
    %1253 = arith.select %1250, %1252, %1235 : vector<2x1xi1>, vector<2x1xi32>
    %1254 = vector.extract_strided_slice %1234 {offsets = [0, 16], sizes = [2, 8], strides = [1, 1]} : vector<2x32xf32> to vector<2x8xf32>
    %1255 = vector.broadcast %6 : vector<1x8xf32> to vector<2x8xf32>
    %1256 = arith.mulf %1254, %1255 : vector<2x8xf32>
    %cst_219 = arith.constant dense<0.000000e+00> : vector<2xf32>
    %1257 = vector.multi_reduction <add>, %1256, %cst_219 [1] : vector<2x8xf32> to vector<2xf32>
    %1258 = vector.shape_cast %1257 : vector<2xf32> to vector<2x1xf32>
    %1259 = vector.broadcast %7 : vector<1x1xf32> to vector<2x1xf32>
    %1260 = arith.addf %1258, %1259 : vector<2x1xf32>
    %1261 = arith.cmpf ogt, %1260, %1251 : vector<2x1xf32>
    %1262 = arith.select %1261, %1260, %1251 : vector<2x1xi1>, vector<2x1xf32>
    %c2_i32_220 = arith.constant 2 : i32
    %1263 = vector.broadcast %c2_i32_220 : i32 to vector<2x1xi32>
    %1264 = arith.select %1261, %1263, %1253 : vector<2x1xi1>, vector<2x1xi32>
    %1265 = vector.extract_strided_slice %1234 {offsets = [0, 24], sizes = [2, 8], strides = [1, 1]} : vector<2x32xf32> to vector<2x8xf32>
    %1266 = vector.broadcast %6 : vector<1x8xf32> to vector<2x8xf32>
    %1267 = arith.mulf %1265, %1266 : vector<2x8xf32>
    %cst_221 = arith.constant dense<0.000000e+00> : vector<2xf32>
    %1268 = vector.multi_reduction <add>, %1267, %cst_221 [1] : vector<2x8xf32> to vector<2xf32>
    %1269 = vector.shape_cast %1268 : vector<2xf32> to vector<2x1xf32>
    %1270 = vector.broadcast %7 : vector<1x1xf32> to vector<2x1xf32>
    %1271 = arith.addf %1269, %1270 : vector<2x1xf32>
    %1272 = arith.cmpf ogt, %1271, %1262 : vector<2x1xf32>
    %c3_i32_222 = arith.constant 3 : i32
    %1273 = vector.broadcast %c3_i32_222 : i32 to vector<2x1xi32>
    %1274 = arith.select %1272, %1273, %1264 : vector<2x1xi1>, vector<2x1xi32>
    %cst_223 = arith.constant 0.000000e+00 : f32
    %1275 = vector.broadcast %cst_223 : f32 to vector<2x8xf32>
    %1276 = vector.extract_strided_slice %1234 {offsets = [0, 0], sizes = [2, 8], strides = [1, 1]} : vector<2x32xf32> to vector<2x8xf32>
    %c0_i32_224 = arith.constant 0 : i32
    %1277 = vector.broadcast %c0_i32_224 : i32 to vector<2x1xi32>
    %1278 = arith.cmpi eq, %1274, %1277 : vector<2x1xi32>
    %1279 = arith.extui %1278 : vector<2x1xi1> to vector<2x1xi32>
    %1280 = arith.sitofp %1279 : vector<2x1xi32> to vector<2x1xf32>
    %1281 = vector.broadcast %1280 : vector<2x1xf32> to vector<2x8xf32>
    %1282 = arith.mulf %1276, %1281 : vector<2x8xf32>
    %1283 = arith.addf %1275, %1282 : vector<2x8xf32>
    %1284 = vector.extract_strided_slice %1234 {offsets = [0, 8], sizes = [2, 8], strides = [1, 1]} : vector<2x32xf32> to vector<2x8xf32>
    %c1_i32_225 = arith.constant 1 : i32
    %1285 = vector.broadcast %c1_i32_225 : i32 to vector<2x1xi32>
    %1286 = arith.cmpi eq, %1274, %1285 : vector<2x1xi32>
    %1287 = arith.extui %1286 : vector<2x1xi1> to vector<2x1xi32>
    %1288 = arith.sitofp %1287 : vector<2x1xi32> to vector<2x1xf32>
    %1289 = vector.broadcast %1288 : vector<2x1xf32> to vector<2x8xf32>
    %1290 = arith.mulf %1284, %1289 : vector<2x8xf32>
    %1291 = arith.addf %1283, %1290 : vector<2x8xf32>
    %1292 = vector.extract_strided_slice %1234 {offsets = [0, 16], sizes = [2, 8], strides = [1, 1]} : vector<2x32xf32> to vector<2x8xf32>
    %c2_i32_226 = arith.constant 2 : i32
    %1293 = vector.broadcast %c2_i32_226 : i32 to vector<2x1xi32>
    %1294 = arith.cmpi eq, %1274, %1293 : vector<2x1xi32>
    %1295 = arith.extui %1294 : vector<2x1xi1> to vector<2x1xi32>
    %1296 = arith.sitofp %1295 : vector<2x1xi32> to vector<2x1xf32>
    %1297 = vector.broadcast %1296 : vector<2x1xf32> to vector<2x8xf32>
    %1298 = arith.mulf %1292, %1297 : vector<2x8xf32>
    %1299 = arith.addf %1291, %1298 : vector<2x8xf32>
    %1300 = vector.extract_strided_slice %1234 {offsets = [0, 24], sizes = [2, 8], strides = [1, 1]} : vector<2x32xf32> to vector<2x8xf32>
    %c3_i32_227 = arith.constant 3 : i32
    %1301 = vector.broadcast %c3_i32_227 : i32 to vector<2x1xi32>
    %1302 = arith.cmpi eq, %1274, %1301 : vector<2x1xi32>
    %1303 = arith.extui %1302 : vector<2x1xi1> to vector<2x1xi32>
    %1304 = arith.sitofp %1303 : vector<2x1xi32> to vector<2x1xf32>
    %1305 = vector.broadcast %1304 : vector<2x1xf32> to vector<2x8xf32>
    %1306 = arith.mulf %1300, %1305 : vector<2x8xf32>
    %1307 = arith.addf %1299, %1306 : vector<2x8xf32>
    %cst_228 = arith.constant 0.000000e+00 : f32
    %1308 = vector.broadcast %cst_228 : f32 to vector<2x8xf32>
    %1309 = vector.extract_strided_slice %1307 {offsets = [0, 0], sizes = [2, 1], strides = [1, 1]} : vector<2x8xf32> to vector<2x1xf32>
    %c0_i32_229 = arith.constant 0 : i32
    %1310 = vector.broadcast %c0_i32_229 : i32 to vector<2x1xi32>
    %1311 = arith.addi %1201, %1310 : vector<2x1xi32>
    %1312 = vector.broadcast %1311 : vector<2x1xi32> to vector<2x8xi32>
    %1313 = arith.cmpi eq, %9, %1312 : vector<2x8xi32>
    %1314 = arith.extui %1313 : vector<2x8xi1> to vector<2x8xi32>
    %1315 = arith.sitofp %1314 : vector<2x8xi32> to vector<2x8xf32>
    %1316 = vector.broadcast %1309 : vector<2x1xf32> to vector<2x8xf32>
    %1317 = arith.mulf %1316, %1315 : vector<2x8xf32>
    %1318 = arith.addf %1308, %1317 : vector<2x8xf32>
    %1319 = vector.extract_strided_slice %1307 {offsets = [0, 1], sizes = [2, 1], strides = [1, 1]} : vector<2x8xf32> to vector<2x1xf32>
    %c1_i32_230 = arith.constant 1 : i32
    %1320 = vector.broadcast %c1_i32_230 : i32 to vector<2x1xi32>
    %1321 = arith.addi %1201, %1320 : vector<2x1xi32>
    %1322 = vector.broadcast %1321 : vector<2x1xi32> to vector<2x8xi32>
    %1323 = arith.cmpi eq, %9, %1322 : vector<2x8xi32>
    %1324 = arith.extui %1323 : vector<2x8xi1> to vector<2x8xi32>
    %1325 = arith.sitofp %1324 : vector<2x8xi32> to vector<2x8xf32>
    %1326 = vector.broadcast %1319 : vector<2x1xf32> to vector<2x8xf32>
    %1327 = arith.mulf %1326, %1325 : vector<2x8xf32>
    %1328 = arith.addf %1318, %1327 : vector<2x8xf32>
    %1329 = vector.extract_strided_slice %1307 {offsets = [0, 2], sizes = [2, 1], strides = [1, 1]} : vector<2x8xf32> to vector<2x1xf32>
    %c2_i32_231 = arith.constant 2 : i32
    %1330 = vector.broadcast %c2_i32_231 : i32 to vector<2x1xi32>
    %1331 = arith.addi %1201, %1330 : vector<2x1xi32>
    %1332 = vector.broadcast %1331 : vector<2x1xi32> to vector<2x8xi32>
    %1333 = arith.cmpi eq, %9, %1332 : vector<2x8xi32>
    %1334 = arith.extui %1333 : vector<2x8xi1> to vector<2x8xi32>
    %1335 = arith.sitofp %1334 : vector<2x8xi32> to vector<2x8xf32>
    %1336 = vector.broadcast %1329 : vector<2x1xf32> to vector<2x8xf32>
    %1337 = arith.mulf %1336, %1335 : vector<2x8xf32>
    %1338 = arith.addf %1328, %1337 : vector<2x8xf32>
    %1339 = vector.extract_strided_slice %1307 {offsets = [0, 3], sizes = [2, 1], strides = [1, 1]} : vector<2x8xf32> to vector<2x1xf32>
    %c3_i32_232 = arith.constant 3 : i32
    %1340 = vector.broadcast %c3_i32_232 : i32 to vector<2x1xi32>
    %1341 = arith.addi %1201, %1340 : vector<2x1xi32>
    %1342 = vector.broadcast %1341 : vector<2x1xi32> to vector<2x8xi32>
    %1343 = arith.cmpi eq, %9, %1342 : vector<2x8xi32>
    %1344 = arith.extui %1343 : vector<2x8xi1> to vector<2x8xi32>
    %1345 = arith.sitofp %1344 : vector<2x8xi32> to vector<2x8xf32>
    %1346 = vector.broadcast %1339 : vector<2x1xf32> to vector<2x8xf32>
    %1347 = arith.mulf %1346, %1345 : vector<2x8xf32>
    %1348 = arith.addf %1338, %1347 : vector<2x8xf32>
    %1349 = vector.extract_strided_slice %1307 {offsets = [0, 4], sizes = [2, 1], strides = [1, 1]} : vector<2x8xf32> to vector<2x1xf32>
    %c4_i32_233 = arith.constant 4 : i32
    %1350 = vector.broadcast %c4_i32_233 : i32 to vector<2x1xi32>
    %1351 = arith.addi %1201, %1350 : vector<2x1xi32>
    %1352 = vector.broadcast %1351 : vector<2x1xi32> to vector<2x8xi32>
    %1353 = arith.cmpi eq, %9, %1352 : vector<2x8xi32>
    %1354 = arith.extui %1353 : vector<2x8xi1> to vector<2x8xi32>
    %1355 = arith.sitofp %1354 : vector<2x8xi32> to vector<2x8xf32>
    %1356 = vector.broadcast %1349 : vector<2x1xf32> to vector<2x8xf32>
    %1357 = arith.mulf %1356, %1355 : vector<2x8xf32>
    %1358 = arith.addf %1348, %1357 : vector<2x8xf32>
    %1359 = vector.extract_strided_slice %1307 {offsets = [0, 5], sizes = [2, 1], strides = [1, 1]} : vector<2x8xf32> to vector<2x1xf32>
    %c5_i32_234 = arith.constant 5 : i32
    %1360 = vector.broadcast %c5_i32_234 : i32 to vector<2x1xi32>
    %1361 = arith.addi %1201, %1360 : vector<2x1xi32>
    %1362 = vector.broadcast %1361 : vector<2x1xi32> to vector<2x8xi32>
    %1363 = arith.cmpi eq, %9, %1362 : vector<2x8xi32>
    %1364 = arith.extui %1363 : vector<2x8xi1> to vector<2x8xi32>
    %1365 = arith.sitofp %1364 : vector<2x8xi32> to vector<2x8xf32>
    %1366 = vector.broadcast %1359 : vector<2x1xf32> to vector<2x8xf32>
    %1367 = arith.mulf %1366, %1365 : vector<2x8xf32>
    %1368 = arith.addf %1358, %1367 : vector<2x8xf32>
    %1369 = vector.extract_strided_slice %1307 {offsets = [0, 6], sizes = [2, 1], strides = [1, 1]} : vector<2x8xf32> to vector<2x1xf32>
    %c6_i32_235 = arith.constant 6 : i32
    %1370 = vector.broadcast %c6_i32_235 : i32 to vector<2x1xi32>
    %1371 = arith.addi %1201, %1370 : vector<2x1xi32>
    %1372 = vector.broadcast %1371 : vector<2x1xi32> to vector<2x8xi32>
    %1373 = arith.cmpi eq, %9, %1372 : vector<2x8xi32>
    %1374 = arith.extui %1373 : vector<2x8xi1> to vector<2x8xi32>
    %1375 = arith.sitofp %1374 : vector<2x8xi32> to vector<2x8xf32>
    %1376 = vector.broadcast %1369 : vector<2x1xf32> to vector<2x8xf32>
    %1377 = arith.mulf %1376, %1375 : vector<2x8xf32>
    %1378 = arith.addf %1368, %1377 : vector<2x8xf32>
    %1379 = vector.broadcast %1201 : vector<2x1xi32> to vector<2x8xi32>
    %1380 = arith.cmpi sge, %9, %1379 : vector<2x8xi32>
    %1381 = vector.broadcast %1203 : vector<2x1xi1> to vector<2x8xi1>
    %1382 = arith.andi %1381, %1380 : vector<2x8xi1>
    %1383 = arith.addi %1201, %1231 : vector<2x1xi32>
    %1384 = vector.broadcast %1383 : vector<2x1xi32> to vector<2x8xi32>
    %1385 = arith.cmpi slt, %9, %1384 : vector<2x8xi32>
    %1386 = arith.andi %1382, %1385 : vector<2x8xi1>
    %1387 = arith.select %1386, %1378, %1149 : vector<2x8xi1>, vector<2x8xf32>
    %1388 = tpu.concatenate %1199, %1307 in 1 : vector<2x16xf32>, vector<2x8xf32> -> vector<2x24xf32>
    %1389 = vector.extract_strided_slice %1388 {offsets = [0, 1], sizes = [2, 16], strides = [1, 1]} : vector<2x24xf32> to vector<2x16xf32>
    %c1_i32_236 = arith.constant 1 : i32
    %1390 = vector.broadcast %c1_i32_236 : i32 to vector<2x1xi32>
    %1391 = arith.cmpi eq, %1231, %1390 : vector<2x1xi32>
    %1392 = arith.andi %1203, %1391 : vector<2x1xi1>
    %1393 = vector.shape_cast %1392 : vector<2x1xi1> to vector<2x1xi1>
    %1394 = vector.broadcast %1393 : vector<2x1xi1> to vector<2x16xi1>
    %1395 = arith.select %1394, %1389, %1199 : vector<2x16xi1>, vector<2x16xf32>
    %1396 = vector.extract_strided_slice %1388 {offsets = [0, 2], sizes = [2, 16], strides = [1, 1]} : vector<2x24xf32> to vector<2x16xf32>
    %c2_i32_237 = arith.constant 2 : i32
    %1397 = vector.broadcast %c2_i32_237 : i32 to vector<2x1xi32>
    %1398 = arith.cmpi eq, %1231, %1397 : vector<2x1xi32>
    %1399 = arith.andi %1203, %1398 : vector<2x1xi1>
    %1400 = vector.shape_cast %1399 : vector<2x1xi1> to vector<2x1xi1>
    %1401 = vector.broadcast %1400 : vector<2x1xi1> to vector<2x16xi1>
    %1402 = arith.select %1401, %1396, %1395 : vector<2x16xi1>, vector<2x16xf32>
    %1403 = vector.extract_strided_slice %1388 {offsets = [0, 3], sizes = [2, 16], strides = [1, 1]} : vector<2x24xf32> to vector<2x16xf32>
    %c3_i32_238 = arith.constant 3 : i32
    %1404 = vector.broadcast %c3_i32_238 : i32 to vector<2x1xi32>
    %1405 = arith.cmpi eq, %1231, %1404 : vector<2x1xi32>
    %1406 = arith.andi %1203, %1405 : vector<2x1xi1>
    %1407 = vector.shape_cast %1406 : vector<2x1xi1> to vector<2x1xi1>
    %1408 = vector.broadcast %1407 : vector<2x1xi1> to vector<2x16xi1>
    %1409 = arith.select %1408, %1403, %1402 : vector<2x16xi1>, vector<2x16xf32>
    %1410 = vector.extract_strided_slice %1388 {offsets = [0, 4], sizes = [2, 16], strides = [1, 1]} : vector<2x24xf32> to vector<2x16xf32>
    %c4_i32_239 = arith.constant 4 : i32
    %1411 = vector.broadcast %c4_i32_239 : i32 to vector<2x1xi32>
    %1412 = arith.cmpi eq, %1231, %1411 : vector<2x1xi32>
    %1413 = arith.andi %1203, %1412 : vector<2x1xi1>
    %1414 = vector.shape_cast %1413 : vector<2x1xi1> to vector<2x1xi1>
    %1415 = vector.broadcast %1414 : vector<2x1xi1> to vector<2x16xi1>
    %1416 = arith.select %1415, %1410, %1409 : vector<2x16xi1>, vector<2x16xf32>
    %1417 = vector.extract_strided_slice %1388 {offsets = [0, 5], sizes = [2, 16], strides = [1, 1]} : vector<2x24xf32> to vector<2x16xf32>
    %c5_i32_240 = arith.constant 5 : i32
    %1418 = vector.broadcast %c5_i32_240 : i32 to vector<2x1xi32>
    %1419 = arith.cmpi eq, %1231, %1418 : vector<2x1xi32>
    %1420 = arith.andi %1203, %1419 : vector<2x1xi1>
    %1421 = vector.shape_cast %1420 : vector<2x1xi1> to vector<2x1xi1>
    %1422 = vector.broadcast %1421 : vector<2x1xi1> to vector<2x16xi1>
    %1423 = arith.select %1422, %1417, %1416 : vector<2x16xi1>, vector<2x16xf32>
    %1424 = vector.extract_strided_slice %1388 {offsets = [0, 6], sizes = [2, 16], strides = [1, 1]} : vector<2x24xf32> to vector<2x16xf32>
    %c6_i32_241 = arith.constant 6 : i32
    %1425 = vector.broadcast %c6_i32_241 : i32 to vector<2x1xi32>
    %1426 = arith.cmpi eq, %1231, %1425 : vector<2x1xi32>
    %1427 = arith.andi %1203, %1426 : vector<2x1xi1>
    %1428 = vector.shape_cast %1427 : vector<2x1xi1> to vector<2x1xi1>
    %1429 = vector.broadcast %1428 : vector<2x1xi1> to vector<2x16xi1>
    %1430 = arith.select %1429, %1424, %1423 : vector<2x16xi1>, vector<2x16xf32>
    %1431 = vector.extract_strided_slice %1388 {offsets = [0, 7], sizes = [2, 16], strides = [1, 1]} : vector<2x24xf32> to vector<2x16xf32>
    %c7_i32_242 = arith.constant 7 : i32
    %1432 = vector.broadcast %c7_i32_242 : i32 to vector<2x1xi32>
    %1433 = arith.cmpi eq, %1231, %1432 : vector<2x1xi32>
    %1434 = arith.andi %1203, %1433 : vector<2x1xi1>
    %1435 = vector.shape_cast %1434 : vector<2x1xi1> to vector<2x1xi1>
    %1436 = vector.broadcast %1435 : vector<2x1xi1> to vector<2x16xi1>
    %1437 = arith.select %1436, %1431, %1430 : vector<2x16xi1>, vector<2x16xf32>
    %1438 = arith.addi %1201, %1231 : vector<2x1xi32>
    %1439 = arith.select %1203, %1438, %1201 : vector<2x1xi1>, vector<2x1xi32>
    %c8_i32_243 = arith.constant 8 : i32
    %1440 = vector.broadcast %c8_i32_243 : i32 to vector<2x1xi32>
    %1441 = arith.cmpi slt, %1439, %1440 : vector<2x1xi32>
    %1442 = arith.truncf %1437 : vector<2x16xf32> to vector<2x16xbf16>
    %cst_244 = arith.constant dense<0.000000e+00> : vector<2x23xf32>
    %1443 = tpu.matmul %1442, %1, %cst_244 {dimension_numbers = #tpu.dot_dimension_numbers<[1], [0], [0], [1], [0, 0, 1, 1], [], []>} : vector<2x16xbf16>, vector<16x23xbf16>, vector<2x23xf32> -> vector<2x23xf32>
    %1444 = vector.broadcast %2 : vector<1x23xf32> to vector<2x23xf32>
    %1445 = arith.addf %1443, %1444 : vector<2x23xf32>
    %1446 = vector.extract_strided_slice %1445 {offsets = [0, 0], sizes = [2, 11], strides = [1, 1]} : vector<2x23xf32> to vector<2x11xf32>
    %cst_245 = arith.constant 5.000000e-01 : f32
    %1447 = vector.broadcast %cst_245 : f32 to vector<2x11xf32>
    %1448 = arith.mulf %1447, %1446 : vector<2x11xf32>
    %cst_246 = arith.constant 0.707106769 : f32
    %1449 = vector.broadcast %cst_246 : f32 to vector<2x11xf32>
    %1450 = arith.mulf %1446, %1449 : vector<2x11xf32>
    %1451 = math.erf %1450 : vector<2x11xf32>
    %cst_247 = arith.constant 1.000000e+00 : f32
    %1452 = vector.broadcast %cst_247 : f32 to vector<2x11xf32>
    %1453 = arith.addf %1452, %1451 : vector<2x11xf32>
    %1454 = arith.mulf %1448, %1453 : vector<2x11xf32>
    %1455 = arith.truncf %1454 : vector<2x11xf32> to vector<2x11xbf16>
    %cst_248 = arith.constant dense<0.000000e+00> : vector<2x7xf32>
    %1456 = tpu.matmul %1455, %3, %cst_248 {dimension_numbers = #tpu.dot_dimension_numbers<[1], [0], [0], [1], [0, 0, 1, 1], [], []>} : vector<2x11xbf16>, vector<11x7xbf16>, vector<2x7xf32> -> vector<2x7xf32>
    %1457 = vector.broadcast %4 : vector<1x7xf32> to vector<2x7xf32>
    %1458 = arith.addf %1456, %1457 : vector<2x7xf32>
    %1459 = tpu.iota {dimensions = array<i32: 1>} : vector<2x7xi32>
    %cst_249 = arith.constant dense<0xFF800000> : vector<2xf32>
    %1460 = vector.multi_reduction <maximumf>, %1458, %cst_249 [1] : vector<2x7xf32> to vector<2xf32>
    %1461 = vector.shape_cast %1460 : vector<2xf32> to vector<2x1xf32>
    %1462 = vector.broadcast %1461 : vector<2x1xf32> to vector<2x7xf32>
    %1463 = arith.cmpf oeq, %1458, %1462 : vector<2x7xf32>
    %c7_i32_250 = arith.constant 7 : i32
    %1464 = vector.broadcast %c7_i32_250 : i32 to vector<2x7xi32>
    %1465 = arith.select %1463, %1459, %1464 : vector<2x7xi1>, vector<2x7xi32>
    %cst_251 = arith.constant dense<2147483647> : vector<2xi32>
    %1466 = vector.multi_reduction <minsi>, %1465, %cst_251 [1] : vector<2x7xi32> to vector<2xi32>
    %1467 = vector.shape_cast %1466 : vector<2xi32> to vector<2x1xi32>
    %c1_i32_252 = arith.constant 1 : i32
    %1468 = vector.broadcast %c1_i32_252 : i32 to vector<2x1xi32>
    %1469 = arith.addi %1467, %1468 : vector<2x1xi32>
    %1470 = vector.extract_strided_slice %1445 {offsets = [0, 11], sizes = [2, 12], strides = [1, 1]} : vector<2x23xf32> to vector<2x12xf32>
    %1471 = arith.truncf %1470 : vector<2x12xf32> to vector<2x12xbf16>
    %cst_253 = arith.constant dense<0.000000e+00> : vector<2x32xf32>
    %1472 = tpu.matmul %1471, %5, %cst_253 {dimension_numbers = #tpu.dot_dimension_numbers<[1], [0], [0], [1], [0, 0, 1, 1], [], []>} : vector<2x12xbf16>, vector<12x32xbf16>, vector<2x32xf32> -> vector<2x32xf32>
    %c0_i32_254 = arith.constant 0 : i32
    %1473 = vector.broadcast %c0_i32_254 : i32 to vector<2x1xi32>
    %1474 = vector.extract_strided_slice %1472 {offsets = [0, 0], sizes = [2, 8], strides = [1, 1]} : vector<2x32xf32> to vector<2x8xf32>
    %1475 = vector.broadcast %6 : vector<1x8xf32> to vector<2x8xf32>
    %1476 = arith.mulf %1474, %1475 : vector<2x8xf32>
    %cst_255 = arith.constant dense<0.000000e+00> : vector<2xf32>
    %1477 = vector.multi_reduction <add>, %1476, %cst_255 [1] : vector<2x8xf32> to vector<2xf32>
    %1478 = vector.shape_cast %1477 : vector<2xf32> to vector<2x1xf32>
    %1479 = vector.broadcast %7 : vector<1x1xf32> to vector<2x1xf32>
    %1480 = arith.addf %1478, %1479 : vector<2x1xf32>
    %1481 = vector.extract_strided_slice %1472 {offsets = [0, 8], sizes = [2, 8], strides = [1, 1]} : vector<2x32xf32> to vector<2x8xf32>
    %1482 = vector.broadcast %6 : vector<1x8xf32> to vector<2x8xf32>
    %1483 = arith.mulf %1481, %1482 : vector<2x8xf32>
    %cst_256 = arith.constant dense<0.000000e+00> : vector<2xf32>
    %1484 = vector.multi_reduction <add>, %1483, %cst_256 [1] : vector<2x8xf32> to vector<2xf32>
    %1485 = vector.shape_cast %1484 : vector<2xf32> to vector<2x1xf32>
    %1486 = vector.broadcast %7 : vector<1x1xf32> to vector<2x1xf32>
    %1487 = arith.addf %1485, %1486 : vector<2x1xf32>
    %1488 = arith.cmpf ogt, %1487, %1480 : vector<2x1xf32>
    %1489 = arith.select %1488, %1487, %1480 : vector<2x1xi1>, vector<2x1xf32>
    %c1_i32_257 = arith.constant 1 : i32
    %1490 = vector.broadcast %c1_i32_257 : i32 to vector<2x1xi32>
    %1491 = arith.select %1488, %1490, %1473 : vector<2x1xi1>, vector<2x1xi32>
    %1492 = vector.extract_strided_slice %1472 {offsets = [0, 16], sizes = [2, 8], strides = [1, 1]} : vector<2x32xf32> to vector<2x8xf32>
    %1493 = vector.broadcast %6 : vector<1x8xf32> to vector<2x8xf32>
    %1494 = arith.mulf %1492, %1493 : vector<2x8xf32>
    %cst_258 = arith.constant dense<0.000000e+00> : vector<2xf32>
    %1495 = vector.multi_reduction <add>, %1494, %cst_258 [1] : vector<2x8xf32> to vector<2xf32>
    %1496 = vector.shape_cast %1495 : vector<2xf32> to vector<2x1xf32>
    %1497 = vector.broadcast %7 : vector<1x1xf32> to vector<2x1xf32>
    %1498 = arith.addf %1496, %1497 : vector<2x1xf32>
    %1499 = arith.cmpf ogt, %1498, %1489 : vector<2x1xf32>
    %1500 = arith.select %1499, %1498, %1489 : vector<2x1xi1>, vector<2x1xf32>
    %c2_i32_259 = arith.constant 2 : i32
    %1501 = vector.broadcast %c2_i32_259 : i32 to vector<2x1xi32>
    %1502 = arith.select %1499, %1501, %1491 : vector<2x1xi1>, vector<2x1xi32>
    %1503 = vector.extract_strided_slice %1472 {offsets = [0, 24], sizes = [2, 8], strides = [1, 1]} : vector<2x32xf32> to vector<2x8xf32>
    %1504 = vector.broadcast %6 : vector<1x8xf32> to vector<2x8xf32>
    %1505 = arith.mulf %1503, %1504 : vector<2x8xf32>
    %cst_260 = arith.constant dense<0.000000e+00> : vector<2xf32>
    %1506 = vector.multi_reduction <add>, %1505, %cst_260 [1] : vector<2x8xf32> to vector<2xf32>
    %1507 = vector.shape_cast %1506 : vector<2xf32> to vector<2x1xf32>
    %1508 = vector.broadcast %7 : vector<1x1xf32> to vector<2x1xf32>
    %1509 = arith.addf %1507, %1508 : vector<2x1xf32>
    %1510 = arith.cmpf ogt, %1509, %1500 : vector<2x1xf32>
    %c3_i32_261 = arith.constant 3 : i32
    %1511 = vector.broadcast %c3_i32_261 : i32 to vector<2x1xi32>
    %1512 = arith.select %1510, %1511, %1502 : vector<2x1xi1>, vector<2x1xi32>
    %cst_262 = arith.constant 0.000000e+00 : f32
    %1513 = vector.broadcast %cst_262 : f32 to vector<2x8xf32>
    %1514 = vector.extract_strided_slice %1472 {offsets = [0, 0], sizes = [2, 8], strides = [1, 1]} : vector<2x32xf32> to vector<2x8xf32>
    %c0_i32_263 = arith.constant 0 : i32
    %1515 = vector.broadcast %c0_i32_263 : i32 to vector<2x1xi32>
    %1516 = arith.cmpi eq, %1512, %1515 : vector<2x1xi32>
    %1517 = arith.extui %1516 : vector<2x1xi1> to vector<2x1xi32>
    %1518 = arith.sitofp %1517 : vector<2x1xi32> to vector<2x1xf32>
    %1519 = vector.broadcast %1518 : vector<2x1xf32> to vector<2x8xf32>
    %1520 = arith.mulf %1514, %1519 : vector<2x8xf32>
    %1521 = arith.addf %1513, %1520 : vector<2x8xf32>
    %1522 = vector.extract_strided_slice %1472 {offsets = [0, 8], sizes = [2, 8], strides = [1, 1]} : vector<2x32xf32> to vector<2x8xf32>
    %c1_i32_264 = arith.constant 1 : i32
    %1523 = vector.broadcast %c1_i32_264 : i32 to vector<2x1xi32>
    %1524 = arith.cmpi eq, %1512, %1523 : vector<2x1xi32>
    %1525 = arith.extui %1524 : vector<2x1xi1> to vector<2x1xi32>
    %1526 = arith.sitofp %1525 : vector<2x1xi32> to vector<2x1xf32>
    %1527 = vector.broadcast %1526 : vector<2x1xf32> to vector<2x8xf32>
    %1528 = arith.mulf %1522, %1527 : vector<2x8xf32>
    %1529 = arith.addf %1521, %1528 : vector<2x8xf32>
    %1530 = vector.extract_strided_slice %1472 {offsets = [0, 16], sizes = [2, 8], strides = [1, 1]} : vector<2x32xf32> to vector<2x8xf32>
    %c2_i32_265 = arith.constant 2 : i32
    %1531 = vector.broadcast %c2_i32_265 : i32 to vector<2x1xi32>
    %1532 = arith.cmpi eq, %1512, %1531 : vector<2x1xi32>
    %1533 = arith.extui %1532 : vector<2x1xi1> to vector<2x1xi32>
    %1534 = arith.sitofp %1533 : vector<2x1xi32> to vector<2x1xf32>
    %1535 = vector.broadcast %1534 : vector<2x1xf32> to vector<2x8xf32>
    %1536 = arith.mulf %1530, %1535 : vector<2x8xf32>
    %1537 = arith.addf %1529, %1536 : vector<2x8xf32>
    %1538 = vector.extract_strided_slice %1472 {offsets = [0, 24], sizes = [2, 8], strides = [1, 1]} : vector<2x32xf32> to vector<2x8xf32>
    %c3_i32_266 = arith.constant 3 : i32
    %1539 = vector.broadcast %c3_i32_266 : i32 to vector<2x1xi32>
    %1540 = arith.cmpi eq, %1512, %1539 : vector<2x1xi32>
    %1541 = arith.extui %1540 : vector<2x1xi1> to vector<2x1xi32>
    %1542 = arith.sitofp %1541 : vector<2x1xi32> to vector<2x1xf32>
    %1543 = vector.broadcast %1542 : vector<2x1xf32> to vector<2x8xf32>
    %1544 = arith.mulf %1538, %1543 : vector<2x8xf32>
    %1545 = arith.addf %1537, %1544 : vector<2x8xf32>
    %cst_267 = arith.constant 0.000000e+00 : f32
    %1546 = vector.broadcast %cst_267 : f32 to vector<2x8xf32>
    %1547 = vector.extract_strided_slice %1545 {offsets = [0, 0], sizes = [2, 1], strides = [1, 1]} : vector<2x8xf32> to vector<2x1xf32>
    %c0_i32_268 = arith.constant 0 : i32
    %1548 = vector.broadcast %c0_i32_268 : i32 to vector<2x1xi32>
    %1549 = arith.addi %1439, %1548 : vector<2x1xi32>
    %1550 = vector.broadcast %1549 : vector<2x1xi32> to vector<2x8xi32>
    %1551 = arith.cmpi eq, %9, %1550 : vector<2x8xi32>
    %1552 = arith.extui %1551 : vector<2x8xi1> to vector<2x8xi32>
    %1553 = arith.sitofp %1552 : vector<2x8xi32> to vector<2x8xf32>
    %1554 = vector.broadcast %1547 : vector<2x1xf32> to vector<2x8xf32>
    %1555 = arith.mulf %1554, %1553 : vector<2x8xf32>
    %1556 = arith.addf %1546, %1555 : vector<2x8xf32>
    %1557 = vector.extract_strided_slice %1545 {offsets = [0, 1], sizes = [2, 1], strides = [1, 1]} : vector<2x8xf32> to vector<2x1xf32>
    %c1_i32_269 = arith.constant 1 : i32
    %1558 = vector.broadcast %c1_i32_269 : i32 to vector<2x1xi32>
    %1559 = arith.addi %1439, %1558 : vector<2x1xi32>
    %1560 = vector.broadcast %1559 : vector<2x1xi32> to vector<2x8xi32>
    %1561 = arith.cmpi eq, %9, %1560 : vector<2x8xi32>
    %1562 = arith.extui %1561 : vector<2x8xi1> to vector<2x8xi32>
    %1563 = arith.sitofp %1562 : vector<2x8xi32> to vector<2x8xf32>
    %1564 = vector.broadcast %1557 : vector<2x1xf32> to vector<2x8xf32>
    %1565 = arith.mulf %1564, %1563 : vector<2x8xf32>
    %1566 = arith.addf %1556, %1565 : vector<2x8xf32>
    %1567 = vector.extract_strided_slice %1545 {offsets = [0, 2], sizes = [2, 1], strides = [1, 1]} : vector<2x8xf32> to vector<2x1xf32>
    %c2_i32_270 = arith.constant 2 : i32
    %1568 = vector.broadcast %c2_i32_270 : i32 to vector<2x1xi32>
    %1569 = arith.addi %1439, %1568 : vector<2x1xi32>
    %1570 = vector.broadcast %1569 : vector<2x1xi32> to vector<2x8xi32>
    %1571 = arith.cmpi eq, %9, %1570 : vector<2x8xi32>
    %1572 = arith.extui %1571 : vector<2x8xi1> to vector<2x8xi32>
    %1573 = arith.sitofp %1572 : vector<2x8xi32> to vector<2x8xf32>
    %1574 = vector.broadcast %1567 : vector<2x1xf32> to vector<2x8xf32>
    %1575 = arith.mulf %1574, %1573 : vector<2x8xf32>
    %1576 = arith.addf %1566, %1575 : vector<2x8xf32>
    %1577 = vector.extract_strided_slice %1545 {offsets = [0, 3], sizes = [2, 1], strides = [1, 1]} : vector<2x8xf32> to vector<2x1xf32>
    %c3_i32_271 = arith.constant 3 : i32
    %1578 = vector.broadcast %c3_i32_271 : i32 to vector<2x1xi32>
    %1579 = arith.addi %1439, %1578 : vector<2x1xi32>
    %1580 = vector.broadcast %1579 : vector<2x1xi32> to vector<2x8xi32>
    %1581 = arith.cmpi eq, %9, %1580 : vector<2x8xi32>
    %1582 = arith.extui %1581 : vector<2x8xi1> to vector<2x8xi32>
    %1583 = arith.sitofp %1582 : vector<2x8xi32> to vector<2x8xf32>
    %1584 = vector.broadcast %1577 : vector<2x1xf32> to vector<2x8xf32>
    %1585 = arith.mulf %1584, %1583 : vector<2x8xf32>
    %1586 = arith.addf %1576, %1585 : vector<2x8xf32>
    %1587 = vector.extract_strided_slice %1545 {offsets = [0, 4], sizes = [2, 1], strides = [1, 1]} : vector<2x8xf32> to vector<2x1xf32>
    %c4_i32_272 = arith.constant 4 : i32
    %1588 = vector.broadcast %c4_i32_272 : i32 to vector<2x1xi32>
    %1589 = arith.addi %1439, %1588 : vector<2x1xi32>
    %1590 = vector.broadcast %1589 : vector<2x1xi32> to vector<2x8xi32>
    %1591 = arith.cmpi eq, %9, %1590 : vector<2x8xi32>
    %1592 = arith.extui %1591 : vector<2x8xi1> to vector<2x8xi32>
    %1593 = arith.sitofp %1592 : vector<2x8xi32> to vector<2x8xf32>
    %1594 = vector.broadcast %1587 : vector<2x1xf32> to vector<2x8xf32>
    %1595 = arith.mulf %1594, %1593 : vector<2x8xf32>
    %1596 = arith.addf %1586, %1595 : vector<2x8xf32>
    %1597 = vector.extract_strided_slice %1545 {offsets = [0, 5], sizes = [2, 1], strides = [1, 1]} : vector<2x8xf32> to vector<2x1xf32>
    %c5_i32_273 = arith.constant 5 : i32
    %1598 = vector.broadcast %c5_i32_273 : i32 to vector<2x1xi32>
    %1599 = arith.addi %1439, %1598 : vector<2x1xi32>
    %1600 = vector.broadcast %1599 : vector<2x1xi32> to vector<2x8xi32>
    %1601 = arith.cmpi eq, %9, %1600 : vector<2x8xi32>
    %1602 = arith.extui %1601 : vector<2x8xi1> to vector<2x8xi32>
    %1603 = arith.sitofp %1602 : vector<2x8xi32> to vector<2x8xf32>
    %1604 = vector.broadcast %1597 : vector<2x1xf32> to vector<2x8xf32>
    %1605 = arith.mulf %1604, %1603 : vector<2x8xf32>
    %1606 = arith.addf %1596, %1605 : vector<2x8xf32>
    %1607 = vector.extract_strided_slice %1545 {offsets = [0, 6], sizes = [2, 1], strides = [1, 1]} : vector<2x8xf32> to vector<2x1xf32>
    %c6_i32_274 = arith.constant 6 : i32
    %1608 = vector.broadcast %c6_i32_274 : i32 to vector<2x1xi32>
    %1609 = arith.addi %1439, %1608 : vector<2x1xi32>
    %1610 = vector.broadcast %1609 : vector<2x1xi32> to vector<2x8xi32>
    %1611 = arith.cmpi eq, %9, %1610 : vector<2x8xi32>
    %1612 = arith.extui %1611 : vector<2x8xi1> to vector<2x8xi32>
    %1613 = arith.sitofp %1612 : vector<2x8xi32> to vector<2x8xf32>
    %1614 = vector.broadcast %1607 : vector<2x1xf32> to vector<2x8xf32>
    %1615 = arith.mulf %1614, %1613 : vector<2x8xf32>
    %1616 = arith.addf %1606, %1615 : vector<2x8xf32>
    %1617 = vector.broadcast %1439 : vector<2x1xi32> to vector<2x8xi32>
    %1618 = arith.cmpi sge, %9, %1617 : vector<2x8xi32>
    %1619 = vector.broadcast %1441 : vector<2x1xi1> to vector<2x8xi1>
    %1620 = arith.andi %1619, %1618 : vector<2x8xi1>
    %1621 = arith.addi %1439, %1469 : vector<2x1xi32>
    %1622 = vector.broadcast %1621 : vector<2x1xi32> to vector<2x8xi32>
    %1623 = arith.cmpi slt, %9, %1622 : vector<2x8xi32>
    %1624 = arith.andi %1620, %1623 : vector<2x8xi1>
    %1625 = arith.select %1624, %1616, %1387 : vector<2x8xi1>, vector<2x8xf32>
    %1626 = tpu.concatenate %1437, %1545 in 1 : vector<2x16xf32>, vector<2x8xf32> -> vector<2x24xf32>
    %1627 = vector.extract_strided_slice %1626 {offsets = [0, 1], sizes = [2, 16], strides = [1, 1]} : vector<2x24xf32> to vector<2x16xf32>
    %c1_i32_275 = arith.constant 1 : i32
    %1628 = vector.broadcast %c1_i32_275 : i32 to vector<2x1xi32>
    %1629 = arith.cmpi eq, %1469, %1628 : vector<2x1xi32>
    %1630 = arith.andi %1441, %1629 : vector<2x1xi1>
    %1631 = vector.shape_cast %1630 : vector<2x1xi1> to vector<2x1xi1>
    %1632 = vector.broadcast %1631 : vector<2x1xi1> to vector<2x16xi1>
    %1633 = arith.select %1632, %1627, %1437 : vector<2x16xi1>, vector<2x16xf32>
    %1634 = vector.extract_strided_slice %1626 {offsets = [0, 2], sizes = [2, 16], strides = [1, 1]} : vector<2x24xf32> to vector<2x16xf32>
    %c2_i32_276 = arith.constant 2 : i32
    %1635 = vector.broadcast %c2_i32_276 : i32 to vector<2x1xi32>
    %1636 = arith.cmpi eq, %1469, %1635 : vector<2x1xi32>
    %1637 = arith.andi %1441, %1636 : vector<2x1xi1>
    %1638 = vector.shape_cast %1637 : vector<2x1xi1> to vector<2x1xi1>
    %1639 = vector.broadcast %1638 : vector<2x1xi1> to vector<2x16xi1>
    %1640 = arith.select %1639, %1634, %1633 : vector<2x16xi1>, vector<2x16xf32>
    %1641 = vector.extract_strided_slice %1626 {offsets = [0, 3], sizes = [2, 16], strides = [1, 1]} : vector<2x24xf32> to vector<2x16xf32>
    %c3_i32_277 = arith.constant 3 : i32
    %1642 = vector.broadcast %c3_i32_277 : i32 to vector<2x1xi32>
    %1643 = arith.cmpi eq, %1469, %1642 : vector<2x1xi32>
    %1644 = arith.andi %1441, %1643 : vector<2x1xi1>
    %1645 = vector.shape_cast %1644 : vector<2x1xi1> to vector<2x1xi1>
    %1646 = vector.broadcast %1645 : vector<2x1xi1> to vector<2x16xi1>
    %1647 = arith.select %1646, %1641, %1640 : vector<2x16xi1>, vector<2x16xf32>
    %1648 = vector.extract_strided_slice %1626 {offsets = [0, 4], sizes = [2, 16], strides = [1, 1]} : vector<2x24xf32> to vector<2x16xf32>
    %c4_i32_278 = arith.constant 4 : i32
    %1649 = vector.broadcast %c4_i32_278 : i32 to vector<2x1xi32>
    %1650 = arith.cmpi eq, %1469, %1649 : vector<2x1xi32>
    %1651 = arith.andi %1441, %1650 : vector<2x1xi1>
    %1652 = vector.shape_cast %1651 : vector<2x1xi1> to vector<2x1xi1>
    %1653 = vector.broadcast %1652 : vector<2x1xi1> to vector<2x16xi1>
    %1654 = arith.select %1653, %1648, %1647 : vector<2x16xi1>, vector<2x16xf32>
    %1655 = vector.extract_strided_slice %1626 {offsets = [0, 5], sizes = [2, 16], strides = [1, 1]} : vector<2x24xf32> to vector<2x16xf32>
    %c5_i32_279 = arith.constant 5 : i32
    %1656 = vector.broadcast %c5_i32_279 : i32 to vector<2x1xi32>
    %1657 = arith.cmpi eq, %1469, %1656 : vector<2x1xi32>
    %1658 = arith.andi %1441, %1657 : vector<2x1xi1>
    %1659 = vector.shape_cast %1658 : vector<2x1xi1> to vector<2x1xi1>
    %1660 = vector.broadcast %1659 : vector<2x1xi1> to vector<2x16xi1>
    %1661 = arith.select %1660, %1655, %1654 : vector<2x16xi1>, vector<2x16xf32>
    %1662 = vector.extract_strided_slice %1626 {offsets = [0, 6], sizes = [2, 16], strides = [1, 1]} : vector<2x24xf32> to vector<2x16xf32>
    %c6_i32_280 = arith.constant 6 : i32
    %1663 = vector.broadcast %c6_i32_280 : i32 to vector<2x1xi32>
    %1664 = arith.cmpi eq, %1469, %1663 : vector<2x1xi32>
    %1665 = arith.andi %1441, %1664 : vector<2x1xi1>
    %1666 = vector.shape_cast %1665 : vector<2x1xi1> to vector<2x1xi1>
    %1667 = vector.broadcast %1666 : vector<2x1xi1> to vector<2x16xi1>
    %1668 = arith.select %1667, %1662, %1661 : vector<2x16xi1>, vector<2x16xf32>
    %1669 = vector.extract_strided_slice %1626 {offsets = [0, 7], sizes = [2, 16], strides = [1, 1]} : vector<2x24xf32> to vector<2x16xf32>
    %c7_i32_281 = arith.constant 7 : i32
    %1670 = vector.broadcast %c7_i32_281 : i32 to vector<2x1xi32>
    %1671 = arith.cmpi eq, %1469, %1670 : vector<2x1xi32>
    %1672 = arith.andi %1441, %1671 : vector<2x1xi1>
    %1673 = vector.shape_cast %1672 : vector<2x1xi1> to vector<2x1xi1>
    %1674 = vector.broadcast %1673 : vector<2x1xi1> to vector<2x16xi1>
    %1675 = arith.select %1674, %1669, %1668 : vector<2x16xi1>, vector<2x16xf32>
    %1676 = arith.addi %1439, %1469 : vector<2x1xi32>
    %1677 = arith.select %1441, %1676, %1439 : vector<2x1xi1>, vector<2x1xi32>
    %c8_i32_282 = arith.constant 8 : i32
    %1678 = vector.broadcast %c8_i32_282 : i32 to vector<2x1xi32>
    %1679 = arith.cmpi slt, %1677, %1678 : vector<2x1xi32>
    %1680 = arith.truncf %1675 : vector<2x16xf32> to vector<2x16xbf16>
    %cst_283 = arith.constant dense<0.000000e+00> : vector<2x23xf32>
    %1681 = tpu.matmul %1680, %1, %cst_283 {dimension_numbers = #tpu.dot_dimension_numbers<[1], [0], [0], [1], [0, 0, 1, 1], [], []>} : vector<2x16xbf16>, vector<16x23xbf16>, vector<2x23xf32> -> vector<2x23xf32>
    %1682 = vector.broadcast %2 : vector<1x23xf32> to vector<2x23xf32>
    %1683 = arith.addf %1681, %1682 : vector<2x23xf32>
    %1684 = vector.extract_strided_slice %1683 {offsets = [0, 0], sizes = [2, 11], strides = [1, 1]} : vector<2x23xf32> to vector<2x11xf32>
    %cst_284 = arith.constant 5.000000e-01 : f32
    %1685 = vector.broadcast %cst_284 : f32 to vector<2x11xf32>
    %1686 = arith.mulf %1685, %1684 : vector<2x11xf32>
    %cst_285 = arith.constant 0.707106769 : f32
    %1687 = vector.broadcast %cst_285 : f32 to vector<2x11xf32>
    %1688 = arith.mulf %1684, %1687 : vector<2x11xf32>
    %1689 = math.erf %1688 : vector<2x11xf32>
    %cst_286 = arith.constant 1.000000e+00 : f32
    %1690 = vector.broadcast %cst_286 : f32 to vector<2x11xf32>
    %1691 = arith.addf %1690, %1689 : vector<2x11xf32>
    %1692 = arith.mulf %1686, %1691 : vector<2x11xf32>
    %1693 = arith.truncf %1692 : vector<2x11xf32> to vector<2x11xbf16>
    %cst_287 = arith.constant dense<0.000000e+00> : vector<2x7xf32>
    %1694 = tpu.matmul %1693, %3, %cst_287 {dimension_numbers = #tpu.dot_dimension_numbers<[1], [0], [0], [1], [0, 0, 1, 1], [], []>} : vector<2x11xbf16>, vector<11x7xbf16>, vector<2x7xf32> -> vector<2x7xf32>
    %1695 = vector.broadcast %4 : vector<1x7xf32> to vector<2x7xf32>
    %1696 = arith.addf %1694, %1695 : vector<2x7xf32>
    %1697 = tpu.iota {dimensions = array<i32: 1>} : vector<2x7xi32>
    %cst_288 = arith.constant dense<0xFF800000> : vector<2xf32>
    %1698 = vector.multi_reduction <maximumf>, %1696, %cst_288 [1] : vector<2x7xf32> to vector<2xf32>
    %1699 = vector.shape_cast %1698 : vector<2xf32> to vector<2x1xf32>
    %1700 = vector.broadcast %1699 : vector<2x1xf32> to vector<2x7xf32>
    %1701 = arith.cmpf oeq, %1696, %1700 : vector<2x7xf32>
    %c7_i32_289 = arith.constant 7 : i32
    %1702 = vector.broadcast %c7_i32_289 : i32 to vector<2x7xi32>
    %1703 = arith.select %1701, %1697, %1702 : vector<2x7xi1>, vector<2x7xi32>
    %cst_290 = arith.constant dense<2147483647> : vector<2xi32>
    %1704 = vector.multi_reduction <minsi>, %1703, %cst_290 [1] : vector<2x7xi32> to vector<2xi32>
    %1705 = vector.shape_cast %1704 : vector<2xi32> to vector<2x1xi32>
    %c1_i32_291 = arith.constant 1 : i32
    %1706 = vector.broadcast %c1_i32_291 : i32 to vector<2x1xi32>
    %1707 = arith.addi %1705, %1706 : vector<2x1xi32>
    %1708 = vector.extract_strided_slice %1683 {offsets = [0, 11], sizes = [2, 12], strides = [1, 1]} : vector<2x23xf32> to vector<2x12xf32>
    %1709 = arith.truncf %1708 : vector<2x12xf32> to vector<2x12xbf16>
    %cst_292 = arith.constant dense<0.000000e+00> : vector<2x32xf32>
    %1710 = tpu.matmul %1709, %5, %cst_292 {dimension_numbers = #tpu.dot_dimension_numbers<[1], [0], [0], [1], [0, 0, 1, 1], [], []>} : vector<2x12xbf16>, vector<12x32xbf16>, vector<2x32xf32> -> vector<2x32xf32>
    %c0_i32_293 = arith.constant 0 : i32
    %1711 = vector.broadcast %c0_i32_293 : i32 to vector<2x1xi32>
    %1712 = vector.extract_strided_slice %1710 {offsets = [0, 0], sizes = [2, 8], strides = [1, 1]} : vector<2x32xf32> to vector<2x8xf32>
    %1713 = vector.broadcast %6 : vector<1x8xf32> to vector<2x8xf32>
    %1714 = arith.mulf %1712, %1713 : vector<2x8xf32>
    %cst_294 = arith.constant dense<0.000000e+00> : vector<2xf32>
    %1715 = vector.multi_reduction <add>, %1714, %cst_294 [1] : vector<2x8xf32> to vector<2xf32>
    %1716 = vector.shape_cast %1715 : vector<2xf32> to vector<2x1xf32>
    %1717 = vector.broadcast %7 : vector<1x1xf32> to vector<2x1xf32>
    %1718 = arith.addf %1716, %1717 : vector<2x1xf32>
    %1719 = vector.extract_strided_slice %1710 {offsets = [0, 8], sizes = [2, 8], strides = [1, 1]} : vector<2x32xf32> to vector<2x8xf32>
    %1720 = vector.broadcast %6 : vector<1x8xf32> to vector<2x8xf32>
    %1721 = arith.mulf %1719, %1720 : vector<2x8xf32>
    %cst_295 = arith.constant dense<0.000000e+00> : vector<2xf32>
    %1722 = vector.multi_reduction <add>, %1721, %cst_295 [1] : vector<2x8xf32> to vector<2xf32>
    %1723 = vector.shape_cast %1722 : vector<2xf32> to vector<2x1xf32>
    %1724 = vector.broadcast %7 : vector<1x1xf32> to vector<2x1xf32>
    %1725 = arith.addf %1723, %1724 : vector<2x1xf32>
    %1726 = arith.cmpf ogt, %1725, %1718 : vector<2x1xf32>
    %1727 = arith.select %1726, %1725, %1718 : vector<2x1xi1>, vector<2x1xf32>
    %c1_i32_296 = arith.constant 1 : i32
    %1728 = vector.broadcast %c1_i32_296 : i32 to vector<2x1xi32>
    %1729 = arith.select %1726, %1728, %1711 : vector<2x1xi1>, vector<2x1xi32>
    %1730 = vector.extract_strided_slice %1710 {offsets = [0, 16], sizes = [2, 8], strides = [1, 1]} : vector<2x32xf32> to vector<2x8xf32>
    %1731 = vector.broadcast %6 : vector<1x8xf32> to vector<2x8xf32>
    %1732 = arith.mulf %1730, %1731 : vector<2x8xf32>
    %cst_297 = arith.constant dense<0.000000e+00> : vector<2xf32>
    %1733 = vector.multi_reduction <add>, %1732, %cst_297 [1] : vector<2x8xf32> to vector<2xf32>
    %1734 = vector.shape_cast %1733 : vector<2xf32> to vector<2x1xf32>
    %1735 = vector.broadcast %7 : vector<1x1xf32> to vector<2x1xf32>
    %1736 = arith.addf %1734, %1735 : vector<2x1xf32>
    %1737 = arith.cmpf ogt, %1736, %1727 : vector<2x1xf32>
    %1738 = arith.select %1737, %1736, %1727 : vector<2x1xi1>, vector<2x1xf32>
    %c2_i32_298 = arith.constant 2 : i32
    %1739 = vector.broadcast %c2_i32_298 : i32 to vector<2x1xi32>
    %1740 = arith.select %1737, %1739, %1729 : vector<2x1xi1>, vector<2x1xi32>
    %1741 = vector.extract_strided_slice %1710 {offsets = [0, 24], sizes = [2, 8], strides = [1, 1]} : vector<2x32xf32> to vector<2x8xf32>
    %1742 = vector.broadcast %6 : vector<1x8xf32> to vector<2x8xf32>
    %1743 = arith.mulf %1741, %1742 : vector<2x8xf32>
    %cst_299 = arith.constant dense<0.000000e+00> : vector<2xf32>
    %1744 = vector.multi_reduction <add>, %1743, %cst_299 [1] : vector<2x8xf32> to vector<2xf32>
    %1745 = vector.shape_cast %1744 : vector<2xf32> to vector<2x1xf32>
    %1746 = vector.broadcast %7 : vector<1x1xf32> to vector<2x1xf32>
    %1747 = arith.addf %1745, %1746 : vector<2x1xf32>
    %1748 = arith.cmpf ogt, %1747, %1738 : vector<2x1xf32>
    %c3_i32_300 = arith.constant 3 : i32
    %1749 = vector.broadcast %c3_i32_300 : i32 to vector<2x1xi32>
    %1750 = arith.select %1748, %1749, %1740 : vector<2x1xi1>, vector<2x1xi32>
    %cst_301 = arith.constant 0.000000e+00 : f32
    %1751 = vector.broadcast %cst_301 : f32 to vector<2x8xf32>
    %1752 = vector.extract_strided_slice %1710 {offsets = [0, 0], sizes = [2, 8], strides = [1, 1]} : vector<2x32xf32> to vector<2x8xf32>
    %c0_i32_302 = arith.constant 0 : i32
    %1753 = vector.broadcast %c0_i32_302 : i32 to vector<2x1xi32>
    %1754 = arith.cmpi eq, %1750, %1753 : vector<2x1xi32>
    %1755 = arith.extui %1754 : vector<2x1xi1> to vector<2x1xi32>
    %1756 = arith.sitofp %1755 : vector<2x1xi32> to vector<2x1xf32>
    %1757 = vector.broadcast %1756 : vector<2x1xf32> to vector<2x8xf32>
    %1758 = arith.mulf %1752, %1757 : vector<2x8xf32>
    %1759 = arith.addf %1751, %1758 : vector<2x8xf32>
    %1760 = vector.extract_strided_slice %1710 {offsets = [0, 8], sizes = [2, 8], strides = [1, 1]} : vector<2x32xf32> to vector<2x8xf32>
    %c1_i32_303 = arith.constant 1 : i32
    %1761 = vector.broadcast %c1_i32_303 : i32 to vector<2x1xi32>
    %1762 = arith.cmpi eq, %1750, %1761 : vector<2x1xi32>
    %1763 = arith.extui %1762 : vector<2x1xi1> to vector<2x1xi32>
    %1764 = arith.sitofp %1763 : vector<2x1xi32> to vector<2x1xf32>
    %1765 = vector.broadcast %1764 : vector<2x1xf32> to vector<2x8xf32>
    %1766 = arith.mulf %1760, %1765 : vector<2x8xf32>
    %1767 = arith.addf %1759, %1766 : vector<2x8xf32>
    %1768 = vector.extract_strided_slice %1710 {offsets = [0, 16], sizes = [2, 8], strides = [1, 1]} : vector<2x32xf32> to vector<2x8xf32>
    %c2_i32_304 = arith.constant 2 : i32
    %1769 = vector.broadcast %c2_i32_304 : i32 to vector<2x1xi32>
    %1770 = arith.cmpi eq, %1750, %1769 : vector<2x1xi32>
    %1771 = arith.extui %1770 : vector<2x1xi1> to vector<2x1xi32>
    %1772 = arith.sitofp %1771 : vector<2x1xi32> to vector<2x1xf32>
    %1773 = vector.broadcast %1772 : vector<2x1xf32> to vector<2x8xf32>
    %1774 = arith.mulf %1768, %1773 : vector<2x8xf32>
    %1775 = arith.addf %1767, %1774 : vector<2x8xf32>
    %1776 = vector.extract_strided_slice %1710 {offsets = [0, 24], sizes = [2, 8], strides = [1, 1]} : vector<2x32xf32> to vector<2x8xf32>
    %c3_i32_305 = arith.constant 3 : i32
    %1777 = vector.broadcast %c3_i32_305 : i32 to vector<2x1xi32>
    %1778 = arith.cmpi eq, %1750, %1777 : vector<2x1xi32>
    %1779 = arith.extui %1778 : vector<2x1xi1> to vector<2x1xi32>
    %1780 = arith.sitofp %1779 : vector<2x1xi32> to vector<2x1xf32>
    %1781 = vector.broadcast %1780 : vector<2x1xf32> to vector<2x8xf32>
    %1782 = arith.mulf %1776, %1781 : vector<2x8xf32>
    %1783 = arith.addf %1775, %1782 : vector<2x8xf32>
    %cst_306 = arith.constant 0.000000e+00 : f32
    %1784 = vector.broadcast %cst_306 : f32 to vector<2x8xf32>
    %1785 = vector.extract_strided_slice %1783 {offsets = [0, 0], sizes = [2, 1], strides = [1, 1]} : vector<2x8xf32> to vector<2x1xf32>
    %c0_i32_307 = arith.constant 0 : i32
    %1786 = vector.broadcast %c0_i32_307 : i32 to vector<2x1xi32>
    %1787 = arith.addi %1677, %1786 : vector<2x1xi32>
    %1788 = vector.broadcast %1787 : vector<2x1xi32> to vector<2x8xi32>
    %1789 = arith.cmpi eq, %9, %1788 : vector<2x8xi32>
    %1790 = arith.extui %1789 : vector<2x8xi1> to vector<2x8xi32>
    %1791 = arith.sitofp %1790 : vector<2x8xi32> to vector<2x8xf32>
    %1792 = vector.broadcast %1785 : vector<2x1xf32> to vector<2x8xf32>
    %1793 = arith.mulf %1792, %1791 : vector<2x8xf32>
    %1794 = arith.addf %1784, %1793 : vector<2x8xf32>
    %1795 = vector.extract_strided_slice %1783 {offsets = [0, 1], sizes = [2, 1], strides = [1, 1]} : vector<2x8xf32> to vector<2x1xf32>
    %c1_i32_308 = arith.constant 1 : i32
    %1796 = vector.broadcast %c1_i32_308 : i32 to vector<2x1xi32>
    %1797 = arith.addi %1677, %1796 : vector<2x1xi32>
    %1798 = vector.broadcast %1797 : vector<2x1xi32> to vector<2x8xi32>
    %1799 = arith.cmpi eq, %9, %1798 : vector<2x8xi32>
    %1800 = arith.extui %1799 : vector<2x8xi1> to vector<2x8xi32>
    %1801 = arith.sitofp %1800 : vector<2x8xi32> to vector<2x8xf32>
    %1802 = vector.broadcast %1795 : vector<2x1xf32> to vector<2x8xf32>
    %1803 = arith.mulf %1802, %1801 : vector<2x8xf32>
    %1804 = arith.addf %1794, %1803 : vector<2x8xf32>
    %1805 = vector.extract_strided_slice %1783 {offsets = [0, 2], sizes = [2, 1], strides = [1, 1]} : vector<2x8xf32> to vector<2x1xf32>
    %c2_i32_309 = arith.constant 2 : i32
    %1806 = vector.broadcast %c2_i32_309 : i32 to vector<2x1xi32>
    %1807 = arith.addi %1677, %1806 : vector<2x1xi32>
    %1808 = vector.broadcast %1807 : vector<2x1xi32> to vector<2x8xi32>
    %1809 = arith.cmpi eq, %9, %1808 : vector<2x8xi32>
    %1810 = arith.extui %1809 : vector<2x8xi1> to vector<2x8xi32>
    %1811 = arith.sitofp %1810 : vector<2x8xi32> to vector<2x8xf32>
    %1812 = vector.broadcast %1805 : vector<2x1xf32> to vector<2x8xf32>
    %1813 = arith.mulf %1812, %1811 : vector<2x8xf32>
    %1814 = arith.addf %1804, %1813 : vector<2x8xf32>
    %1815 = vector.extract_strided_slice %1783 {offsets = [0, 3], sizes = [2, 1], strides = [1, 1]} : vector<2x8xf32> to vector<2x1xf32>
    %c3_i32_310 = arith.constant 3 : i32
    %1816 = vector.broadcast %c3_i32_310 : i32 to vector<2x1xi32>
    %1817 = arith.addi %1677, %1816 : vector<2x1xi32>
    %1818 = vector.broadcast %1817 : vector<2x1xi32> to vector<2x8xi32>
    %1819 = arith.cmpi eq, %9, %1818 : vector<2x8xi32>
    %1820 = arith.extui %1819 : vector<2x8xi1> to vector<2x8xi32>
    %1821 = arith.sitofp %1820 : vector<2x8xi32> to vector<2x8xf32>
    %1822 = vector.broadcast %1815 : vector<2x1xf32> to vector<2x8xf32>
    %1823 = arith.mulf %1822, %1821 : vector<2x8xf32>
    %1824 = arith.addf %1814, %1823 : vector<2x8xf32>
    %1825 = vector.extract_strided_slice %1783 {offsets = [0, 4], sizes = [2, 1], strides = [1, 1]} : vector<2x8xf32> to vector<2x1xf32>
    %c4_i32_311 = arith.constant 4 : i32
    %1826 = vector.broadcast %c4_i32_311 : i32 to vector<2x1xi32>
    %1827 = arith.addi %1677, %1826 : vector<2x1xi32>
    %1828 = vector.broadcast %1827 : vector<2x1xi32> to vector<2x8xi32>
    %1829 = arith.cmpi eq, %9, %1828 : vector<2x8xi32>
    %1830 = arith.extui %1829 : vector<2x8xi1> to vector<2x8xi32>
    %1831 = arith.sitofp %1830 : vector<2x8xi32> to vector<2x8xf32>
    %1832 = vector.broadcast %1825 : vector<2x1xf32> to vector<2x8xf32>
    %1833 = arith.mulf %1832, %1831 : vector<2x8xf32>
    %1834 = arith.addf %1824, %1833 : vector<2x8xf32>
    %1835 = vector.extract_strided_slice %1783 {offsets = [0, 5], sizes = [2, 1], strides = [1, 1]} : vector<2x8xf32> to vector<2x1xf32>
    %c5_i32_312 = arith.constant 5 : i32
    %1836 = vector.broadcast %c5_i32_312 : i32 to vector<2x1xi32>
    %1837 = arith.addi %1677, %1836 : vector<2x1xi32>
    %1838 = vector.broadcast %1837 : vector<2x1xi32> to vector<2x8xi32>
    %1839 = arith.cmpi eq, %9, %1838 : vector<2x8xi32>
    %1840 = arith.extui %1839 : vector<2x8xi1> to vector<2x8xi32>
    %1841 = arith.sitofp %1840 : vector<2x8xi32> to vector<2x8xf32>
    %1842 = vector.broadcast %1835 : vector<2x1xf32> to vector<2x8xf32>
    %1843 = arith.mulf %1842, %1841 : vector<2x8xf32>
    %1844 = arith.addf %1834, %1843 : vector<2x8xf32>
    %1845 = vector.extract_strided_slice %1783 {offsets = [0, 6], sizes = [2, 1], strides = [1, 1]} : vector<2x8xf32> to vector<2x1xf32>
    %c6_i32_313 = arith.constant 6 : i32
    %1846 = vector.broadcast %c6_i32_313 : i32 to vector<2x1xi32>
    %1847 = arith.addi %1677, %1846 : vector<2x1xi32>
    %1848 = vector.broadcast %1847 : vector<2x1xi32> to vector<2x8xi32>
    %1849 = arith.cmpi eq, %9, %1848 : vector<2x8xi32>
    %1850 = arith.extui %1849 : vector<2x8xi1> to vector<2x8xi32>
    %1851 = arith.sitofp %1850 : vector<2x8xi32> to vector<2x8xf32>
    %1852 = vector.broadcast %1845 : vector<2x1xf32> to vector<2x8xf32>
    %1853 = arith.mulf %1852, %1851 : vector<2x8xf32>
    %1854 = arith.addf %1844, %1853 : vector<2x8xf32>
    %1855 = vector.broadcast %1677 : vector<2x1xi32> to vector<2x8xi32>
    %1856 = arith.cmpi sge, %9, %1855 : vector<2x8xi32>
    %1857 = vector.broadcast %1679 : vector<2x1xi1> to vector<2x8xi1>
    %1858 = arith.andi %1857, %1856 : vector<2x8xi1>
    %1859 = arith.addi %1677, %1707 : vector<2x1xi32>
    %1860 = vector.broadcast %1859 : vector<2x1xi32> to vector<2x8xi32>
    %1861 = arith.cmpi slt, %9, %1860 : vector<2x8xi32>
    %1862 = arith.andi %1858, %1861 : vector<2x8xi1>
    %1863 = arith.select %1862, %1854, %1625 : vector<2x8xi1>, vector<2x8xf32>
    %1864 = arith.truncf %0 : vector<2x16xf32> to vector<2x16xbf16>
    %c0_314 = arith.constant 0 : index
    %c0_315 = arith.constant 0 : index
    %1865 = vector.load %arg8[%c0_314, %c0_315] : memref<16x8xbf16, #tpu.memory_space<vmem>>, vector<16x8xbf16>
    %cst_316 = arith.constant dense<0.000000e+00> : vector<2x8xf32>
    %1866 = tpu.matmul %1864, %1865, %cst_316 {dimension_numbers = #tpu.dot_dimension_numbers<[1], [0], [0], [1], [0, 0, 1, 1], [], []>} : vector<2x16xbf16>, vector<16x8xbf16>, vector<2x8xf32> -> vector<2x8xf32>
    %c0_317 = arith.constant 0 : index
    %c0_318 = arith.constant 0 : index
    %1867 = vector.load %arg9[%c0_317, %c0_318] : memref<1x8xf32, #tpu.memory_space<vmem>>, vector<1x8xf32>
    %1868 = vector.broadcast %1867 : vector<1x8xf32> to vector<2x8xf32>
    %1869 = arith.addf %1866, %1868 : vector<2x8xf32>
    %cst_319 = arith.constant 1.000000e+00 : f32
    %1870 = vector.broadcast %cst_319 : f32 to vector<1x8xf32>
    %1871 = arith.subf %1870, %8 : vector<1x8xf32>
    %1872 = vector.broadcast %1871 : vector<1x8xf32> to vector<2x8xf32>
    %1873 = arith.mulf %1872, %1863 : vector<2x8xf32>
    %1874 = vector.broadcast %8 : vector<1x8xf32> to vector<2x8xf32>
    %1875 = arith.mulf %1874, %1869 : vector<2x8xf32>
    %1876 = arith.addf %1873, %1875 : vector<2x8xf32>
    %c0_320 = arith.constant 0 : index
    %c0_321 = arith.constant 0 : index
    %1877 = vector.load %arg11[%c0_320, %c0_321] : memref<2x8xf32, #tpu.memory_space<vmem>>, vector<2x8xf32>
    tpu.vector_store %arg11[%c0_320, %c0_321], %1876 {strides = array<i32>} : memref<2x8xf32, #tpu.memory_space<vmem>>, vector<2x8xf32>,
    return
  }
}

</mosaic_0001>

<llo_original>
// kernel: _forward_call.1
$region0: #{_forward_call.1}
  #allocation0 [shape = 'u32[]', space=smem, size = 0x4, offset = 0x4, fixed_abs, tag = 'smem constant byte address 0x4 - core index']
  #allocation1 [shape = 'u32[72,128]{1,0:T(1,128)}', space=vmem, size = 0x9000, scoped, tag = 'internal scratch']
  #allocation2 [shape = 'f32[1,1]{1,0:T(1,128)S(1)}', space=vmem, size = 0x200, scoped, tag = 'scoped memory for _forward_call.1']
  %s0 = inlined_call_operand.vmem [shape: f32[2,16], index: 0, kind: input, shape index: {}]
  %s1 = inlined_call_operand.vmem [shape: bf16[16,23], index: 1, kind: input, shape index: {}]
  %s2 = inlined_call_operand.vmem [shape: f32[1,23], index: 2, kind: input, shape index: {}]
  %s3 = inlined_call_operand.vmem [shape: bf16[11,7], index: 3, kind: input, shape index: {}]
  %s4 = inlined_call_operand.vmem [shape: f32[1,7], index: 4, kind: input, shape index: {}]
  %s5 = inlined_call_operand.vmem [shape: bf16[12,32], index: 5, kind: input, shape index: {}]
  %s6 = inlined_call_operand.vmem [shape: f32[1,8], index: 6, kind: input, shape index: {}]
  %s7 = inlined_call_operand.<no memory space> [shape: f32[1,1], index: 7, kind: input, shape index: {}]
  %s8 = inlined_call_operand.vmem [shape: bf16[16,8], index: 8, kind: input, shape index: {}]
  %s9 = inlined_call_operand.vmem [shape: f32[1,8], index: 9, kind: input, shape index: {}]
  %s10 = inlined_call_operand.vmem [shape: f32[1,8], index: 10, kind: input, shape index: {}]
  %s11 = inlined_call_operand.hbm [shape: f32[2,8], index: 11, kind: output, shape index: {}]
  %s12 = sld [smem:[#allocation0]]
  $region54: #{_forward_call.1} parent=0
    _
  %s14 = ssub.s32 1, %s12
  %s15 = scalar_select 0, %s14, %s12
  %v16 = vstv %s7
  %17 = vst [vmem:[#allocation2] sm:$0x1] %v16
  $region1: #{_forward_call.1} parent=0
    #allocation3 [shape = 'u8[1024]{0}', space=vmem, size = 0x400, scoped, tag = 'output window, operand 0, single buffered']
    #allocation4 [shape = 's32[1]{0}', space=sflag, size = 0x4, scoped, tag = 'scoped memory for _forward_call.1']
    %18 = vsyncpa [#allocation4], 0
    // Predicated region
    $region2: #{_forward_call.1} parent=1 // pred_check
      _
    $region3: #{_forward_call.1} parent=1 // pred_check_branch
      %20 = sbr.rel (0) target = $region5
    $region4: #{_forward_call.1} parent=1 // pred_region
      _
    $region5: #{_forward_call.1} parent=1 // pred_fallthru
      _
    // Predicated region
    $region6: #{_forward_call.1} parent=1 // pred_check
      _
    $region7: #{_forward_call.1} parent=1 // pred_check_branch
      %22 = sbr.rel (0) target = $region9
    $region8: #{_forward_call.1} parent=1 // pred_region
      _
    $region9: #{_forward_call.1} parent=1 // pred_fallthru
      _
    // Predicated region
    $region10: #{_forward_call.1} parent=1 // pred_check
      _
    $region11: #{_forward_call.1} parent=1 // pred_check_branch
      %24 = sbr.rel (0) target = $region13
    $region12: #{_forward_call.1} parent=1 // pred_region
      _
    $region13: #{_forward_call.1} parent=1 // pred_fallthru
      _
    // Predicated region
    $region14: #{_forward_call.1} parent=1 // pred_check
      _
    $region15: #{_forward_call.1} parent=1 // pred_check_branch
      %26 = sbr.rel (0) target = $region17
    $region16: #{_forward_call.1} parent=1 // pred_region
      _
    $region17: #{_forward_call.1} parent=1 // pred_fallthru
      _
    // Predicated region
    $region18: #{_forward_call.1} parent=1 // pred_check
      _
    $region19: #{_forward_call.1} parent=1 // pred_check_branch
      %28 = sbr.rel (0) target = $region21
    $region20: #{_forward_call.1} parent=1 // pred_region
      _
    $region21: #{_forward_call.1} parent=1 // pred_fallthru
      _
    // Predicated region
    $region22: #{_forward_call.1} parent=1 // pred_check
      _
    $region23: #{_forward_call.1} parent=1 // pred_check_branch
      %30 = sbr.rel (0) target = $region25
    $region24: #{_forward_call.1} parent=1 // pred_region
      _
    $region25: #{_forward_call.1} parent=1 // pred_fallthru
      _
    // Predicated region
    $region26: #{_forward_call.1} parent=1 // pred_check
      _
    $region27: #{_forward_call.1} parent=1 // pred_check_branch
      %32 = sbr.rel (0) target = $region29
    $region28: #{_forward_call.1} parent=1 // pred_region
      _
    $region29: #{_forward_call.1} parent=1 // pred_fallthru
      _
    // Predicated region
    $region30: #{_forward_call.1} parent=1 // pred_check
      _
    $region31: #{_forward_call.1} parent=1 // pred_check_branch
      %34 = sbr.rel (0) target = $region33
    $region32: #{_forward_call.1} parent=1 // pred_region
      _
    $region33: #{_forward_call.1} parent=1 // pred_fallthru
      _
    // Predicated region
    $region34: #{_forward_call.1} parent=1 // pred_check
      _
    $region35: #{_forward_call.1} parent=1 // pred_check_branch
      %36 = sbr.rel (0) target = $region37
    $region36: #{_forward_call.1} parent=1 // pred_region
      _
    $region37: #{_forward_call.1} parent=1 // pred_fallthru
      _
    // Predicated region
    $region38: #{_forward_call.1} parent=1 // pred_check
      _
    $region39: #{_forward_call.1} parent=1 // pred_check_branch
      %38 = sbr.rel (0) target = $region41
    $region40: #{_forward_call.1} parent=1 // pred_region
      _
    $region41: #{_forward_call.1} parent=1 // pred_fallthru
      _
    // Predicated region
    $region42: #{_forward_call.1} parent=1 // pred_check
      _
    $region43: #{_forward_call.1} parent=1 // pred_check_branch
      %40 = sbr.rel (0) target = $region45
    $region44: #{_forward_call.1} parent=1 // pred_region
      _
    $region45: #{_forward_call.1} parent=1 // pred_fallthru
      _
    %v42 = vld [vmem:[%s0] sm:$0x3]
    %v43 = vld [vmem:[%s1] sm:$0xf]
    %v44 = vld [vmem:[%s1 + $0x4] sm:$0xf]
    %v45 = vld [vmem:[%s2] sm:$0x1]
    %v46 = vld [vmem:[%s3] sm:$0xf]
    %v47 = vld [vmem:[%s3 + $0x4] sm:$0x3]
    %v48 = vld [vmem:[%s4] sm:$0x1]
    %v49 = vld [vmem:[%s5] sm:$0xf]
    %v50 = vld [vmem:[%s5 + $0x4] sm:$0x3]
    %v51 = vld [vmem:[%s6] sm:$0x1]
    %v52 = vld [vmem:[#allocation2] sm:$0x1]
    %v53 = vld [vmem:[%s10] sm:$0x1]
    %v54 = vlaneseq
    %v55 = vand.u32 %v54, 127
    %v56 = vpack.c.bf16 %v42, %v42
    %v58 = vperm.slane %v45, 0
    %v62 = vunpack.c.l.b16 %v43
    %v63 = vunpack.c.l.b16 %v44
    %v64 = vpack.c.b16 %v63, %v62
    %vm66 = vcmask 130048
    %v68 = vsel %vm66, %v56, 0
    %70 = vmatpush.bf16.msra.mxu0 0
    %71 = vmatpush.bf16.msra.mxu0 0
    %72 = vmatpush.bf16.msra.mxu0 0
    %73 = vmatpush.bf16.msra.mxu0 0
    %74 = vmatpush.bf16.msra.mxu0 0
    %75 = vmatpush.bf16.msra.mxu0 0
    %76 = vmatpush.bf16.msra.mxu0 0
    %77 = vmatpush.bf16.msra.mxu0 %v64
    %78 = vmatmul.bf16.gmra.mxu0 %v68
    %v79 = vpop.f32.mrf.mxu0
    %v80 = vadd.f32 %v58, %v79
    %v81 = vpop.f32.mrf.mxu0
    %82 = vdwg.mxu0
    %v83 = vmul.f32 %v80, 0.5
    %v84 = vmul.f32 %v80, 0.70710677
    %v85 = vmul.f32 %v84, %v84
    %v86 = vmin.f32 16.0, %v85
    %v87 = vmul.f32 %v86, 2.1237322e-06
    %v88 = vadd.f32 %v87, 0.00028619796
    %v89 = vmul.f32 %v86, %v88
    %v90 = vadd.f32 %v89, 0.0036580483
    %v91 = vmul.f32 %v86, %v90
    %v92 = vadd.f32 %v91, 0.05243302
    %v93 = vmul.f32 %v86, %v92
    %v94 = vadd.f32 %v93, 0.18741608
    %v95 = vmul.f32 %v86, %v94
    %v96 = vadd.f32 %v95, 1.1283791
    %v97 = vmul.f32 %v84, %v96
    %v98 = vmul.f32 %v86, 3.8918573e-05
    %v99 = vadd.f32 %v98, 0.001143296
    %v100 = vmul.f32 %v86, %v99
    %v101 = vadd.f32 %v100, 0.014752088
    %v102 = vmul.f32 %v86, %v101
    %v103 = vadd.f32 %v102, 0.112945676
    %v104 = vmul.f32 %v86, %v103
    %v105 = vadd.f32 %v104, 0.4994258
    %v106 = vmul.f32 %v86, %v105
    %v107 = vadd.f32 %v106, 1.0
    %v108 = vrcp.pop %v107
    %v109 = vmul.f32 %v107, %v108
    %v110 = vsub.f32 1.0, %v109
    %v111 = vmul.f32 %v108, %v110
    %v112 = vadd.f32 %v108, %v111
    %vm113 = vweird.f32 %v107
    %vm114 = vweird.f32 %v108
    %vm115 = vmor %vm113, %vm114
    %v116 = vsel %vm115, %v108, %v112
    %v117 = vand.u32 2147483647, %v107
    %vm118 = vcmp.eq.f32.partialorder %v117, 8.507059e+37
    %v119 = vand.u32 %v107, 2147483648
    %v120 = vor.u32 1.1754944e-38, %v119
    %v121 = vsel %vm118, %v120, %v116
    %v122 = vmul.f32 %v97, %v121
    %v123 = vmin.f32 %v122, 1.0
    %v124 = vmax.f32 %v123, -1.0
    %v125 = vadd.f32 %v124, 1.0
    %v126 = vmul.f32 %v83, %v125
    %v127 = vpack.c.bf16 %v126, %v126
    %v129 = vperm.slane %v48, 0
    %v133 = vunpack.c.l.b16 %v46
    %v134 = vunpack.c.l.b16 %v47
    %v135 = vpack.c.b16 %v134, %v133
    %vm136 = vcmask 89088
    %v138 = vsel %vm136, %v127, 0
    %vm140 = vcmask 1044480
    %vm141 = vcmask 1045504
    %v142 = vsel %vm140, 4294967295, 65535
    %v143 = vsel %vm141, %v142, 0
    %v145 = vand.u32 %v135, %v143
    %147 = vmatpush.bf16.msra.mxu0 0
    %148 = vmatpush.bf16.msra.mxu0 0
    %149 = vmatpush.bf16.msra.mxu0 0
    %150 = vmatpush.bf16.msra.mxu0 0
    %151 = vmatpush.bf16.msra.mxu0 0
    %152 = vmatpush.bf16.msra.mxu0 0
    %153 = vmatpush.bf16.msra.mxu0 0
    %154 = vmatpush.bf16.msra.mxu0 %v145
    %155 = vmatmul.bf16.gmra.mxu0 %v138
    %v156 = vpop.f32.mrf.mxu0
    %v157 = vadd.f32 %v129, %v156
    %v158 = vpop.f32.mrf.mxu0
    %159 = vdwg.mxu0
    %vm160 = vcmask 50176
    %v161 = vsel %vm160, %v157, -inf
    %162 = vmax.xlane.f32.xlu0 %v161
    %v163 = vpop.xlane.xlu0 %162
    %vm164 = vcmp.eq.f32.partialorder %v157, %v163
    %v165 = vsel %vm164, %v55, 7
    %v166 = vsel %vm160, %v165, 2147483647
    %v167 = vand.u32 %v166, 65535
    %v168 = vshra.s32 %v166, 16
    %v169 = vcvt.s32.f32 %v167
    %v170 = vcvt.s32.f32 %v168
    %171 = vmin.xlane.f32.xlu0 %v170
    %v172 = vpop.xlane.xlu0 %171
    %vm173 = vcmp.eq.f32.partialorder %v170, %v172
    %v174 = vsel %vm173, %v169, inf
    %175 = vmin.xlane.f32.xlu0 %v174
    %v176 = vpop.xlane.xlu0 %175
    %v177 = vcvt.f32.s32 %v176
    %v178 = vcvt.f32.s32 %v172
    %v179 = vshll.u32 %v178, 16
    %v180 = vadd.s32 %v179, %v177
    %v181 = vadd.s32 %v180, 1
    %v182 = vpack.c.bf16 %v80, %v80
    %184 = vrot.lane.b32.xlu0 %v182, 117
    %v185 = vpop.permute.xlu0 %184
    %v188 = vunpack.c.l.b16 %v49
    %v189 = vunpack.c.l.b16 %v50
    %v190 = vpack.c.b16 %v189, %v188
    %vm191 = vcmask 97280
    %v193 = vsel %vm191, %v185, 0
    %v196 = vsel %vm141, %v190, 0
    %198 = vmatpush.bf16.msra.mxu0 0
    %199 = vmatpush.bf16.msra.mxu0 0
    %200 = vmatpush.bf16.msra.mxu0 0
    %201 = vmatpush.bf16.msra.mxu0 0
    %202 = vmatpush.bf16.msra.mxu0 0
    %203 = vmatpush.bf16.msra.mxu0 0
    %204 = vmatpush.bf16.msra.mxu0 0
    %205 = vmatpush.bf16.msra.mxu0 %v196
    %206 = vmatmul.bf16.gmra.mxu0 %v193
    %v207 = vpop.f32.mrf.mxu0
    %v208 = vadd.f32 0.0, %v207
    %v209 = vpop.f32.mrf.mxu0
    %210 = vdwg.mxu0
    %v212 = vperm.slane %v51, 0
    %v214 = vmul.f32 %v208, %v212
    %vm215 = vcmask 58368
    %v216 = vsel %vm215, %v214, 0.0
    %217 = vadd.xlane.f32.xlu0 %v216
    %v218 = vpop.xlane.xlu0 %217
    %v220 = vperm.slane %v52, 0
    %v222 = vadd.f32 %v218, %v220
    %223 = vrot.lane.b32.xlu0 %v212, 8
    %v224 = vpop.permute.xlu0 %223
    %v226 = vmul.f32 %v208, %v224
    %228 = vrot.lane.b32.xlu0 %v226, 120
    %v229 = vpop.permute.xlu0 %228
    %v231 = vsel %vm215, %v229, 0.0
    %232 = vadd.xlane.f32.xlu0 %v231
    %v233 = vpop.xlane.xlu0 %232
    %v234 = vadd.f32 %v233, %v220
    %vm235 = vcmp.gt.f32.partialorder %v234, %v222
    %v236 = vsel %vm235, %v234, %v222
    %v237 = vsel %vm235, 1, 0
    %238 = vrot.lane.b32.xlu0 %v212, 16
    %v239 = vpop.permute.xlu0 %238
    %v241 = vmul.f32 %v208, %v239
    %243 = vrot.lane.b32.xlu0 %v241, 112
    %v244 = vpop.permute.xlu0 %243
    %v246 = vsel %vm215, %v244, 0.0
    %247 = vadd.xlane.f32.xlu0 %v246
    %v248 = vpop.xlane.xlu0 %247
    %v249 = vadd.f32 %v248, %v220
    %vm250 = vcmp.gt.f32.partialorder %v249, %v236
    %v251 = vsel %vm250, %v249, %v236
    %v252 = vsel %vm250, 2, %v237
    %253 = vrot.lane.b32.xlu0 %v212, 24
    %v254 = vpop.permute.xlu0 %253
    %v256 = vmul.f32 %v208, %v254
    %258 = vrot.lane.b32.xlu0 %v256, 104
    %v259 = vpop.permute.xlu0 %258
    %v261 = vsel %vm215, %v259, 0.0
    %262 = vadd.xlane.f32.xlu0 %v261
    %v263 = vpop.xlane.xlu0 %262
    %v264 = vadd.f32 %v263, %v220
    %vm265 = vcmp.gt.f32.partialorder %v264, %v251
    %v266 = vsel %vm265, 3, %v252
    %vm267 = vcmp.eq.s32.totalorder %v266, 0
    %v268 = vsel %vm267, 1, 0
    %v269 = vcvt.s32.f32 %v268
    %271 = vset.pattern.permute.xlu0 0
    %272 = vperm.xlu0 %271, %v269
    %v273 = vpop.permute.xlu0 %272
    %v275 = vmul.f32 %v208, %v273
    %v276 = vadd.f32 %v275, 0.0
    %vm277 = vcmp.eq.s32.totalorder %v266, 1
    %v278 = vsel %vm277, 1, 0
    %v279 = vcvt.s32.f32 %v278
    %281 = vset.pattern.permute.xlu0 0
    %282 = vperm.xlu0 %281, %v279
    %v283 = vpop.permute.xlu0 %282
    %v285 = vmul.f32 %v208, %v283
    %287 = vrot.lane.b32.xlu0 %v285, 120
    %v288 = vpop.permute.xlu0 %287
    %v290 = vadd.f32 %v276, %v288
    %vm291 = vcmp.eq.s32.totalorder %v266, 2
    %v292 = vsel %vm291, 1, 0
    %v293 = vcvt.s32.f32 %v292
    %295 = vset.pattern.permute.xlu0 0
    %296 = vperm.xlu0 %295, %v293
    %v297 = vpop.permute.xlu0 %296
    %v299 = vmul.f32 %v208, %v297
    %301 = vrot.lane.b32.xlu0 %v299, 112
    %v302 = vpop.permute.xlu0 %301
    %v304 = vadd.f32 %v290, %v302
    %vm305 = vcmp.eq.s32.totalorder %v266, 3
    %v306 = vsel %vm305, 1, 0
    %v307 = vcvt.s32.f32 %v306
    %309 = vset.pattern.permute.xlu0 0
    %310 = vperm.xlu0 %309, %v307
    %v311 = vpop.permute.xlu0 %310
    %v313 = vmul.f32 %v208, %v311
    %315 = vrot.lane.b32.xlu0 %v313, 104
    %v316 = vpop.permute.xlu0 %315
    %v318 = vadd.f32 %v304, %v316
    %vm319 = vcmp.eq.s32.totalorder %v55, 0
    %v320 = vsel %vm319, 1, 0
    %v321 = vcvt.s32.f32 %v320
    %323 = vset.pattern.permute.xlu0 0
    %324 = vperm.xlu0 %323, %v318
    %v325 = vpop.permute.xlu0 %324
    %v327 = vmul.f32 %v325, %v321
    %v328 = vadd.f32 %v327, 0.0
    %vm329 = vcmp.eq.s32.totalorder %v55, 1
    %v330 = vsel %vm329, 1, 0
    %v331 = vcvt.s32.f32 %v330
    %332 = vset.pattern.permute.xlu0 1
    %333 = vperm.xlu0 %332, %v318
    %v334 = vpop.permute.xlu0 %333
    %v336 = vmul.f32 %v334, %v331
    %v337 = vadd.f32 %v328, %v336
    %vm338 = vcmp.eq.s32.totalorder %v55, 2
    %v339 = vsel %vm338, 1, 0
    %v340 = vcvt.s32.f32 %v339
    %341 = vset.pattern.permute.xlu0 2
    %342 = vperm.xlu0 %341, %v318
    %v343 = vpop.permute.xlu0 %342
    %v345 = vmul.f32 %v343, %v340
    %v346 = vadd.f32 %v337, %v345
    %vm347 = vcmp.eq.s32.totalorder %v55, 3
    %v348 = vsel %vm347, 1, 0
    %v349 = vcvt.s32.f32 %v348
    %350 = vset.pattern.permute.xlu0 3
    %351 = vperm.xlu0 %350, %v318
    %v352 = vpop.permute.xlu0 %351
    %v354 = vmul.f32 %v352, %v349
    %v355 = vadd.f32 %v346, %v354
    %vm356 = vcmp.eq.s32.totalorder %v55, 4
    %v357 = vsel %vm356, 1, 0
    %v358 = vcvt.s32.f32 %v357
    %359 = vset.pattern.permute.xlu0 4
    %360 = vperm.xlu0 %359, %v318
    %v361 = vpop.permute.xlu0 %360
    %v363 = vmul.f32 %v361, %v358
    %v364 = vadd.f32 %v355, %v363
    %vm365 = vcmp.eq.s32.totalorder %v55, 5
    %v366 = vsel %vm365, 1, 0
    %v367 = vcvt.s32.f32 %v366
    %368 = vset.pattern.permute.xlu0 5
    %369 = vperm.xlu0 %368, %v318
    %v370 = vpop.permute.xlu0 %369
    %v372 = vmul.f32 %v370, %v367
    %v373 = vadd.f32 %v364, %v372
    %vm374 = vcmp.eq.s32.totalorder %v55, 6
    %v375 = vsel %vm374, 1, 0
    %v376 = vcvt.s32.f32 %v375
    %377 = vset.pattern.permute.xlu0 6
    %378 = vperm.xlu0 %377, %v318
    %v379 = vpop.permute.xlu0 %378
    %v381 = vmul.f32 %v379, %v376
    %v382 = vadd.f32 %v373, %v381
    %vm383 = vcmp.ge.s32.totalorder %v55, 0
    %vm384 = vcmp.lt.s32.totalorder %v55, %v181
    %vm385 = vmand %vm383, %vm384
    %v386 = vsel %vm385, %v382, 0.0
    %387 = vrot.lane.b32.xlu0 %v318, 16
    %v388 = vpop.permute.xlu0 %387
    %v390 = vsel %vm66, %v42, %v388
    %vm391 = vcmp.eq.s32.totalorder %v181, 1
    %v392 = vsel %vm391, 1, 0
    %vm393 = vcmp.eq.s32.totalorder %v392, 1
    %395 = vrot.lane.b32.xlu0 %v42, 1
    %v396 = vpop.permute.xlu0 %395
    %v398 = vsel %vm393, %v390, %v396
    %vm399 = vcmp.eq.s32.totalorder %v181, 2
    %v400 = vsel %vm399, 1, 0
    %vm401 = vcmp.eq.s32.totalorder %v400, 1
    %403 = vrot.lane.b32.xlu0 %v398, 1
    %v404 = vpop.permute.xlu0 %403
    %v406 = vsel %vm401, %v390, %v404
    %vm407 = vcmp.eq.s32.totalorder %v181, 3
    %v408 = vsel %vm407, 1, 0
    %vm409 = vcmp.eq.s32.totalorder %v408, 1
    %411 = vrot.lane.b32.xlu0 %v406, 1
    %v412 = vpop.permute.xlu0 %411
    %v414 = vsel %vm409, %v390, %v412
    %vm415 = vcmp.eq.s32.totalorder %v181, 4
    %v416 = vsel %vm415, 1, 0
    %vm417 = vcmp.eq.s32.totalorder %v416, 1
    %419 = vrot.lane.b32.xlu0 %v414, 1
    %v420 = vpop.permute.xlu0 %419
    %v422 = vsel %vm417, %v390, %v420
    %vm423 = vcmp.eq.s32.totalorder %v181, 5
    %v424 = vsel %vm423, 1, 0
    %vm425 = vcmp.eq.s32.totalorder %v424, 1
    %427 = vrot.lane.b32.xlu0 %v422, 1
    %v428 = vpop.permute.xlu0 %427
    %v430 = vsel %vm425, %v390, %v428
    %vm431 = vcmp.eq.s32.totalorder %v181, 6
    %v432 = vsel %vm431, 1, 0
    %vm433 = vcmp.eq.s32.totalorder %v432, 1
    %435 = vrot.lane.b32.xlu0 %v430, 1
    %v436 = vpop.permute.xlu0 %435
    %v438 = vsel %vm433, %v390, %v436
    %vm439 = vcmp.eq.s32.totalorder %v181, 7
    %v440 = vsel %vm439, 1, 0
    %vm441 = vcmp.eq.s32.totalorder %v440, 1
    %443 = vrot.lane.b32.xlu0 %v438, 1
    %v444 = vpop.permute.xlu0 %443
    %v446 = vsel %vm441, %v390, %v444
    %vm447 = vcmp.lt.s32.totalorder %v181, 8
    %v448 = vpack.c.bf16 %v446, %v446
    %450 = vrot.lane.b32.xlu0 %v448, 121
    %v451 = vpop.permute.xlu0 %450
    %v453 = vsel %vm66, %v451, 0
    %455 = vmatpush.bf16.msra.mxu0 0
    %456 = vmatpush.bf16.msra.mxu0 0
    %457 = vmatpush.bf16.msra.mxu0 0
    %458 = vmatpush.bf16.msra.mxu0 0
    %459 = vmatpush.bf16.msra.mxu0 0
    %460 = vmatpush.bf16.msra.mxu0 0
    %461 = vmatpush.bf16.msra.mxu0 0
    %462 = vmatpush.bf16.msra.mxu0 %v64
    %463 = vmatmul.bf16.gmra.mxu0 %v453
    %v464 = vpop.f32.mrf.mxu0
    %v465 = vadd.f32 %v58, %v464
    %v466 = vpop.f32.mrf.mxu0
    %467 = vdwg.mxu0
    %v468 = vmul.f32 %v465, 0.5
    %v469 = vmul.f32 %v465, 0.70710677
    %v470 = vmul.f32 %v469, %v469
    %v471 = vmin.f32 16.0, %v470
    %v472 = vmul.f32 %v471, 2.1237322e-06
    %v473 = vadd.f32 %v472, 0.00028619796
    %v474 = vmul.f32 %v471, %v473
    %v475 = vadd.f32 %v474, 0.0036580483
    %v476 = vmul.f32 %v471, %v475
    %v477 = vadd.f32 %v476, 0.05243302
    %v478 = vmul.f32 %v471, %v477
    %v479 = vadd.f32 %v478, 0.18741608
    %v480 = vmul.f32 %v471, %v479
    %v481 = vadd.f32 %v480, 1.1283791
    %v482 = vmul.f32 %v469, %v481
    %v483 = vmul.f32 %v471, 3.8918573e-05
    %v484 = vadd.f32 %v483, 0.001143296
    %v485 = vmul.f32 %v471, %v484
    %v486 = vadd.f32 %v485, 0.014752088
    %v487 = vmul.f32 %v471, %v486
    %v488 = vadd.f32 %v487, 0.112945676
    %v489 = vmul.f32 %v471, %v488
    %v490 = vadd.f32 %v489, 0.4994258
    %v491 = vmul.f32 %v471, %v490
    %v492 = vadd.f32 %v491, 1.0
    %v493 = vrcp.pop %v492
    %v494 = vmul.f32 %v492, %v493
    %v495 = vsub.f32 1.0, %v494
    %v496 = vmul.f32 %v493, %v495
    %v497 = vadd.f32 %v493, %v496
    %vm498 = vweird.f32 %v492
    %vm499 = vweird.f32 %v493
    %vm500 = vmor %vm498, %vm499
    %v501 = vsel %vm500, %v493, %v497
    %v502 = vand.u32 2147483647, %v492
    %vm503 = vcmp.eq.f32.partialorder %v502, 8.507059e+37
    %v504 = vand.u32 %v492, 2147483648
    %v505 = vor.u32 1.1754944e-38, %v504
    %v506 = vsel %vm503, %v505, %v501
    %v507 = vmul.f32 %v482, %v506
    %v508 = vmin.f32 %v507, 1.0
    %v509 = vmax.f32 %v508, -1.0
    %v510 = vadd.f32 %v509, 1.0
    %v511 = vmul.f32 %v468, %v510
    %v512 = vpack.c.bf16 %v511, %v511
    %v514 = vsel %vm136, %v512, 0
    %516 = vmatpush.bf16.msra.mxu0 0
    %517 = vmatpush.bf16.msra.mxu0 0
    %518 = vmatpush.bf16.msra.mxu0 0
    %519 = vmatpush.bf16.msra.mxu0 0
    %520 = vmatpush.bf16.msra.mxu0 0
    %521 = vmatpush.bf16.msra.mxu0 0
    %522 = vmatpush.bf16.msra.mxu0 0
    %523 = vmatpush.bf16.msra.mxu0 %v145
    %524 = vmatmul.bf16.gmra.mxu0 %v514
    %v525 = vpop.f32.mrf.mxu0
    %v526 = vadd.f32 %v129, %v525
    %v527 = vpop.f32.mrf.mxu0
    %528 = vdwg.mxu0
    %v529 = vsel %vm160, %v526, -inf
    %530 = vmax.xlane.f32.xlu0 %v529
    %v531 = vpop.xlane.xlu0 %530
    %vm532 = vcmp.eq.f32.partialorder %v526, %v531
    %v533 = vsel %vm532, %v55, 7
    %v534 = vsel %vm160, %v533, 2147483647
    %v535 = vand.u32 %v534, 65535
    %v536 = vshra.s32 %v534, 16
    %v537 = vcvt.s32.f32 %v535
    %v538 = vcvt.s32.f32 %v536
    %539 = vmin.xlane.f32.xlu0 %v538
    %v540 = vpop.xlane.xlu0 %539
    %vm541 = vcmp.eq.f32.partialorder %v538, %v540
    %v542 = vsel %vm541, %v537, inf
    %543 = vmin.xlane.f32.xlu0 %v542
    %v544 = vpop.xlane.xlu0 %543
    %v545 = vcvt.f32.s32 %v544
    %v546 = vcvt.f32.s32 %v540
    %v547 = vshll.u32 %v546, 16
    %v548 = vadd.s32 %v547, %v545
    %v549 = vadd.s32 %v548, 1
    %v550 = vpack.c.bf16 %v465, %v465
    %552 = vrot.lane.b32.xlu0 %v550, 117
    %v553 = vpop.permute.xlu0 %552
    %v555 = vsel %vm191, %v553, 0
    %557 = vmatpush.bf16.msra.mxu0 0
    %558 = vmatpush.bf16.msra.mxu0 0
    %559 = vmatpush.bf16.msra.mxu0 0
    %560 = vmatpush.bf16.msra.mxu0 0
    %561 = vmatpush.bf16.msra.mxu0 0
    %562 = vmatpush.bf16.msra.mxu0 0
    %563 = vmatpush.bf16.msra.mxu0 0
    %564 = vmatpush.bf16.msra.mxu0 %v196
    %565 = vmatmul.bf16.gmra.mxu0 %v555
    %v566 = vpop.f32.mrf.mxu0
    %v567 = vadd.f32 0.0, %v566
    %v568 = vpop.f32.mrf.mxu0
    %569 = vdwg.mxu0
    %v570 = vmul.f32 %v567, %v212
    %v571 = vsel %vm215, %v570, 0.0
    %572 = vadd.xlane.f32.xlu0 %v571
    %v573 = vpop.xlane.xlu0 %572
    %v574 = vadd.f32 %v573, %v220
    %v575 = vmul.f32 %v567, %v224
    %577 = vrot.lane.b32.xlu0 %v575, 120
    %v578 = vpop.permute.xlu0 %577
    %v580 = vsel %vm215, %v578, 0.0
    %581 = vadd.xlane.f32.xlu0 %v580
    %v582 = vpop.xlane.xlu0 %581
    %v583 = vadd.f32 %v582, %v220
    %vm584 = vcmp.gt.f32.partialorder %v583, %v574
    %v585 = vsel %vm584, %v583, %v574
    %v586 = vsel %vm584, 1, 0
    %v587 = vmul.f32 %v567, %v239
    %589 = vrot.lane.b32.xlu0 %v587, 112
    %v590 = vpop.permute.xlu0 %589
    %v592 = vsel %vm215, %v590, 0.0
    %593 = vadd.xlane.f32.xlu0 %v592
    %v594 = vpop.xlane.xlu0 %593
    %v595 = vadd.f32 %v594, %v220
    %vm596 = vcmp.gt.f32.partialorder %v595, %v585
    %v597 = vsel %vm596, %v595, %v585
    %v598 = vsel %vm596, 2, %v586
    %v599 = vmul.f32 %v567, %v254
    %601 = vrot.lane.b32.xlu0 %v599, 104
    %v602 = vpop.permute.xlu0 %601
    %v604 = vsel %vm215, %v602, 0.0
    %605 = vadd.xlane.f32.xlu0 %v604
    %v606 = vpop.xlane.xlu0 %605
    %v607 = vadd.f32 %v606, %v220
    %vm608 = vcmp.gt.f32.partialorder %v607, %v597
    %v609 = vsel %vm608, 3, %v598
    %vm610 = vcmp.eq.s32.totalorder %v609, 0
    %v611 = vsel %vm610, 1, 0
    %v612 = vcvt.s32.f32 %v611
    %614 = vset.pattern.permute.xlu0 0
    %615 = vperm.xlu0 %614, %v612
    %v616 = vpop.permute.xlu0 %615
    %v618 = vmul.f32 %v567, %v616
    %v619 = vadd.f32 %v618, 0.0
    %vm620 = vcmp.eq.s32.totalorder %v609, 1
    %v621 = vsel %vm620, 1, 0
    %v622 = vcvt.s32.f32 %v621
    %624 = vset.pattern.permute.xlu0 0
    %625 = vperm.xlu0 %624, %v622
    %v626 = vpop.permute.xlu0 %625
    %v628 = vmul.f32 %v567, %v626
    %630 = vrot.lane.b32.xlu0 %v628, 120
    %v631 = vpop.permute.xlu0 %630
    %v633 = vadd.f32 %v619, %v631
    %vm634 = vcmp.eq.s32.totalorder %v609, 2
    %v635 = vsel %vm634, 1, 0
    %v636 = vcvt.s32.f32 %v635
    %638 = vset.pattern.permute.xlu0 0
    %639 = vperm.xlu0 %638, %v636
    %v640 = vpop.permute.xlu0 %639
    %v642 = vmul.f32 %v567, %v640
    %644 = vrot.lane.b32.xlu0 %v642, 112
    %v645 = vpop.permute.xlu0 %644
    %v647 = vadd.f32 %v633, %v645
    %vm648 = vcmp.eq.s32.totalorder %v609, 3
    %v649 = vsel %vm648, 1, 0
    %v650 = vcvt.s32.f32 %v649
    %652 = vset.pattern.permute.xlu0 0
    %653 = vperm.xlu0 %652, %v650
    %v654 = vpop.permute.xlu0 %653
    %v656 = vmul.f32 %v567, %v654
    %658 = vrot.lane.b32.xlu0 %v656, 104
    %v659 = vpop.permute.xlu0 %658
    %v661 = vadd.f32 %v647, %v659
    %vm662 = vcmp.eq.s32.totalorder %v55, %v181
    %v663 = vsel %vm662, 1, 0
    %v664 = vcvt.s32.f32 %v663
    %666 = vset.pattern.permute.xlu0 0
    %667 = vperm.xlu0 %666, %v661
    %v668 = vpop.permute.xlu0 %667
    %v670 = vmul.f32 %v668, %v664
    %v671 = vadd.f32 %v670, 0.0
    %v672 = vadd.s32 %v181, 1
    %vm673 = vcmp.eq.s32.totalorder %v55, %v672
    %v674 = vsel %vm673, 1, 0
    %v675 = vcvt.s32.f32 %v674
    %676 = vset.pattern.permute.xlu0 1
    %677 = vperm.xlu0 %676, %v661
    %v678 = vpop.permute.xlu0 %677
    %v680 = vmul.f32 %v678, %v675
    %v681 = vadd.f32 %v671, %v680
    %v682 = vadd.s32 %v181, 2
    %vm683 = vcmp.eq.s32.totalorder %v55, %v682
    %v684 = vsel %vm683, 1, 0
    %v685 = vcvt.s32.f32 %v684
    %686 = vset.pattern.permute.xlu0 2
    %687 = vperm.xlu0 %686, %v661
    %v688 = vpop.permute.xlu0 %687
    %v690 = vmul.f32 %v688, %v685
    %v691 = vadd.f32 %v681, %v690
    %v692 = vadd.s32 %v181, 3
    %vm693 = vcmp.eq.s32.totalorder %v55, %v692
    %v694 = vsel %vm693, 1, 0
    %v695 = vcvt.s32.f32 %v694
    %696 = vset.pattern.permute.xlu0 3
    %697 = vperm.xlu0 %696, %v661
    %v698 = vpop.permute.xlu0 %697
    %v700 = vmul.f32 %v698, %v695
    %v701 = vadd.f32 %v691, %v700
    %v702 = vadd.s32 %v181, 4
    %vm703 = vcmp.eq.s32.totalorder %v55, %v702
    %v704 = vsel %vm703, 1, 0
    %v705 = vcvt.s32.f32 %v704
    %706 = vset.pattern.permute.xlu0 4
    %707 = vperm.xlu0 %706, %v661
    %v708 = vpop.permute.xlu0 %707
    %v710 = vmul.f32 %v708, %v705
    %v711 = vadd.f32 %v701, %v710
    %v712 = vadd.s32 %v181, 5
    %vm713 = vcmp.eq.s32.totalorder %v55, %v712
    %v714 = vsel %vm713, 1, 0
    %v715 = vcvt.s32.f32 %v714
    %716 = vset.pattern.permute.xlu0 5
    %717 = vperm.xlu0 %716, %v661
    %v718 = vpop.permute.xlu0 %717
    %v720 = vmul.f32 %v718, %v715
    %v721 = vadd.f32 %v711, %v720
    %v722 = vadd.s32 %v181, 6
    %vm723 = vcmp.eq.s32.totalorder %v55, %v722
    %v724 = vsel %vm723, 1, 0
    %v725 = vcvt.s32.f32 %v724
    %726 = vset.pattern.permute.xlu0 6
    %727 = vperm.xlu0 %726, %v661
    %v728 = vpop.permute.xlu0 %727
    %v730 = vmul.f32 %v728, %v725
    %v731 = vadd.f32 %v721, %v730
    %vm732 = vcmp.ge.s32.totalorder %v55, %v181
    %v733 = vsel %vm447, 1, 0
    %vm734 = vcmp.eq.s32.totalorder %v733, 1
    %vm735 = vmand %vm734, %vm732
    %v736 = vadd.s32 %v181, %v549
    %vm737 = vcmp.lt.s32.totalorder %v55, %v736
    %vm738 = vmand %vm735, %vm737
    %v739 = vsel %vm738, %v731, %v386
    %741 = vrot.lane.b32.xlu0 %v446, 121
    %v742 = vpop.permute.xlu0 %741
    %744 = vrot.lane.b32.xlu0 %v661, 16
    %v745 = vpop.permute.xlu0 %744
    %v747 = vsel %vm66, %v742, %v745
    %vm748 = vcmp.eq.s32.totalorder %v549, 1
    %vm749 = vmand %vm447, %vm748
    %v750 = vsel %vm749, 1, 0
    %vm751 = vcmp.eq.s32.totalorder %v750, 1
    %752 = vrot.lane.b32.xlu0 %v446, 122
    %v753 = vpop.permute.xlu0 %752
    %v755 = vsel %vm751, %v747, %v753
    %vm756 = vcmp.eq.s32.totalorder %v549, 2
    %vm757 = vmand %vm447, %vm756
    %v758 = vsel %vm757, 1, 0
    %vm759 = vcmp.eq.s32.totalorder %v758, 1
    %761 = vrot.lane.b32.xlu0 %v755, 1
    %v762 = vpop.permute.xlu0 %761
    %v764 = vsel %vm759, %v747, %v762
    %vm765 = vcmp.eq.s32.totalorder %v549, 3
    %vm766 = vmand %vm447, %vm765
    %v767 = vsel %vm766, 1, 0
    %vm768 = vcmp.eq.s32.totalorder %v767, 1
    %770 = vrot.lane.b32.xlu0 %v764, 1
    %v771 = vpop.permute.xlu0 %770
    %v773 = vsel %vm768, %v747, %v771
    %vm774 = vcmp.eq.s32.totalorder %v549, 4
    %vm775 = vmand %vm447, %vm774
    %v776 = vsel %vm775, 1, 0
    %vm777 = vcmp.eq.s32.totalorder %v776, 1
    %779 = vrot.lane.b32.xlu0 %v773, 1
    %v780 = vpop.permute.xlu0 %779
    %v782 = vsel %vm777, %v747, %v780
    %vm783 = vcmp.eq.s32.totalorder %v549, 5
    %vm784 = vmand %vm447, %vm783
    %v785 = vsel %vm784, 1, 0
    %vm786 = vcmp.eq.s32.totalorder %v785, 1
    %788 = vrot.lane.b32.xlu0 %v782, 1
    %v789 = vpop.permute.xlu0 %788
    %v791 = vsel %vm786, %v747, %v789
    %vm792 = vcmp.eq.s32.totalorder %v549, 6
    %vm793 = vmand %vm447, %vm792
    %v794 = vsel %vm793, 1, 0
    %vm795 = vcmp.eq.s32.totalorder %v794, 1
    %797 = vrot.lane.b32.xlu0 %v791, 1
    %v798 = vpop.permute.xlu0 %797
    %v800 = vsel %vm795, %v747, %v798
    %vm801 = vcmp.eq.s32.totalorder %v549, 7
    %vm802 = vmand %vm447, %vm801
    %v803 = vsel %vm802, 1, 0
    %vm804 = vcmp.eq.s32.totalorder %v803, 1
    %806 = vrot.lane.b32.xlu0 %v800, 1
    %v807 = vpop.permute.xlu0 %806
    %v809 = vsel %vm804, %v747, %v807
    %v810 = vsel %vm447, %v736, %v181
    %vm811 = vcmp.lt.s32.totalorder %v810, 8
    %v812 = vpack.c.bf16 %v809, %v809
    %814 = vrot.lane.b32.xlu0 %v812, 121
    %v815 = vpop.permute.xlu0 %814
    %v817 = vsel %vm66, %v815, 0
    %819 = vmatpush.bf16.msra.mxu0 0
    %820 = vmatpush.bf16.msra.mxu0 0
    %821 = vmatpush.bf16.msra.mxu0 0
    %822 = vmatpush.bf16.msra.mxu0 0
    %823 = vmatpush.bf16.msra.mxu0 0
    %824 = vmatpush.bf16.msra.mxu0 0
    %825 = vmatpush.bf16.msra.mxu0 0
    %826 = vmatpush.bf16.msra.mxu0 %v64
    %827 = vmatmul.bf16.gmra.mxu0 %v817
    %v828 = vpop.f32.mrf.mxu0
    %v829 = vadd.f32 %v58, %v828
    %v830 = vpop.f32.mrf.mxu0
    %831 = vdwg.mxu0
    %v832 = vmul.f32 %v829, 0.5
    %v833 = vmul.f32 %v829, 0.70710677
    %v834 = vmul.f32 %v833, %v833
    %v835 = vmin.f32 16.0, %v834
    %v836 = vmul.f32 %v835, 2.1237322e-06
    %v837 = vadd.f32 %v836, 0.00028619796
    %v838 = vmul.f32 %v835, %v837
    %v839 = vadd.f32 %v838, 0.0036580483
    %v840 = vmul.f32 %v835, %v839
    %v841 = vadd.f32 %v840, 0.05243302
    %v842 = vmul.f32 %v835, %v841
    %v843 = vadd.f32 %v842, 0.18741608
    %v844 = vmul.f32 %v835, %v843
    %v845 = vadd.f32 %v844, 1.1283791
    %v846 = vmul.f32 %v833, %v845
    %v847 = vmul.f32 %v835, 3.8918573e-05
    %v848 = vadd.f32 %v847, 0.001143296
    %v849 = vmul.f32 %v835, %v848
    %v850 = vadd.f32 %v849, 0.014752088
    %v851 = vmul.f32 %v835, %v850
    %v852 = vadd.f32 %v851, 0.112945676
    %v853 = vmul.f32 %v835, %v852
    %v854 = vadd.f32 %v853, 0.4994258
    %v855 = vmul.f32 %v835, %v854
    %v856 = vadd.f32 %v855, 1.0
    %v857 = vrcp.pop %v856
    %v858 = vmul.f32 %v856, %v857
    %v859 = vsub.f32 1.0, %v858
    %v860 = vmul.f32 %v857, %v859
    %v861 = vadd.f32 %v857, %v860
    %vm862 = vweird.f32 %v856
    %vm863 = vweird.f32 %v857
    %vm864 = vmor %vm862, %vm863
    %v865 = vsel %vm864, %v857, %v861
    %v866 = vand.u32 2147483647, %v856
    %vm867 = vcmp.eq.f32.partialorder %v866, 8.507059e+37
    %v868 = vand.u32 %v856, 2147483648
    %v869 = vor.u32 1.1754944e-38, %v868
    %v870 = vsel %vm867, %v869, %v865
    %v871 = vmul.f32 %v846, %v870
    %v872 = vmin.f32 %v871, 1.0
    %v873 = vmax.f32 %v872, -1.0
    %v874 = vadd.f32 %v873, 1.0
    %v875 = vmul.f32 %v832, %v874
    %v876 = vpack.c.bf16 %v875, %v875
    %v878 = vsel %vm136, %v876, 0
    %880 = vmatpush.bf16.msra.mxu0 0
    %881 = vmatpush.bf16.msra.mxu0 0
    %882 = vmatpush.bf16.msra.mxu0 0
    %883 = vmatpush.bf16.msra.mxu0 0
    %884 = vmatpush.bf16.msra.mxu0 0
    %885 = vmatpush.bf16.msra.mxu0 0
    %886 = vmatpush.bf16.msra.mxu0 0
    %887 = vmatpush.bf16.msra.mxu0 %v145
    %888 = vmatmul.bf16.gmra.mxu0 %v878
    %v889 = vpop.f32.mrf.mxu0
    %v890 = vadd.f32 %v129, %v889
    %v891 = vpop.f32.mrf.mxu0
    %892 = vdwg.mxu0
    %v893 = vsel %vm160, %v890, -inf
    %894 = vmax.xlane.f32.xlu0 %v893
    %v895 = vpop.xlane.xlu0 %894
    %vm896 = vcmp.eq.f32.partialorder %v890, %v895
    %v897 = vsel %vm896, %v55, 7
    %v898 = vsel %vm160, %v897, 2147483647
    %v899 = vand.u32 %v898, 65535
    %v900 = vshra.s32 %v898, 16
    %v901 = vcvt.s32.f32 %v899
    %v902 = vcvt.s32.f32 %v900
    %903 = vmin.xlane.f32.xlu0 %v902
    %v904 = vpop.xlane.xlu0 %903
    %vm905 = vcmp.eq.f32.partialorder %v902, %v904
    %v906 = vsel %vm905, %v901, inf
    %907 = vmin.xlane.f32.xlu0 %v906
    %v908 = vpop.xlane.xlu0 %907
    %v909 = vcvt.f32.s32 %v908
    %v910 = vcvt.f32.s32 %v904
    %v911 = vshll.u32 %v910, 16
    %v912 = vadd.s32 %v911, %v909
    %v913 = vadd.s32 %v912, 1
    %v914 = vpack.c.bf16 %v829, %v829
    %916 = vrot.lane.b32.xlu0 %v914, 117
    %v917 = vpop.permute.xlu0 %916
    %v919 = vsel %vm191, %v917, 0
    %921 = vmatpush.bf16.msra.mxu0 0
    %922 = vmatpush.bf16.msra.mxu0 0
    %923 = vmatpush.bf16.msra.mxu0 0
    %924 = vmatpush.bf16.msra.mxu0 0
    %925 = vmatpush.bf16.msra.mxu0 0
    %926 = vmatpush.bf16.msra.mxu0 0
    %927 = vmatpush.bf16.msra.mxu0 0
    %928 = vmatpush.bf16.msra.mxu0 %v196
    %929 = vmatmul.bf16.gmra.mxu0 %v919
    %v930 = vpop.f32.mrf.mxu0
    %v931 = vadd.f32 0.0, %v930
    %v932 = vpop.f32.mrf.mxu0
    %933 = vdwg.mxu0
    %v934 = vmul.f32 %v931, %v212
    %v935 = vsel %vm215, %v934, 0.0
    %936 = vadd.xlane.f32.xlu0 %v935
    %v937 = vpop.xlane.xlu0 %936
    %v938 = vadd.f32 %v937, %v220
    %v939 = vmul.f32 %v931, %v224
    %941 = vrot.lane.b32.xlu0 %v939, 120
    %v942 = vpop.permute.xlu0 %941
    %v944 = vsel %vm215, %v942, 0.0
    %945 = vadd.xlane.f32.xlu0 %v944
    %v946 = vpop.xlane.xlu0 %945
    %v947 = vadd.f32 %v946, %v220
    %vm948 = vcmp.gt.f32.partialorder %v947, %v938
    %v949 = vsel %vm948, %v947, %v938
    %v950 = vsel %vm948, 1, 0
    %v951 = vmul.f32 %v931, %v239
    %953 = vrot.lane.b32.xlu0 %v951, 112
    %v954 = vpop.permute.xlu0 %953
    %v956 = vsel %vm215, %v954, 0.0
    %957 = vadd.xlane.f32.xlu0 %v956
    %v958 = vpop.xlane.xlu0 %957
    %v959 = vadd.f32 %v958, %v220
    %vm960 = vcmp.gt.f32.partialorder %v959, %v949
    %v961 = vsel %vm960, %v959, %v949
    %v962 = vsel %vm960, 2, %v950
    %v963 = vmul.f32 %v931, %v254
    %965 = vrot.lane.b32.xlu0 %v963, 104
    %v966 = vpop.permute.xlu0 %965
    %v968 = vsel %vm215, %v966, 0.0
    %969 = vadd.xlane.f32.xlu0 %v968
    %v970 = vpop.xlane.xlu0 %969
    %v971 = vadd.f32 %v970, %v220
    %vm972 = vcmp.gt.f32.partialorder %v971, %v961
    %v973 = vsel %vm972, 3, %v962
    %vm974 = vcmp.eq.s32.totalorder %v973, 0
    %v975 = vsel %vm974, 1, 0
    %v976 = vcvt.s32.f32 %v975
    %978 = vset.pattern.permute.xlu0 0
    %979 = vperm.xlu0 %978, %v976
    %v980 = vpop.permute.xlu0 %979
    %v982 = vmul.f32 %v931, %v980
    %v983 = vadd.f32 %v982, 0.0
    %vm984 = vcmp.eq.s32.totalorder %v973, 1
    %v985 = vsel %vm984, 1, 0
    %v986 = vcvt.s32.f32 %v985
    %988 = vset.pattern.permute.xlu0 0
    %989 = vperm.xlu0 %988, %v986
    %v990 = vpop.permute.xlu0 %989
    %v992 = vmul.f32 %v931, %v990
    %994 = vrot.lane.b32.xlu0 %v992, 120
    %v995 = vpop.permute.xlu0 %994
    %v997 = vadd.f32 %v983, %v995
    %vm998 = vcmp.eq.s32.totalorder %v973, 2
    %v999 = vsel %vm998, 1, 0
    %v1000 = vcvt.s32.f32 %v999
    %1002 = vset.pattern.permute.xlu0 0
    %1003 = vperm.xlu0 %1002, %v1000
    %v1004 = vpop.permute.xlu0 %1003
    %v1006 = vmul.f32 %v931, %v1004
    %1008 = vrot.lane.b32.xlu0 %v1006, 112
    %v1009 = vpop.permute.xlu0 %1008
    %v1011 = vadd.f32 %v997, %v1009
    %vm1012 = vcmp.eq.s32.totalorder %v973, 3
    %v1013 = vsel %vm1012, 1, 0
    %v1014 = vcvt.s32.f32 %v1013
    %1016 = vset.pattern.permute.xlu0 0
    %1017 = vperm.xlu0 %1016, %v1014
    %v1018 = vpop.permute.xlu0 %1017
    %v1020 = vmul.f32 %v931, %v1018
    %1022 = vrot.lane.b32.xlu0 %v1020, 104
    %v1023 = vpop.permute.xlu0 %1022
    %v1025 = vadd.f32 %v1011, %v1023
    %vm1026 = vcmp.eq.s32.totalorder %v55, %v810
    %v1027 = vsel %vm1026, 1, 0
    %v1028 = vcvt.s32.f32 %v1027
    %1030 = vset.pattern.permute.xlu0 0
    %1031 = vperm.xlu0 %1030, %v1025
    %v1032 = vpop.permute.xlu0 %1031
    %v1034 = vmul.f32 %v1032, %v1028
    %v1035 = vadd.f32 %v1034, 0.0
    %v1036 = vadd.s32 %v810, 1
    %vm1037 = vcmp.eq.s32.totalorder %v55, %v1036
    %v1038 = vsel %vm1037, 1, 0
    %v1039 = vcvt.s32.f32 %v1038
    %1040 = vset.pattern.permute.xlu0 1
    %1041 = vperm.xlu0 %1040, %v1025
    %v1042 = vpop.permute.xlu0 %1041
    %v1044 = vmul.f32 %v1042, %v1039
    %v1045 = vadd.f32 %v1035, %v1044
    %v1046 = vadd.s32 %v810, 2
    %vm1047 = vcmp.eq.s32.totalorder %v55, %v1046
    %v1048 = vsel %vm1047, 1, 0
    %v1049 = vcvt.s32.f32 %v1048
    %1050 = vset.pattern.permute.xlu0 2
    %1051 = vperm.xlu0 %1050, %v1025
    %v1052 = vpop.permute.xlu0 %1051
    %v1054 = vmul.f32 %v1052, %v1049
    %v1055 = vadd.f32 %v1045, %v1054
    %v1056 = vadd.s32 %v810, 3
    %vm1057 = vcmp.eq.s32.totalorder %v55, %v1056
    %v1058 = vsel %vm1057, 1, 0
    %v1059 = vcvt.s32.f32 %v1058
    %1060 = vset.pattern.permute.xlu0 3
    %1061 = vperm.xlu0 %1060, %v1025
    %v1062 = vpop.permute.xlu0 %1061
    %v1064 = vmul.f32 %v1062, %v1059
    %v1065 = vadd.f32 %v1055, %v1064
    %v1066 = vadd.s32 %v810, 4
    %vm1067 = vcmp.eq.s32.totalorder %v55, %v1066
    %v1068 = vsel %vm1067, 1, 0
    %v1069 = vcvt.s32.f32 %v1068
    %1070 = vset.pattern.permute.xlu0 4
    %1071 = vperm.xlu0 %1070, %v1025
    %v1072 = vpop.permute.xlu0 %1071
    %v1074 = vmul.f32 %v1072, %v1069
    %v1075 = vadd.f32 %v1065, %v1074
    %v1076 = vadd.s32 %v810, 5
    %vm1077 = vcmp.eq.s32.totalorder %v55, %v1076
    %v1078 = vsel %vm1077, 1, 0
    %v1079 = vcvt.s32.f32 %v1078
    %1080 = vset.pattern.permute.xlu0 5
    %1081 = vperm.xlu0 %1080, %v1025
    %v1082 = vpop.permute.xlu0 %1081
    %v1084 = vmul.f32 %v1082, %v1079
    %v1085 = vadd.f32 %v1075, %v1084
    %v1086 = vadd.s32 %v810, 6
    %vm1087 = vcmp.eq.s32.totalorder %v55, %v1086
    %v1088 = vsel %vm1087, 1, 0
    %v1089 = vcvt.s32.f32 %v1088
    %1090 = vset.pattern.permute.xlu0 6
    %1091 = vperm.xlu0 %1090, %v1025
    %v1092 = vpop.permute.xlu0 %1091
    %v1094 = vmul.f32 %v1092, %v1089
    %v1095 = vadd.f32 %v1085, %v1094
    %vm1096 = vcmp.ge.s32.totalorder %v55, %v810
    %v1097 = vsel %vm811, 1, 0
    %vm1098 = vcmp.eq.s32.totalorder %v1097, 1
    %vm1099 = vmand %vm1098, %vm1096
    %v1100 = vadd.s32 %v810, %v913
    %vm1101 = vcmp.lt.s32.totalorder %v55, %v1100
    %vm1102 = vmand %vm1099, %vm1101
    %v1103 = vsel %vm1102, %v1095, %v739
    %1105 = vrot.lane.b32.xlu0 %v809, 121
    %v1106 = vpop.permute.xlu0 %1105
    %1108 = vrot.lane.b32.xlu0 %v1025, 16
    %v1109 = vpop.permute.xlu0 %1108
    %v1111 = vsel %vm66, %v1106, %v1109
    %vm1112 = vcmp.eq.s32.totalorder %v913, 1
    %vm1113 = vmand %vm811, %vm1112
    %v1114 = vsel %vm1113, 1, 0
    %vm1115 = vcmp.eq.s32.totalorder %v1114, 1
    %1116 = vrot.lane.b32.xlu0 %v809, 122
    %v1117 = vpop.permute.xlu0 %1116
    %v1119 = vsel %vm1115, %v1111, %v1117
    %vm1120 = vcmp.eq.s32.totalorder %v913, 2
    %vm1121 = vmand %vm811, %vm1120
    %v1122 = vsel %vm1121, 1, 0
    %vm1123 = vcmp.eq.s32.totalorder %v1122, 1
    %1125 = vrot.lane.b32.xlu0 %v1119, 1
    %v1126 = vpop.permute.xlu0 %1125
    %v1128 = vsel %vm1123, %v1111, %v1126
    %vm1129 = vcmp.eq.s32.totalorder %v913, 3
    %vm1130 = vmand %vm811, %vm1129
    %v1131 = vsel %vm1130, 1, 0
    %vm1132 = vcmp.eq.s32.totalorder %v1131, 1
    %1134 = vrot.lane.b32.xlu0 %v1128, 1
    %v1135 = vpop.permute.xlu0 %1134
    %v1137 = vsel %vm1132, %v1111, %v1135
    %vm1138 = vcmp.eq.s32.totalorder %v913, 4
    %vm1139 = vmand %vm811, %vm1138
    %v1140 = vsel %vm1139, 1, 0
    %vm1141 = vcmp.eq.s32.totalorder %v1140, 1
    %1143 = vrot.lane.b32.xlu0 %v1137, 1
    %v1144 = vpop.permute.xlu0 %1143
    %v1146 = vsel %vm1141, %v1111, %v1144
    %vm1147 = vcmp.eq.s32.totalorder %v913, 5
    %vm1148 = vmand %vm811, %vm1147
    %v1149 = vsel %vm1148, 1, 0
    %vm1150 = vcmp.eq.s32.totalorder %v1149, 1
    %1152 = vrot.lane.b32.xlu0 %v1146, 1
    %v1153 = vpop.permute.xlu0 %1152
    %v1155 = vsel %vm1150, %v1111, %v1153
    %vm1156 = vcmp.eq.s32.totalorder %v913, 6
    %vm1157 = vmand %vm811, %vm1156
    %v1158 = vsel %vm1157, 1, 0
    %vm1159 = vcmp.eq.s32.totalorder %v1158, 1
    %1161 = vrot.lane.b32.xlu0 %v1155, 1
    %v1162 = vpop.permute.xlu0 %1161
    %v1164 = vsel %vm1159, %v1111, %v1162
    %vm1165 = vcmp.eq.s32.totalorder %v913, 7
    %vm1166 = vmand %vm811, %vm1165
    %v1167 = vsel %vm1166, 1, 0
    %vm1168 = vcmp.eq.s32.totalorder %v1167, 1
    %1170 = vrot.lane.b32.xlu0 %v1164, 1
    %v1171 = vpop.permute.xlu0 %1170
    %v1173 = vsel %vm1168, %v1111, %v1171
    %v1174 = vsel %vm811, %v1100, %v810
    %vm1175 = vcmp.lt.s32.totalorder %v1174, 8
    %v1176 = vpack.c.bf16 %v1173, %v1173
    %1178 = vrot.lane.b32.xlu0 %v1176, 121
    %v1179 = vpop.permute.xlu0 %1178
    %v1181 = vsel %vm66, %v1179, 0
    %1183 = vmatpush.bf16.msra.mxu0 0
    %1184 = vmatpush.bf16.msra.mxu0 0
    %1185 = vmatpush.bf16.msra.mxu0 0
    %1186 = vmatpush.bf16.msra.mxu0 0
    %1187 = vmatpush.bf16.msra.mxu0 0
    %1188 = vmatpush.bf16.msra.mxu0 0
    %1189 = vmatpush.bf16.msra.mxu0 0
    %1190 = vmatpush.bf16.msra.mxu0 %v64
    %1191 = vmatmul.bf16.gmra.mxu0 %v1181
    %v1192 = vpop.f32.mrf.mxu0
    %v1193 = vadd.f32 %v58, %v1192
    %v1194 = vpop.f32.mrf.mxu0
    %1195 = vdwg.mxu0
    %v1196 = vmul.f32 %v1193, 0.5
    %v1197 = vmul.f32 %v1193, 0.70710677
    %v1198 = vmul.f32 %v1197, %v1197
    %v1199 = vmin.f32 16.0, %v1198
    %v1200 = vmul.f32 %v1199, 2.1237322e-06
    %v1201 = vadd.f32 %v1200, 0.00028619796
    %v1202 = vmul.f32 %v1199, %v1201
    %v1203 = vadd.f32 %v1202, 0.0036580483
    %v1204 = vmul.f32 %v1199, %v1203
    %v1205 = vadd.f32 %v1204, 0.05243302
    %v1206 = vmul.f32 %v1199, %v1205
    %v1207 = vadd.f32 %v1206, 0.18741608
    %v1208 = vmul.f32 %v1199, %v1207
    %v1209 = vadd.f32 %v1208, 1.1283791
    %v1210 = vmul.f32 %v1197, %v1209
    %v1211 = vmul.f32 %v1199, 3.8918573e-05
    %v1212 = vadd.f32 %v1211, 0.001143296
    %v1213 = vmul.f32 %v1199, %v1212
    %v1214 = vadd.f32 %v1213, 0.014752088
    %v1215 = vmul.f32 %v1199, %v1214
    %v1216 = vadd.f32 %v1215, 0.112945676
    %v1217 = vmul.f32 %v1199, %v1216
    %v1218 = vadd.f32 %v1217, 0.4994258
    %v1219 = vmul.f32 %v1199, %v1218
    %v1220 = vadd.f32 %v1219, 1.0
    %v1221 = vrcp.pop %v1220
    %v1222 = vmul.f32 %v1220, %v1221
    %v1223 = vsub.f32 1.0, %v1222
    %v1224 = vmul.f32 %v1221, %v1223
    %v1225 = vadd.f32 %v1221, %v1224
    %vm1226 = vweird.f32 %v1220
    %vm1227 = vweird.f32 %v1221
    %vm1228 = vmor %vm1226, %vm1227
    %v1229 = vsel %vm1228, %v1221, %v1225
    %v1230 = vand.u32 2147483647, %v1220
    %vm1231 = vcmp.eq.f32.partialorder %v1230, 8.507059e+37
    %v1232 = vand.u32 %v1220, 2147483648
    %v1233 = vor.u32 1.1754944e-38, %v1232
    %v1234 = vsel %vm1231, %v1233, %v1229
    %v1235 = vmul.f32 %v1210, %v1234
    %v1236 = vmin.f32 %v1235, 1.0
    %v1237 = vmax.f32 %v1236, -1.0
    %v1238 = vadd.f32 %v1237, 1.0
    %v1239 = vmul.f32 %v1196, %v1238
    %v1240 = vpack.c.bf16 %v1239, %v1239
    %v1242 = vsel %vm136, %v1240, 0
    %1244 = vmatpush.bf16.msra.mxu0 0
    %1245 = vmatpush.bf16.msra.mxu0 0
    %1246 = vmatpush.bf16.msra.mxu0 0
    %1247 = vmatpush.bf16.msra.mxu0 0
    %1248 = vmatpush.bf16.msra.mxu0 0
    %1249 = vmatpush.bf16.msra.mxu0 0
    %1250 = vmatpush.bf16.msra.mxu0 0
    %1251 = vmatpush.bf16.msra.mxu0 %v145
    %1252 = vmatmul.bf16.gmra.mxu0 %v1242
    %v1253 = vpop.f32.mrf.mxu0
    %v1254 = vadd.f32 %v129, %v1253
    %v1255 = vpop.f32.mrf.mxu0
    %1256 = vdwg.mxu0
    %v1257 = vsel %vm160, %v1254, -inf
    %1258 = vmax.xlane.f32.xlu0 %v1257
    %v1259 = vpop.xlane.xlu0 %1258
    %vm1260 = vcmp.eq.f32.partialorder %v1254, %v1259
    %v1261 = vsel %vm1260, %v55, 7
    %v1262 = vsel %vm160, %v1261, 2147483647
    %v1263 = vand.u32 %v1262, 65535
    %v1264 = vshra.s32 %v1262, 16
    %v1265 = vcvt.s32.f32 %v1263
    %v1266 = vcvt.s32.f32 %v1264
    %1267 = vmin.xlane.f32.xlu0 %v1266
    %v1268 = vpop.xlane.xlu0 %1267
    %vm1269 = vcmp.eq.f32.partialorder %v1266, %v1268
    %v1270 = vsel %vm1269, %v1265, inf
    %1271 = vmin.xlane.f32.xlu0 %v1270
    %v1272 = vpop.xlane.xlu0 %1271
    %v1273 = vcvt.f32.s32 %v1272
    %v1274 = vcvt.f32.s32 %v1268
    %v1275 = vshll.u32 %v1274, 16
    %v1276 = vadd.s32 %v1275, %v1273
    %v1277 = vadd.s32 %v1276, 1
    %v1278 = vpack.c.bf16 %v1193, %v1193
    %1280 = vrot.lane.b32.xlu0 %v1278, 117
    %v1281 = vpop.permute.xlu0 %1280
    %v1283 = vsel %vm191, %v1281, 0
    %1285 = vmatpush.bf16.msra.mxu0 0
    %1286 = vmatpush.bf16.msra.mxu0 0
    %1287 = vmatpush.bf16.msra.mxu0 0
    %1288 = vmatpush.bf16.msra.mxu0 0
    %1289 = vmatpush.bf16.msra.mxu0 0
    %1290 = vmatpush.bf16.msra.mxu0 0
    %1291 = vmatpush.bf16.msra.mxu0 0
    %1292 = vmatpush.bf16.msra.mxu0 %v196
    %1293 = vmatmul.bf16.gmra.mxu0 %v1283
    %v1294 = vpop.f32.mrf.mxu0
    %v1295 = vadd.f32 0.0, %v1294
    %v1296 = vpop.f32.mrf.mxu0
    %1297 = vdwg.mxu0
    %v1298 = vmul.f32 %v1295, %v212
    %v1299 = vsel %vm215, %v1298, 0.0
    %1300 = vadd.xlane.f32.xlu0 %v1299
    %v1301 = vpop.xlane.xlu0 %1300
    %v1302 = vadd.f32 %v1301, %v220
    %v1303 = vmul.f32 %v1295, %v224
    %1305 = vrot.lane.b32.xlu0 %v1303, 120
    %v1306 = vpop.permute.xlu0 %1305
    %v1308 = vsel %vm215, %v1306, 0.0
    %1309 = vadd.xlane.f32.xlu0 %v1308
    %v1310 = vpop.xlane.xlu0 %1309
    %v1311 = vadd.f32 %v1310, %v220
    %vm1312 = vcmp.gt.f32.partialorder %v1311, %v1302
    %v1313 = vsel %vm1312, %v1311, %v1302
    %v1314 = vsel %vm1312, 1, 0
    %v1315 = vmul.f32 %v1295, %v239
    %1317 = vrot.lane.b32.xlu0 %v1315, 112
    %v1318 = vpop.permute.xlu0 %1317
    %v1320 = vsel %vm215, %v1318, 0.0
    %1321 = vadd.xlane.f32.xlu0 %v1320
    %v1322 = vpop.xlane.xlu0 %1321
    %v1323 = vadd.f32 %v1322, %v220
    %vm1324 = vcmp.gt.f32.partialorder %v1323, %v1313
    %v1325 = vsel %vm1324, %v1323, %v1313
    %v1326 = vsel %vm1324, 2, %v1314
    %v1327 = vmul.f32 %v1295, %v254
    %1329 = vrot.lane.b32.xlu0 %v1327, 104
    %v1330 = vpop.permute.xlu0 %1329
    %v1332 = vsel %vm215, %v1330, 0.0
    %1333 = vadd.xlane.f32.xlu0 %v1332
    %v1334 = vpop.xlane.xlu0 %1333
    %v1335 = vadd.f32 %v1334, %v220
    %vm1336 = vcmp.gt.f32.partialorder %v1335, %v1325
    %v1337 = vsel %vm1336, 3, %v1326
    %vm1338 = vcmp.eq.s32.totalorder %v1337, 0
    %v1339 = vsel %vm1338, 1, 0
    %v1340 = vcvt.s32.f32 %v1339
    %1342 = vset.pattern.permute.xlu0 0
    %1343 = vperm.xlu0 %1342, %v1340
    %v1344 = vpop.permute.xlu0 %1343
    %v1346 = vmul.f32 %v1295, %v1344
    %v1347 = vadd.f32 %v1346, 0.0
    %vm1348 = vcmp.eq.s32.totalorder %v1337, 1
    %v1349 = vsel %vm1348, 1, 0
    %v1350 = vcvt.s32.f32 %v1349
    %1352 = vset.pattern.permute.xlu0 0
    %1353 = vperm.xlu0 %1352, %v1350
    %v1354 = vpop.permute.xlu0 %1353
    %v1356 = vmul.f32 %v1295, %v1354
    %1358 = vrot.lane.b32.xlu0 %v1356, 120
    %v1359 = vpop.permute.xlu0 %1358
    %v1361 = vadd.f32 %v1347, %v1359
    %vm1362 = vcmp.eq.s32.totalorder %v1337, 2
    %v1363 = vsel %vm1362, 1, 0
    %v1364 = vcvt.s32.f32 %v1363
    %1366 = vset.pattern.permute.xlu0 0
    %1367 = vperm.xlu0 %1366, %v1364
    %v1368 = vpop.permute.xlu0 %1367
    %v1370 = vmul.f32 %v1295, %v1368
    %1372 = vrot.lane.b32.xlu0 %v1370, 112
    %v1373 = vpop.permute.xlu0 %1372
    %v1375 = vadd.f32 %v1361, %v1373
    %vm1376 = vcmp.eq.s32.totalorder %v1337, 3
    %v1377 = vsel %vm1376, 1, 0
    %v1378 = vcvt.s32.f32 %v1377
    %1380 = vset.pattern.permute.xlu0 0
    %1381 = vperm.xlu0 %1380, %v1378
    %v1382 = vpop.permute.xlu0 %1381
    %v1384 = vmul.f32 %v1295, %v1382
    %1386 = vrot.lane.b32.xlu0 %v1384, 104
    %v1387 = vpop.permute.xlu0 %1386
    %v1389 = vadd.f32 %v1375, %v1387
    %vm1390 = vcmp.eq.s32.totalorder %v55, %v1174
    %v1391 = vsel %vm1390, 1, 0
    %v1392 = vcvt.s32.f32 %v1391
    %1394 = vset.pattern.permute.xlu0 0
    %1395 = vperm.xlu0 %1394, %v1389
    %v1396 = vpop.permute.xlu0 %1395
    %v1398 = vmul.f32 %v1396, %v1392
    %v1399 = vadd.f32 %v1398, 0.0
    %v1400 = vadd.s32 %v1174, 1
    %vm1401 = vcmp.eq.s32.totalorder %v55, %v1400
    %v1402 = vsel %vm1401, 1, 0
    %v1403 = vcvt.s32.f32 %v1402
    %1404 = vset.pattern.permute.xlu0 1
    %1405 = vperm.xlu0 %1404, %v1389
    %v1406 = vpop.permute.xlu0 %1405
    %v1408 = vmul.f32 %v1406, %v1403
    %v1409 = vadd.f32 %v1399, %v1408
    %v1410 = vadd.s32 %v1174, 2
    %vm1411 = vcmp.eq.s32.totalorder %v55, %v1410
    %v1412 = vsel %vm1411, 1, 0
    %v1413 = vcvt.s32.f32 %v1412
    %1414 = vset.pattern.permute.xlu0 2
    %1415 = vperm.xlu0 %1414, %v1389
    %v1416 = vpop.permute.xlu0 %1415
    %v1418 = vmul.f32 %v1416, %v1413
    %v1419 = vadd.f32 %v1409, %v1418
    %v1420 = vadd.s32 %v1174, 3
    %vm1421 = vcmp.eq.s32.totalorder %v55, %v1420
    %v1422 = vsel %vm1421, 1, 0
    %v1423 = vcvt.s32.f32 %v1422
    %1424 = vset.pattern.permute.xlu0 3
    %1425 = vperm.xlu0 %1424, %v1389
    %v1426 = vpop.permute.xlu0 %1425
    %v1428 = vmul.f32 %v1426, %v1423
    %v1429 = vadd.f32 %v1419, %v1428
    %v1430 = vadd.s32 %v1174, 4
    %vm1431 = vcmp.eq.s32.totalorder %v55, %v1430
    %v1432 = vsel %vm1431, 1, 0
    %v1433 = vcvt.s32.f32 %v1432
    %1434 = vset.pattern.permute.xlu0 4
    %1435 = vperm.xlu0 %1434, %v1389
    %v1436 = vpop.permute.xlu0 %1435
    %v1438 = vmul.f32 %v1436, %v1433
    %v1439 = vadd.f32 %v1429, %v1438
    %v1440 = vadd.s32 %v1174, 5
    %vm1441 = vcmp.eq.s32.totalorder %v55, %v1440
    %v1442 = vsel %vm1441, 1, 0
    %v1443 = vcvt.s32.f32 %v1442
    %1444 = vset.pattern.permute.xlu0 5
    %1445 = vperm.xlu0 %1444, %v1389
    %v1446 = vpop.permute.xlu0 %1445
    %v1448 = vmul.f32 %v1446, %v1443
    %v1449 = vadd.f32 %v1439, %v1448
    %v1450 = vadd.s32 %v1174, 6
    %vm1451 = vcmp.eq.s32.totalorder %v55, %v1450
    %v1452 = vsel %vm1451, 1, 0
    %v1453 = vcvt.s32.f32 %v1452
    %1454 = vset.pattern.permute.xlu0 6
    %1455 = vperm.xlu0 %1454, %v1389
    %v1456 = vpop.permute.xlu0 %1455
    %v1458 = vmul.f32 %v1456, %v1453
    %v1459 = vadd.f32 %v1449, %v1458
    %vm1460 = vcmp.ge.s32.totalorder %v55, %v1174
    %v1461 = vsel %vm1175, 1, 0
    %vm1462 = vcmp.eq.s32.totalorder %v1461, 1
    %vm1463 = vmand %vm1462, %vm1460
    %v1464 = vadd.s32 %v1174, %v1277
    %vm1465 = vcmp.lt.s32.totalorder %v55, %v1464
    %vm1466 = vmand %vm1463, %vm1465
    %v1467 = vsel %vm1466, %v1459, %v1103
    %1469 = vrot.lane.b32.xlu0 %v1173, 121
    %v1470 = vpop.permute.xlu0 %1469
    %1472 = vrot.lane.b32.xlu0 %v1389, 16
    %v1473 = vpop.permute.xlu0 %1472
    %v1475 = vsel %vm66, %v1470, %v1473
    %vm1476 = vcmp.eq.s32.totalorder %v1277, 1
    %vm1477 = vmand %vm1175, %vm1476
    %v1478 = vsel %vm1477, 1, 0
    %vm1479 = vcmp.eq.s32.totalorder %v1478, 1
    %1480 = vrot.lane.b32.xlu0 %v1173, 122
    %v1481 = vpop.permute.xlu0 %1480
    %v1483 = vsel %vm1479, %v1475, %v1481
    %vm1484 = vcmp.eq.s32.totalorder %v1277, 2
    %vm1485 = vmand %vm1175, %vm1484
    %v1486 = vsel %vm1485, 1, 0
    %vm1487 = vcmp.eq.s32.totalorder %v1486, 1
    %1489 = vrot.lane.b32.xlu0 %v1483, 1
    %v1490 = vpop.permute.xlu0 %1489
    %v1492 = vsel %vm1487, %v1475, %v1490
    %vm1493 = vcmp.eq.s32.totalorder %v1277, 3
    %vm1494 = vmand %vm1175, %vm1493
    %v1495 = vsel %vm1494, 1, 0
    %vm1496 = vcmp.eq.s32.totalorder %v1495, 1
    %1498 = vrot.lane.b32.xlu0 %v1492, 1
    %v1499 = vpop.permute.xlu0 %1498
    %v1501 = vsel %vm1496, %v1475, %v1499
    %vm1502 = vcmp.eq.s32.totalorder %v1277, 4
    %vm1503 = vmand %vm1175, %vm1502
    %v1504 = vsel %vm1503, 1, 0
    %vm1505 = vcmp.eq.s32.totalorder %v1504, 1
    %1507 = vrot.lane.b32.xlu0 %v1501, 1
    %v1508 = vpop.permute.xlu0 %1507
    %v1510 = vsel %vm1505, %v1475, %v1508
    %vm1511 = vcmp.eq.s32.totalorder %v1277, 5
    %vm1512 = vmand %vm1175, %vm1511
    %v1513 = vsel %vm1512, 1, 0
    %vm1514 = vcmp.eq.s32.totalorder %v1513, 1
    %1516 = vrot.lane.b32.xlu0 %v1510, 1
    %v1517 = vpop.permute.xlu0 %1516
    %v1519 = vsel %vm1514, %v1475, %v1517
    %vm1520 = vcmp.eq.s32.totalorder %v1277, 6
    %vm1521 = vmand %vm1175, %vm1520
    %v1522 = vsel %vm1521, 1, 0
    %vm1523 = vcmp.eq.s32.totalorder %v1522, 1
    %1525 = vrot.lane.b32.xlu0 %v1519, 1
    %v1526 = vpop.permute.xlu0 %1525
    %v1528 = vsel %vm1523, %v1475, %v1526
    %vm1529 = vcmp.eq.s32.totalorder %v1277, 7
    %vm1530 = vmand %vm1175, %vm1529
    %v1531 = vsel %vm1530, 1, 0
    %vm1532 = vcmp.eq.s32.totalorder %v1531, 1
    %1534 = vrot.lane.b32.xlu0 %v1528, 1
    %v1535 = vpop.permute.xlu0 %1534
    %v1537 = vsel %vm1532, %v1475, %v1535
    %v1538 = vsel %vm1175, %v1464, %v1174
    %vm1539 = vcmp.lt.s32.totalorder %v1538, 8
    %v1540 = vpack.c.bf16 %v1537, %v1537
    %1542 = vrot.lane.b32.xlu0 %v1540, 121
    %v1543 = vpop.permute.xlu0 %1542
    %v1545 = vsel %vm66, %v1543, 0
    %1547 = vmatpush.bf16.msra.mxu0 0
    %1548 = vmatpush.bf16.msra.mxu0 0
    %1549 = vmatpush.bf16.msra.mxu0 0
    %1550 = vmatpush.bf16.msra.mxu0 0
    %1551 = vmatpush.bf16.msra.mxu0 0
    %1552 = vmatpush.bf16.msra.mxu0 0
    %1553 = vmatpush.bf16.msra.mxu0 0
    %1554 = vmatpush.bf16.msra.mxu0 %v64
    %1555 = vmatmul.bf16.gmra.mxu0 %v1545
    %v1556 = vpop.f32.mrf.mxu0
    %v1557 = vadd.f32 %v58, %v1556
    %v1558 = vpop.f32.mrf.mxu0
    %1559 = vdwg.mxu0
    %v1560 = vmul.f32 %v1557, 0.5
    %v1561 = vmul.f32 %v1557, 0.70710677
    %v1562 = vmul.f32 %v1561, %v1561
    %v1563 = vmin.f32 16.0, %v1562
    %v1564 = vmul.f32 %v1563, 2.1237322e-06
    %v1565 = vadd.f32 %v1564, 0.00028619796
    %v1566 = vmul.f32 %v1563, %v1565
    %v1567 = vadd.f32 %v1566, 0.0036580483
    %v1568 = vmul.f32 %v1563, %v1567
    %v1569 = vadd.f32 %v1568, 0.05243302
    %v1570 = vmul.f32 %v1563, %v1569
    %v1571 = vadd.f32 %v1570, 0.18741608
    %v1572 = vmul.f32 %v1563, %v1571
    %v1573 = vadd.f32 %v1572, 1.1283791
    %v1574 = vmul.f32 %v1561, %v1573
    %v1575 = vmul.f32 %v1563, 3.8918573e-05
    %v1576 = vadd.f32 %v1575, 0.001143296
    %v1577 = vmul.f32 %v1563, %v1576
    %v1578 = vadd.f32 %v1577, 0.014752088
    %v1579 = vmul.f32 %v1563, %v1578
    %v1580 = vadd.f32 %v1579, 0.112945676
    %v1581 = vmul.f32 %v1563, %v1580
    %v1582 = vadd.f32 %v1581, 0.4994258
    %v1583 = vmul.f32 %v1563, %v1582
    %v1584 = vadd.f32 %v1583, 1.0
    %v1585 = vrcp.pop %v1584
    %v1586 = vmul.f32 %v1584, %v1585
    %v1587 = vsub.f32 1.0, %v1586
    %v1588 = vmul.f32 %v1585, %v1587
    %v1589 = vadd.f32 %v1585, %v1588
    %vm1590 = vweird.f32 %v1584
    %vm1591 = vweird.f32 %v1585
    %vm1592 = vmor %vm1590, %vm1591
    %v1593 = vsel %vm1592, %v1585, %v1589
    %v1594 = vand.u32 2147483647, %v1584
    %vm1595 = vcmp.eq.f32.partialorder %v1594, 8.507059e+37
    %v1596 = vand.u32 %v1584, 2147483648
    %v1597 = vor.u32 1.1754944e-38, %v1596
    %v1598 = vsel %vm1595, %v1597, %v1593
    %v1599 = vmul.f32 %v1574, %v1598
    %v1600 = vmin.f32 %v1599, 1.0
    %v1601 = vmax.f32 %v1600, -1.0
    %v1602 = vadd.f32 %v1601, 1.0
    %v1603 = vmul.f32 %v1560, %v1602
    %v1604 = vpack.c.bf16 %v1603, %v1603
    %v1606 = vsel %vm136, %v1604, 0
    %1608 = vmatpush.bf16.msra.mxu0 0
    %1609 = vmatpush.bf16.msra.mxu0 0
    %1610 = vmatpush.bf16.msra.mxu0 0
    %1611 = vmatpush.bf16.msra.mxu0 0
    %1612 = vmatpush.bf16.msra.mxu0 0
    %1613 = vmatpush.bf16.msra.mxu0 0
    %1614 = vmatpush.bf16.msra.mxu0 0
    %1615 = vmatpush.bf16.msra.mxu0 %v145
    %1616 = vmatmul.bf16.gmra.mxu0 %v1606
    %v1617 = vpop.f32.mrf.mxu0
    %v1618 = vadd.f32 %v129, %v1617
    %v1619 = vpop.f32.mrf.mxu0
    %1620 = vdwg.mxu0
    %v1621 = vsel %vm160, %v1618, -inf
    %1622 = vmax.xlane.f32.xlu0 %v1621
    %v1623 = vpop.xlane.xlu0 %1622
    %vm1624 = vcmp.eq.f32.partialorder %v1618, %v1623
    %v1625 = vsel %vm1624, %v55, 7
    %v1626 = vsel %vm160, %v1625, 2147483647
    %v1627 = vand.u32 %v1626, 65535
    %v1628 = vshra.s32 %v1626, 16
    %v1629 = vcvt.s32.f32 %v1627
    %v1630 = vcvt.s32.f32 %v1628
    %1631 = vmin.xlane.f32.xlu0 %v1630
    %v1632 = vpop.xlane.xlu0 %1631
    %vm1633 = vcmp.eq.f32.partialorder %v1630, %v1632
    %v1634 = vsel %vm1633, %v1629, inf
    %1635 = vmin.xlane.f32.xlu0 %v1634
    %v1636 = vpop.xlane.xlu0 %1635
    %v1637 = vcvt.f32.s32 %v1636
    %v1638 = vcvt.f32.s32 %v1632
    %v1639 = vshll.u32 %v1638, 16
    %v1640 = vadd.s32 %v1639, %v1637
    %v1641 = vadd.s32 %v1640, 1
    %v1642 = vpack.c.bf16 %v1557, %v1557
    %1644 = vrot.lane.b32.xlu0 %v1642, 117
    %v1645 = vpop.permute.xlu0 %1644
    %v1647 = vsel %vm191, %v1645, 0
    %1649 = vmatpush.bf16.msra.mxu0 0
    %1650 = vmatpush.bf16.msra.mxu0 0
    %1651 = vmatpush.bf16.msra.mxu0 0
    %1652 = vmatpush.bf16.msra.mxu0 0
    %1653 = vmatpush.bf16.msra.mxu0 0
    %1654 = vmatpush.bf16.msra.mxu0 0
    %1655 = vmatpush.bf16.msra.mxu0 0
    %1656 = vmatpush.bf16.msra.mxu0 %v196
    %1657 = vmatmul.bf16.gmra.mxu0 %v1647
    %v1658 = vpop.f32.mrf.mxu0
    %v1659 = vadd.f32 0.0, %v1658
    %v1660 = vpop.f32.mrf.mxu0
    %1661 = vdwg.mxu0
    %v1662 = vmul.f32 %v1659, %v212
    %v1663 = vsel %vm215, %v1662, 0.0
    %1664 = vadd.xlane.f32.xlu0 %v1663
    %v1665 = vpop.xlane.xlu0 %1664
    %v1666 = vadd.f32 %v1665, %v220
    %v1667 = vmul.f32 %v1659, %v224
    %1669 = vrot.lane.b32.xlu0 %v1667, 120
    %v1670 = vpop.permute.xlu0 %1669
    %v1672 = vsel %vm215, %v1670, 0.0
    %1673 = vadd.xlane.f32.xlu0 %v1672
    %v1674 = vpop.xlane.xlu0 %1673
    %v1675 = vadd.f32 %v1674, %v220
    %vm1676 = vcmp.gt.f32.partialorder %v1675, %v1666
    %v1677 = vsel %vm1676, %v1675, %v1666
    %v1678 = vsel %vm1676, 1, 0
    %v1679 = vmul.f32 %v1659, %v239
    %1681 = vrot.lane.b32.xlu0 %v1679, 112
    %v1682 = vpop.permute.xlu0 %1681
    %v1684 = vsel %vm215, %v1682, 0.0
    %1685 = vadd.xlane.f32.xlu0 %v1684
    %v1686 = vpop.xlane.xlu0 %1685
    %v1687 = vadd.f32 %v1686, %v220
    %vm1688 = vcmp.gt.f32.partialorder %v1687, %v1677
    %v1689 = vsel %vm1688, %v1687, %v1677
    %v1690 = vsel %vm1688, 2, %v1678
    %v1691 = vmul.f32 %v1659, %v254
    %1693 = vrot.lane.b32.xlu0 %v1691, 104
    %v1694 = vpop.permute.xlu0 %1693
    %v1696 = vsel %vm215, %v1694, 0.0
    %1697 = vadd.xlane.f32.xlu0 %v1696
    %v1698 = vpop.xlane.xlu0 %1697
    %v1699 = vadd.f32 %v1698, %v220
    %vm1700 = vcmp.gt.f32.partialorder %v1699, %v1689
    %v1701 = vsel %vm1700, 3, %v1690
    %vm1702 = vcmp.eq.s32.totalorder %v1701, 0
    %v1703 = vsel %vm1702, 1, 0
    %v1704 = vcvt.s32.f32 %v1703
    %1706 = vset.pattern.permute.xlu0 0
    %1707 = vperm.xlu0 %1706, %v1704
    %v1708 = vpop.permute.xlu0 %1707
    %v1710 = vmul.f32 %v1659, %v1708
    %v1711 = vadd.f32 %v1710, 0.0
    %vm1712 = vcmp.eq.s32.totalorder %v1701, 1
    %v1713 = vsel %vm1712, 1, 0
    %v1714 = vcvt.s32.f32 %v1713
    %1716 = vset.pattern.permute.xlu0 0
    %1717 = vperm.xlu0 %1716, %v1714
    %v1718 = vpop.permute.xlu0 %1717
    %v1720 = vmul.f32 %v1659, %v1718
    %1722 = vrot.lane.b32.xlu0 %v1720, 120
    %v1723 = vpop.permute.xlu0 %1722
    %v1725 = vadd.f32 %v1711, %v1723
    %vm1726 = vcmp.eq.s32.totalorder %v1701, 2
    %v1727 = vsel %vm1726, 1, 0
    %v1728 = vcvt.s32.f32 %v1727
    %1730 = vset.pattern.permute.xlu0 0
    %1731 = vperm.xlu0 %1730, %v1728
    %v1732 = vpop.permute.xlu0 %1731
    %v1734 = vmul.f32 %v1659, %v1732
    %1736 = vrot.lane.b32.xlu0 %v1734, 112
    %v1737 = vpop.permute.xlu0 %1736
    %v1739 = vadd.f32 %v1725, %v1737
    %vm1740 = vcmp.eq.s32.totalorder %v1701, 3
    %v1741 = vsel %vm1740, 1, 0
    %v1742 = vcvt.s32.f32 %v1741
    %1744 = vset.pattern.permute.xlu0 0
    %1745 = vperm.xlu0 %1744, %v1742
    %v1746 = vpop.permute.xlu0 %1745
    %v1748 = vmul.f32 %v1659, %v1746
    %1750 = vrot.lane.b32.xlu0 %v1748, 104
    %v1751 = vpop.permute.xlu0 %1750
    %v1753 = vadd.f32 %v1739, %v1751
    %vm1754 = vcmp.eq.s32.totalorder %v55, %v1538
    %v1755 = vsel %vm1754, 1, 0
    %v1756 = vcvt.s32.f32 %v1755
    %1758 = vset.pattern.permute.xlu0 0
    %1759 = vperm.xlu0 %1758, %v1753
    %v1760 = vpop.permute.xlu0 %1759
    %v1762 = vmul.f32 %v1760, %v1756
    %v1763 = vadd.f32 %v1762, 0.0
    %v1764 = vadd.s32 %v1538, 1
    %vm1765 = vcmp.eq.s32.totalorder %v55, %v1764
    %v1766 = vsel %vm1765, 1, 0
    %v1767 = vcvt.s32.f32 %v1766
    %1768 = vset.pattern.permute.xlu0 1
    %1769 = vperm.xlu0 %1768, %v1753
    %v1770 = vpop.permute.xlu0 %1769
    %v1772 = vmul.f32 %v1770, %v1767
    %v1773 = vadd.f32 %v1763, %v1772
    %v1774 = vadd.s32 %v1538, 2
    %vm1775 = vcmp.eq.s32.totalorder %v55, %v1774
    %v1776 = vsel %vm1775, 1, 0
    %v1777 = vcvt.s32.f32 %v1776
    %1778 = vset.pattern.permute.xlu0 2
    %1779 = vperm.xlu0 %1778, %v1753
    %v1780 = vpop.permute.xlu0 %1779
    %v1782 = vmul.f32 %v1780, %v1777
    %v1783 = vadd.f32 %v1773, %v1782
    %v1784 = vadd.s32 %v1538, 3
    %vm1785 = vcmp.eq.s32.totalorder %v55, %v1784
    %v1786 = vsel %vm1785, 1, 0
    %v1787 = vcvt.s32.f32 %v1786
    %1788 = vset.pattern.permute.xlu0 3
    %1789 = vperm.xlu0 %1788, %v1753
    %v1790 = vpop.permute.xlu0 %1789
    %v1792 = vmul.f32 %v1790, %v1787
    %v1793 = vadd.f32 %v1783, %v1792
    %v1794 = vadd.s32 %v1538, 4
    %vm1795 = vcmp.eq.s32.totalorder %v55, %v1794
    %v1796 = vsel %vm1795, 1, 0
    %v1797 = vcvt.s32.f32 %v1796
    %1798 = vset.pattern.permute.xlu0 4
    %1799 = vperm.xlu0 %1798, %v1753
    %v1800 = vpop.permute.xlu0 %1799
    %v1802 = vmul.f32 %v1800, %v1797
    %v1803 = vadd.f32 %v1793, %v1802
    %v1804 = vadd.s32 %v1538, 5
    %vm1805 = vcmp.eq.s32.totalorder %v55, %v1804
    %v1806 = vsel %vm1805, 1, 0
    %v1807 = vcvt.s32.f32 %v1806
    %1808 = vset.pattern.permute.xlu0 5
    %1809 = vperm.xlu0 %1808, %v1753
    %v1810 = vpop.permute.xlu0 %1809
    %v1812 = vmul.f32 %v1810, %v1807
    %v1813 = vadd.f32 %v1803, %v1812
    %v1814 = vadd.s32 %v1538, 6
    %vm1815 = vcmp.eq.s32.totalorder %v55, %v1814
    %v1816 = vsel %vm1815, 1, 0
    %v1817 = vcvt.s32.f32 %v1816
    %1818 = vset.pattern.permute.xlu0 6
    %1819 = vperm.xlu0 %1818, %v1753
    %v1820 = vpop.permute.xlu0 %1819
    %v1822 = vmul.f32 %v1820, %v1817
    %v1823 = vadd.f32 %v1813, %v1822
    %vm1824 = vcmp.ge.s32.totalorder %v55, %v1538
    %v1825 = vsel %vm1539, 1, 0
    %vm1826 = vcmp.eq.s32.totalorder %v1825, 1
    %vm1827 = vmand %vm1826, %vm1824
    %v1828 = vadd.s32 %v1538, %v1641
    %vm1829 = vcmp.lt.s32.totalorder %v55, %v1828
    %vm1830 = vmand %vm1827, %vm1829
    %v1831 = vsel %vm1830, %v1823, %v1467
    %1833 = vrot.lane.b32.xlu0 %v1537, 121
    %v1834 = vpop.permute.xlu0 %1833
    %1836 = vrot.lane.b32.xlu0 %v1753, 16
    %v1837 = vpop.permute.xlu0 %1836
    %v1839 = vsel %vm66, %v1834, %v1837
    %vm1840 = vcmp.eq.s32.totalorder %v1641, 1
    %vm1841 = vmand %vm1539, %vm1840
    %v1842 = vsel %vm1841, 1, 0
    %vm1843 = vcmp.eq.s32.totalorder %v1842, 1
    %1844 = vrot.lane.b32.xlu0 %v1537, 122
    %v1845 = vpop.permute.xlu0 %1844
    %v1847 = vsel %vm1843, %v1839, %v1845
    %vm1848 = vcmp.eq.s32.totalorder %v1641, 2
    %vm1849 = vmand %vm1539, %vm1848
    %v1850 = vsel %vm1849, 1, 0
    %vm1851 = vcmp.eq.s32.totalorder %v1850, 1
    %1853 = vrot.lane.b32.xlu0 %v1847, 1
    %v1854 = vpop.permute.xlu0 %1853
    %v1856 = vsel %vm1851, %v1839, %v1854
    %vm1857 = vcmp.eq.s32.totalorder %v1641, 3
    %vm1858 = vmand %vm1539, %vm1857
    %v1859 = vsel %vm1858, 1, 0
    %vm1860 = vcmp.eq.s32.totalorder %v1859, 1
    %1862 = vrot.lane.b32.xlu0 %v1856, 1
    %v1863 = vpop.permute.xlu0 %1862
    %v1865 = vsel %vm1860, %v1839, %v1863
    %vm1866 = vcmp.eq.s32.totalorder %v1641, 4
    %vm1867 = vmand %vm1539, %vm1866
    %v1868 = vsel %vm1867, 1, 0
    %vm1869 = vcmp.eq.s32.totalorder %v1868, 1
    %1871 = vrot.lane.b32.xlu0 %v1865, 1
    %v1872 = vpop.permute.xlu0 %1871
    %v1874 = vsel %vm1869, %v1839, %v1872
    %vm1875 = vcmp.eq.s32.totalorder %v1641, 5
    %vm1876 = vmand %vm1539, %vm1875
    %v1877 = vsel %vm1876, 1, 0
    %vm1878 = vcmp.eq.s32.totalorder %v1877, 1
    %1880 = vrot.lane.b32.xlu0 %v1874, 1
    %v1881 = vpop.permute.xlu0 %1880
    %v1883 = vsel %vm1878, %v1839, %v1881
    %vm1884 = vcmp.eq.s32.totalorder %v1641, 6
    %vm1885 = vmand %vm1539, %vm1884
    %v1886 = vsel %vm1885, 1, 0
    %vm1887 = vcmp.eq.s32.totalorder %v1886, 1
    %1889 = vrot.lane.b32.xlu0 %v1883, 1
    %v1890 = vpop.permute.xlu0 %1889
    %v1892 = vsel %vm1887, %v1839, %v1890
    %vm1893 = vcmp.eq.s32.totalorder %v1641, 7
    %vm1894 = vmand %vm1539, %vm1893
    %v1895 = vsel %vm1894, 1, 0
    %vm1896 = vcmp.eq.s32.totalorder %v1895, 1
    %1898 = vrot.lane.b32.xlu0 %v1892, 1
    %v1899 = vpop.permute.xlu0 %1898
    %v1901 = vsel %vm1896, %v1839, %v1899
    %v1902 = vsel %vm1539, %v1828, %v1538
    %vm1903 = vcmp.lt.s32.totalorder %v1902, 8
    %v1904 = vpack.c.bf16 %v1901, %v1901
    %1906 = vrot.lane.b32.xlu0 %v1904, 121
    %v1907 = vpop.permute.xlu0 %1906
    %v1909 = vsel %vm66, %v1907, 0
    %1911 = vmatpush.bf16.msra.mxu0 0
    %1912 = vmatpush.bf16.msra.mxu0 0
    %1913 = vmatpush.bf16.msra.mxu0 0
    %1914 = vmatpush.bf16.msra.mxu0 0
    %1915 = vmatpush.bf16.msra.mxu0 0
    %1916 = vmatpush.bf16.msra.mxu0 0
    %1917 = vmatpush.bf16.msra.mxu0 0
    %1918 = vmatpush.bf16.msra.mxu0 %v64
    %1919 = vmatmul.bf16.gmra.mxu0 %v1909
    %v1920 = vpop.f32.mrf.mxu0
    %v1921 = vadd.f32 %v58, %v1920
    %v1922 = vpop.f32.mrf.mxu0
    %1923 = vdwg.mxu0
    %v1924 = vmul.f32 %v1921, 0.5
    %v1925 = vmul.f32 %v1921, 0.70710677
    %v1926 = vmul.f32 %v1925, %v1925
    %v1927 = vmin.f32 16.0, %v1926
    %v1928 = vmul.f32 %v1927, 2.1237322e-06
    %v1929 = vadd.f32 %v1928, 0.00028619796
    %v1930 = vmul.f32 %v1927, %v1929
    %v1931 = vadd.f32 %v1930, 0.0036580483
    %v1932 = vmul.f32 %v1927, %v1931
    %v1933 = vadd.f32 %v1932, 0.05243302
    %v1934 = vmul.f32 %v1927, %v1933
    %v1935 = vadd.f32 %v1934, 0.18741608
    %v1936 = vmul.f32 %v1927, %v1935
    %v1937 = vadd.f32 %v1936, 1.1283791
    %v1938 = vmul.f32 %v1925, %v1937
    %v1939 = vmul.f32 %v1927, 3.8918573e-05
    %v1940 = vadd.f32 %v1939, 0.001143296
    %v1941 = vmul.f32 %v1927, %v1940
    %v1942 = vadd.f32 %v1941, 0.014752088
    %v1943 = vmul.f32 %v1927, %v1942
    %v1944 = vadd.f32 %v1943, 0.112945676
    %v1945 = vmul.f32 %v1927, %v1944
    %v1946 = vadd.f32 %v1945, 0.4994258
    %v1947 = vmul.f32 %v1927, %v1946
    %v1948 = vadd.f32 %v1947, 1.0
    %v1949 = vrcp.pop %v1948
    %v1950 = vmul.f32 %v1948, %v1949
    %v1951 = vsub.f32 1.0, %v1950
    %v1952 = vmul.f32 %v1949, %v1951
    %v1953 = vadd.f32 %v1949, %v1952
    %vm1954 = vweird.f32 %v1948
    %vm1955 = vweird.f32 %v1949
    %vm1956 = vmor %vm1954, %vm1955
    %v1957 = vsel %vm1956, %v1949, %v1953
    %v1958 = vand.u32 2147483647, %v1948
    %vm1959 = vcmp.eq.f32.partialorder %v1958, 8.507059e+37
    %v1960 = vand.u32 %v1948, 2147483648
    %v1961 = vor.u32 1.1754944e-38, %v1960
    %v1962 = vsel %vm1959, %v1961, %v1957
    %v1963 = vmul.f32 %v1938, %v1962
    %v1964 = vmin.f32 %v1963, 1.0
    %v1965 = vmax.f32 %v1964, -1.0
    %v1966 = vadd.f32 %v1965, 1.0
    %v1967 = vmul.f32 %v1924, %v1966
    %v1968 = vpack.c.bf16 %v1967, %v1967
    %v1970 = vsel %vm136, %v1968, 0
    %1972 = vmatpush.bf16.msra.mxu0 0
    %1973 = vmatpush.bf16.msra.mxu0 0
    %1974 = vmatpush.bf16.msra.mxu0 0
    %1975 = vmatpush.bf16.msra.mxu0 0
    %1976 = vmatpush.bf16.msra.mxu0 0
    %1977 = vmatpush.bf16.msra.mxu0 0
    %1978 = vmatpush.bf16.msra.mxu0 0
    %1979 = vmatpush.bf16.msra.mxu0 %v145
    %1980 = vmatmul.bf16.gmra.mxu0 %v1970
    %v1981 = vpop.f32.mrf.mxu0
    %v1982 = vadd.f32 %v129, %v1981
    %v1983 = vpop.f32.mrf.mxu0
    %1984 = vdwg.mxu0
    %v1985 = vsel %vm160, %v1982, -inf
    %1986 = vmax.xlane.f32.xlu0 %v1985
    %v1987 = vpop.xlane.xlu0 %1986
    %vm1988 = vcmp.eq.f32.partialorder %v1982, %v1987
    %v1989 = vsel %vm1988, %v55, 7
    %v1990 = vsel %vm160, %v1989, 2147483647
    %v1991 = vand.u32 %v1990, 65535
    %v1992 = vshra.s32 %v1990, 16
    %v1993 = vcvt.s32.f32 %v1991
    %v1994 = vcvt.s32.f32 %v1992
    %1995 = vmin.xlane.f32.xlu0 %v1994
    %v1996 = vpop.xlane.xlu0 %1995
    %vm1997 = vcmp.eq.f32.partialorder %v1994, %v1996
    %v1998 = vsel %vm1997, %v1993, inf
    %1999 = vmin.xlane.f32.xlu0 %v1998
    %v2000 = vpop.xlane.xlu0 %1999
    %v2001 = vcvt.f32.s32 %v2000
    %v2002 = vcvt.f32.s32 %v1996
    %v2003 = vshll.u32 %v2002, 16
    %v2004 = vadd.s32 %v2003, %v2001
    %v2005 = vadd.s32 %v2004, 1
    %v2006 = vpack.c.bf16 %v1921, %v1921
    %2008 = vrot.lane.b32.xlu0 %v2006, 117
    %v2009 = vpop.permute.xlu0 %2008
    %v2011 = vsel %vm191, %v2009, 0
    %2013 = vmatpush.bf16.msra.mxu0 0
    %2014 = vmatpush.bf16.msra.mxu0 0
    %2015 = vmatpush.bf16.msra.mxu0 0
    %2016 = vmatpush.bf16.msra.mxu0 0
    %2017 = vmatpush.bf16.msra.mxu0 0
    %2018 = vmatpush.bf16.msra.mxu0 0
    %2019 = vmatpush.bf16.msra.mxu0 0
    %2020 = vmatpush.bf16.msra.mxu0 %v196
    %2021 = vmatmul.bf16.gmra.mxu0 %v2011
    %v2022 = vpop.f32.mrf.mxu0
    %v2023 = vadd.f32 0.0, %v2022
    %v2024 = vpop.f32.mrf.mxu0
    %2025 = vdwg.mxu0
    %v2026 = vmul.f32 %v2023, %v212
    %v2027 = vsel %vm215, %v2026, 0.0
    %2028 = vadd.xlane.f32.xlu0 %v2027
    %v2029 = vpop.xlane.xlu0 %2028
    %v2030 = vadd.f32 %v2029, %v220
    %v2031 = vmul.f32 %v2023, %v224
    %2033 = vrot.lane.b32.xlu0 %v2031, 120
    %v2034 = vpop.permute.xlu0 %2033
    %v2036 = vsel %vm215, %v2034, 0.0
    %2037 = vadd.xlane.f32.xlu0 %v2036
    %v2038 = vpop.xlane.xlu0 %2037
    %v2039 = vadd.f32 %v2038, %v220
    %vm2040 = vcmp.gt.f32.partialorder %v2039, %v2030
    %v2041 = vsel %vm2040, %v2039, %v2030
    %v2042 = vsel %vm2040, 1, 0
    %v2043 = vmul.f32 %v2023, %v239
    %2045 = vrot.lane.b32.xlu0 %v2043, 112
    %v2046 = vpop.permute.xlu0 %2045
    %v2048 = vsel %vm215, %v2046, 0.0
    %2049 = vadd.xlane.f32.xlu0 %v2048
    %v2050 = vpop.xlane.xlu0 %2049
    %v2051 = vadd.f32 %v2050, %v220
    %vm2052 = vcmp.gt.f32.partialorder %v2051, %v2041
    %v2053 = vsel %vm2052, %v2051, %v2041
    %v2054 = vsel %vm2052, 2, %v2042
    %v2055 = vmul.f32 %v2023, %v254
    %2057 = vrot.lane.b32.xlu0 %v2055, 104
    %v2058 = vpop.permute.xlu0 %2057
    %v2060 = vsel %vm215, %v2058, 0.0
    %2061 = vadd.xlane.f32.xlu0 %v2060
    %v2062 = vpop.xlane.xlu0 %2061
    %v2063 = vadd.f32 %v2062, %v220
    %vm2064 = vcmp.gt.f32.partialorder %v2063, %v2053
    %v2065 = vsel %vm2064, 3, %v2054
    %vm2066 = vcmp.eq.s32.totalorder %v2065, 0
    %v2067 = vsel %vm2066, 1, 0
    %v2068 = vcvt.s32.f32 %v2067
    %2070 = vset.pattern.permute.xlu0 0
    %2071 = vperm.xlu0 %2070, %v2068
    %v2072 = vpop.permute.xlu0 %2071
    %v2074 = vmul.f32 %v2023, %v2072
    %v2075 = vadd.f32 %v2074, 0.0
    %vm2076 = vcmp.eq.s32.totalorder %v2065, 1
    %v2077 = vsel %vm2076, 1, 0
    %v2078 = vcvt.s32.f32 %v2077
    %2080 = vset.pattern.permute.xlu0 0
    %2081 = vperm.xlu0 %2080, %v2078
    %v2082 = vpop.permute.xlu0 %2081
    %v2084 = vmul.f32 %v2023, %v2082
    %2086 = vrot.lane.b32.xlu0 %v2084, 120
    %v2087 = vpop.permute.xlu0 %2086
    %v2089 = vadd.f32 %v2075, %v2087
    %vm2090 = vcmp.eq.s32.totalorder %v2065, 2
    %v2091 = vsel %vm2090, 1, 0
    %v2092 = vcvt.s32.f32 %v2091
    %2094 = vset.pattern.permute.xlu0 0
    %2095 = vperm.xlu0 %2094, %v2092
    %v2096 = vpop.permute.xlu0 %2095
    %v2098 = vmul.f32 %v2023, %v2096
    %2100 = vrot.lane.b32.xlu0 %v2098, 112
    %v2101 = vpop.permute.xlu0 %2100
    %v2103 = vadd.f32 %v2089, %v2101
    %vm2104 = vcmp.eq.s32.totalorder %v2065, 3
    %v2105 = vsel %vm2104, 1, 0
    %v2106 = vcvt.s32.f32 %v2105
    %2108 = vset.pattern.permute.xlu0 0
    %2109 = vperm.xlu0 %2108, %v2106
    %v2110 = vpop.permute.xlu0 %2109
    %v2112 = vmul.f32 %v2023, %v2110
    %2114 = vrot.lane.b32.xlu0 %v2112, 104
    %v2115 = vpop.permute.xlu0 %2114
    %v2117 = vadd.f32 %v2103, %v2115
    %vm2118 = vcmp.eq.s32.totalorder %v55, %v1902
    %v2119 = vsel %vm2118, 1, 0
    %v2120 = vcvt.s32.f32 %v2119
    %2122 = vset.pattern.permute.xlu0 0
    %2123 = vperm.xlu0 %2122, %v2117
    %v2124 = vpop.permute.xlu0 %2123
    %v2126 = vmul.f32 %v2124, %v2120
    %v2127 = vadd.f32 %v2126, 0.0
    %v2128 = vadd.s32 %v1902, 1
    %vm2129 = vcmp.eq.s32.totalorder %v55, %v2128
    %v2130 = vsel %vm2129, 1, 0
    %v2131 = vcvt.s32.f32 %v2130
    %2132 = vset.pattern.permute.xlu0 1
    %2133 = vperm.xlu0 %2132, %v2117
    %v2134 = vpop.permute.xlu0 %2133
    %v2136 = vmul.f32 %v2134, %v2131
    %v2137 = vadd.f32 %v2127, %v2136
    %v2138 = vadd.s32 %v1902, 2
    %vm2139 = vcmp.eq.s32.totalorder %v55, %v2138
    %v2140 = vsel %vm2139, 1, 0
    %v2141 = vcvt.s32.f32 %v2140
    %2142 = vset.pattern.permute.xlu0 2
    %2143 = vperm.xlu0 %2142, %v2117
    %v2144 = vpop.permute.xlu0 %2143
    %v2146 = vmul.f32 %v2144, %v2141
    %v2147 = vadd.f32 %v2137, %v2146
    %v2148 = vadd.s32 %v1902, 3
    %vm2149 = vcmp.eq.s32.totalorder %v55, %v2148
    %v2150 = vsel %vm2149, 1, 0
    %v2151 = vcvt.s32.f32 %v2150
    %2152 = vset.pattern.permute.xlu0 3
    %2153 = vperm.xlu0 %2152, %v2117
    %v2154 = vpop.permute.xlu0 %2153
    %v2156 = vmul.f32 %v2154, %v2151
    %v2157 = vadd.f32 %v2147, %v2156
    %v2158 = vadd.s32 %v1902, 4
    %vm2159 = vcmp.eq.s32.totalorder %v55, %v2158
    %v2160 = vsel %vm2159, 1, 0
    %v2161 = vcvt.s32.f32 %v2160
    %2162 = vset.pattern.permute.xlu0 4
    %2163 = vperm.xlu0 %2162, %v2117
    %v2164 = vpop.permute.xlu0 %2163
    %v2166 = vmul.f32 %v2164, %v2161
    %v2167 = vadd.f32 %v2157, %v2166
    %v2168 = vadd.s32 %v1902, 5
    %vm2169 = vcmp.eq.s32.totalorder %v55, %v2168
    %v2170 = vsel %vm2169, 1, 0
    %v2171 = vcvt.s32.f32 %v2170
    %2172 = vset.pattern.permute.xlu0 5
    %2173 = vperm.xlu0 %2172, %v2117
    %v2174 = vpop.permute.xlu0 %2173
    %v2176 = vmul.f32 %v2174, %v2171
    %v2177 = vadd.f32 %v2167, %v2176
    %v2178 = vadd.s32 %v1902, 6
    %vm2179 = vcmp.eq.s32.totalorder %v55, %v2178
    %v2180 = vsel %vm2179, 1, 0
    %v2181 = vcvt.s32.f32 %v2180
    %2182 = vset.pattern.permute.xlu0 6
    %2183 = vperm.xlu0 %2182, %v2117
    %v2184 = vpop.permute.xlu0 %2183
    %v2186 = vmul.f32 %v2184, %v2181
    %v2187 = vadd.f32 %v2177, %v2186
    %vm2188 = vcmp.ge.s32.totalorder %v55, %v1902
    %v2189 = vsel %vm1903, 1, 0
    %vm2190 = vcmp.eq.s32.totalorder %v2189, 1
    %vm2191 = vmand %vm2190, %vm2188
    %v2192 = vadd.s32 %v1902, %v2005
    %vm2193 = vcmp.lt.s32.totalorder %v55, %v2192
    %vm2194 = vmand %vm2191, %vm2193
    %v2195 = vsel %vm2194, %v2187, %v1831
    %2197 = vrot.lane.b32.xlu0 %v1901, 121
    %v2198 = vpop.permute.xlu0 %2197
    %2200 = vrot.lane.b32.xlu0 %v2117, 16
    %v2201 = vpop.permute.xlu0 %2200
    %v2203 = vsel %vm66, %v2198, %v2201
    %vm2204 = vcmp.eq.s32.totalorder %v2005, 1
    %vm2205 = vmand %vm1903, %vm2204
    %v2206 = vsel %vm2205, 1, 0
    %vm2207 = vcmp.eq.s32.totalorder %v2206, 1
    %2208 = vrot.lane.b32.xlu0 %v1901, 122
    %v2209 = vpop.permute.xlu0 %2208
    %v2211 = vsel %vm2207, %v2203, %v2209
    %vm2212 = vcmp.eq.s32.totalorder %v2005, 2
    %vm2213 = vmand %vm1903, %vm2212
    %v2214 = vsel %vm2213, 1, 0
    %vm2215 = vcmp.eq.s32.totalorder %v2214, 1
    %2217 = vrot.lane.b32.xlu0 %v2211, 1
    %v2218 = vpop.permute.xlu0 %2217
    %v2220 = vsel %vm2215, %v2203, %v2218
    %vm2221 = vcmp.eq.s32.totalorder %v2005, 3
    %vm2222 = vmand %vm1903, %vm2221
    %v2223 = vsel %vm2222, 1, 0
    %vm2224 = vcmp.eq.s32.totalorder %v2223, 1
    %2226 = vrot.lane.b32.xlu0 %v2220, 1
    %v2227 = vpop.permute.xlu0 %2226
    %v2229 = vsel %vm2224, %v2203, %v2227
    %vm2230 = vcmp.eq.s32.totalorder %v2005, 4
    %vm2231 = vmand %vm1903, %vm2230
    %v2232 = vsel %vm2231, 1, 0
    %vm2233 = vcmp.eq.s32.totalorder %v2232, 1
    %2235 = vrot.lane.b32.xlu0 %v2229, 1
    %v2236 = vpop.permute.xlu0 %2235
    %v2238 = vsel %vm2233, %v2203, %v2236
    %vm2239 = vcmp.eq.s32.totalorder %v2005, 5
    %vm2240 = vmand %vm1903, %vm2239
    %v2241 = vsel %vm2240, 1, 0
    %vm2242 = vcmp.eq.s32.totalorder %v2241, 1
    %2244 = vrot.lane.b32.xlu0 %v2238, 1
    %v2245 = vpop.permute.xlu0 %2244
    %v2247 = vsel %vm2242, %v2203, %v2245
    %vm2248 = vcmp.eq.s32.totalorder %v2005, 6
    %vm2249 = vmand %vm1903, %vm2248
    %v2250 = vsel %vm2249, 1, 0
    %vm2251 = vcmp.eq.s32.totalorder %v2250, 1
    %2253 = vrot.lane.b32.xlu0 %v2247, 1
    %v2254 = vpop.permute.xlu0 %2253
    %v2256 = vsel %vm2251, %v2203, %v2254
    %vm2257 = vcmp.eq.s32.totalorder %v2005, 7
    %vm2258 = vmand %vm1903, %vm2257
    %v2259 = vsel %vm2258, 1, 0
    %vm2260 = vcmp.eq.s32.totalorder %v2259, 1
    %2262 = vrot.lane.b32.xlu0 %v2256, 1
    %v2263 = vpop.permute.xlu0 %2262
    %v2265 = vsel %vm2260, %v2203, %v2263
    %v2266 = vsel %vm1903, %v2192, %v1902
    %vm2267 = vcmp.lt.s32.totalorder %v2266, 8
    %v2268 = vpack.c.bf16 %v2265, %v2265
    %2270 = vrot.lane.b32.xlu0 %v2268, 121
    %v2271 = vpop.permute.xlu0 %2270
    %v2273 = vsel %vm66, %v2271, 0
    %2275 = vmatpush.bf16.msra.mxu0 0
    %2276 = vmatpush.bf16.msra.mxu0 0
    %2277 = vmatpush.bf16.msra.mxu0 0
    %2278 = vmatpush.bf16.msra.mxu0 0
    %2279 = vmatpush.bf16.msra.mxu0 0
    %2280 = vmatpush.bf16.msra.mxu0 0
    %2281 = vmatpush.bf16.msra.mxu0 0
    %2282 = vmatpush.bf16.msra.mxu0 %v64
    %2283 = vmatmul.bf16.gmra.mxu0 %v2273
    %v2284 = vpop.f32.mrf.mxu0
    %v2285 = vadd.f32 %v58, %v2284
    %v2286 = vpop.f32.mrf.mxu0
    %2287 = vdwg.mxu0
    %v2288 = vmul.f32 %v2285, 0.5
    %v2289 = vmul.f32 %v2285, 0.70710677
    %v2290 = vmul.f32 %v2289, %v2289
    %v2291 = vmin.f32 16.0, %v2290
    %v2292 = vmul.f32 %v2291, 2.1237322e-06
    %v2293 = vadd.f32 %v2292, 0.00028619796
    %v2294 = vmul.f32 %v2291, %v2293
    %v2295 = vadd.f32 %v2294, 0.0036580483
    %v2296 = vmul.f32 %v2291, %v2295
    %v2297 = vadd.f32 %v2296, 0.05243302
    %v2298 = vmul.f32 %v2291, %v2297
    %v2299 = vadd.f32 %v2298, 0.18741608
    %v2300 = vmul.f32 %v2291, %v2299
    %v2301 = vadd.f32 %v2300, 1.1283791
    %v2302 = vmul.f32 %v2289, %v2301
    %v2303 = vmul.f32 %v2291, 3.8918573e-05
    %v2304 = vadd.f32 %v2303, 0.001143296
    %v2305 = vmul.f32 %v2291, %v2304
    %v2306 = vadd.f32 %v2305, 0.014752088
    %v2307 = vmul.f32 %v2291, %v2306
    %v2308 = vadd.f32 %v2307, 0.112945676
    %v2309 = vmul.f32 %v2291, %v2308
    %v2310 = vadd.f32 %v2309, 0.4994258
    %v2311 = vmul.f32 %v2291, %v2310
    %v2312 = vadd.f32 %v2311, 1.0
    %v2313 = vrcp.pop %v2312
    %v2314 = vmul.f32 %v2312, %v2313
    %v2315 = vsub.f32 1.0, %v2314
    %v2316 = vmul.f32 %v2313, %v2315
    %v2317 = vadd.f32 %v2313, %v2316
    %vm2318 = vweird.f32 %v2312
    %vm2319 = vweird.f32 %v2313
    %vm2320 = vmor %vm2318, %vm2319
    %v2321 = vsel %vm2320, %v2313, %v2317
    %v2322 = vand.u32 2147483647, %v2312
    %vm2323 = vcmp.eq.f32.partialorder %v2322, 8.507059e+37
    %v2324 = vand.u32 %v2312, 2147483648
    %v2325 = vor.u32 1.1754944e-38, %v2324
    %v2326 = vsel %vm2323, %v2325, %v2321
    %v2327 = vmul.f32 %v2302, %v2326
    %v2328 = vmin.f32 %v2327, 1.0
    %v2329 = vmax.f32 %v2328, -1.0
    %v2330 = vadd.f32 %v2329, 1.0
    %v2331 = vmul.f32 %v2288, %v2330
    %v2332 = vpack.c.bf16 %v2331, %v2331
    %v2334 = vsel %vm136, %v2332, 0
    %2336 = vmatpush.bf16.msra.mxu0 0
    %2337 = vmatpush.bf16.msra.mxu0 0
    %2338 = vmatpush.bf16.msra.mxu0 0
    %2339 = vmatpush.bf16.msra.mxu0 0
    %2340 = vmatpush.bf16.msra.mxu0 0
    %2341 = vmatpush.bf16.msra.mxu0 0
    %2342 = vmatpush.bf16.msra.mxu0 0
    %2343 = vmatpush.bf16.msra.mxu0 %v145
    %2344 = vmatmul.bf16.gmra.mxu0 %v2334
    %v2345 = vpop.f32.mrf.mxu0
    %v2346 = vadd.f32 %v129, %v2345
    %v2347 = vpop.f32.mrf.mxu0
    %2348 = vdwg.mxu0
    %v2349 = vsel %vm160, %v2346, -inf
    %2350 = vmax.xlane.f32.xlu0 %v2349
    %v2351 = vpop.xlane.xlu0 %2350
    %vm2352 = vcmp.eq.f32.partialorder %v2346, %v2351
    %v2353 = vsel %vm2352, %v55, 7
    %v2354 = vsel %vm160, %v2353, 2147483647
    %v2355 = vand.u32 %v2354, 65535
    %v2356 = vshra.s32 %v2354, 16
    %v2357 = vcvt.s32.f32 %v2355
    %v2358 = vcvt.s32.f32 %v2356
    %2359 = vmin.xlane.f32.xlu0 %v2358
    %v2360 = vpop.xlane.xlu0 %2359
    %vm2361 = vcmp.eq.f32.partialorder %v2358, %v2360
    %v2362 = vsel %vm2361, %v2357, inf
    %2363 = vmin.xlane.f32.xlu0 %v2362
    %v2364 = vpop.xlane.xlu0 %2363
    %v2365 = vcvt.f32.s32 %v2364
    %v2366 = vcvt.f32.s32 %v2360
    %v2367 = vshll.u32 %v2366, 16
    %v2368 = vadd.s32 %v2367, %v2365
    %v2369 = vadd.s32 %v2368, 1
    %v2370 = vpack.c.bf16 %v2285, %v2285
    %2372 = vrot.lane.b32.xlu0 %v2370, 117
    %v2373 = vpop.permute.xlu0 %2372
    %v2375 = vsel %vm191, %v2373, 0
    %2377 = vmatpush.bf16.msra.mxu0 0
    %2378 = vmatpush.bf16.msra.mxu0 0
    %2379 = vmatpush.bf16.msra.mxu0 0
    %2380 = vmatpush.bf16.msra.mxu0 0
    %2381 = vmatpush.bf16.msra.mxu0 0
    %2382 = vmatpush.bf16.msra.mxu0 0
    %2383 = vmatpush.bf16.msra.mxu0 0
    %2384 = vmatpush.bf16.msra.mxu0 %v196
    %2385 = vmatmul.bf16.gmra.mxu0 %v2375
    %v2386 = vpop.f32.mrf.mxu0
    %v2387 = vadd.f32 0.0, %v2386
    %v2388 = vpop.f32.mrf.mxu0
    %2389 = vdwg.mxu0
    %v2390 = vmul.f32 %v2387, %v212
    %v2391 = vsel %vm215, %v2390, 0.0
    %2392 = vadd.xlane.f32.xlu0 %v2391
    %v2393 = vpop.xlane.xlu0 %2392
    %v2394 = vadd.f32 %v2393, %v220
    %v2395 = vmul.f32 %v2387, %v224
    %2397 = vrot.lane.b32.xlu0 %v2395, 120
    %v2398 = vpop.permute.xlu0 %2397
    %v2400 = vsel %vm215, %v2398, 0.0
    %2401 = vadd.xlane.f32.xlu0 %v2400
    %v2402 = vpop.xlane.xlu0 %2401
    %v2403 = vadd.f32 %v2402, %v220
    %vm2404 = vcmp.gt.f32.partialorder %v2403, %v2394
    %v2405 = vsel %vm2404, %v2403, %v2394
    %v2406 = vsel %vm2404, 1, 0
    %v2407 = vmul.f32 %v2387, %v239
    %2409 = vrot.lane.b32.xlu0 %v2407, 112
    %v2410 = vpop.permute.xlu0 %2409
    %v2412 = vsel %vm215, %v2410, 0.0
    %2413 = vadd.xlane.f32.xlu0 %v2412
    %v2414 = vpop.xlane.xlu0 %2413
    %v2415 = vadd.f32 %v2414, %v220
    %vm2416 = vcmp.gt.f32.partialorder %v2415, %v2405
    %v2417 = vsel %vm2416, %v2415, %v2405
    %v2418 = vsel %vm2416, 2, %v2406
    %v2419 = vmul.f32 %v2387, %v254
    %2421 = vrot.lane.b32.xlu0 %v2419, 104
    %v2422 = vpop.permute.xlu0 %2421
    %v2424 = vsel %vm215, %v2422, 0.0
    %2425 = vadd.xlane.f32.xlu0 %v2424
    %v2426 = vpop.xlane.xlu0 %2425
    %v2427 = vadd.f32 %v2426, %v220
    %vm2428 = vcmp.gt.f32.partialorder %v2427, %v2417
    %v2429 = vsel %vm2428, 3, %v2418
    %vm2430 = vcmp.eq.s32.totalorder %v2429, 0
    %v2431 = vsel %vm2430, 1, 0
    %v2432 = vcvt.s32.f32 %v2431
    %2434 = vset.pattern.permute.xlu0 0
    %2435 = vperm.xlu0 %2434, %v2432
    %v2436 = vpop.permute.xlu0 %2435
    %v2438 = vmul.f32 %v2387, %v2436
    %v2439 = vadd.f32 %v2438, 0.0
    %vm2440 = vcmp.eq.s32.totalorder %v2429, 1
    %v2441 = vsel %vm2440, 1, 0
    %v2442 = vcvt.s32.f32 %v2441
    %2444 = vset.pattern.permute.xlu0 0
    %2445 = vperm.xlu0 %2444, %v2442
    %v2446 = vpop.permute.xlu0 %2445
    %v2448 = vmul.f32 %v2387, %v2446
    %2450 = vrot.lane.b32.xlu0 %v2448, 120
    %v2451 = vpop.permute.xlu0 %2450
    %v2453 = vadd.f32 %v2439, %v2451
    %vm2454 = vcmp.eq.s32.totalorder %v2429, 2
    %v2455 = vsel %vm2454, 1, 0
    %v2456 = vcvt.s32.f32 %v2455
    %2458 = vset.pattern.permute.xlu0 0
    %2459 = vperm.xlu0 %2458, %v2456
    %v2460 = vpop.permute.xlu0 %2459
    %v2462 = vmul.f32 %v2387, %v2460
    %2464 = vrot.lane.b32.xlu0 %v2462, 112
    %v2465 = vpop.permute.xlu0 %2464
    %v2467 = vadd.f32 %v2453, %v2465
    %vm2468 = vcmp.eq.s32.totalorder %v2429, 3
    %v2469 = vsel %vm2468, 1, 0
    %v2470 = vcvt.s32.f32 %v2469
    %2472 = vset.pattern.permute.xlu0 0
    %2473 = vperm.xlu0 %2472, %v2470
    %v2474 = vpop.permute.xlu0 %2473
    %v2476 = vmul.f32 %v2387, %v2474
    %2478 = vrot.lane.b32.xlu0 %v2476, 104
    %v2479 = vpop.permute.xlu0 %2478
    %v2481 = vadd.f32 %v2467, %v2479
    %vm2482 = vcmp.eq.s32.totalorder %v55, %v2266
    %v2483 = vsel %vm2482, 1, 0
    %v2484 = vcvt.s32.f32 %v2483
    %2486 = vset.pattern.permute.xlu0 0
    %2487 = vperm.xlu0 %2486, %v2481
    %v2488 = vpop.permute.xlu0 %2487
    %v2490 = vmul.f32 %v2488, %v2484
    %v2491 = vadd.f32 %v2490, 0.0
    %v2492 = vadd.s32 %v2266, 1
    %vm2493 = vcmp.eq.s32.totalorder %v55, %v2492
    %v2494 = vsel %vm2493, 1, 0
    %v2495 = vcvt.s32.f32 %v2494
    %2496 = vset.pattern.permute.xlu0 1
    %2497 = vperm.xlu0 %2496, %v2481
    %v2498 = vpop.permute.xlu0 %2497
    %v2500 = vmul.f32 %v2498, %v2495
    %v2501 = vadd.f32 %v2491, %v2500
    %v2502 = vadd.s32 %v2266, 2
    %vm2503 = vcmp.eq.s32.totalorder %v55, %v2502
    %v2504 = vsel %vm2503, 1, 0
    %v2505 = vcvt.s32.f32 %v2504
    %2506 = vset.pattern.permute.xlu0 2
    %2507 = vperm.xlu0 %2506, %v2481
    %v2508 = vpop.permute.xlu0 %2507
    %v2510 = vmul.f32 %v2508, %v2505
    %v2511 = vadd.f32 %v2501, %v2510
    %v2512 = vadd.s32 %v2266, 3
    %vm2513 = vcmp.eq.s32.totalorder %v55, %v2512
    %v2514 = vsel %vm2513, 1, 0
    %v2515 = vcvt.s32.f32 %v2514
    %2516 = vset.pattern.permute.xlu0 3
    %2517 = vperm.xlu0 %2516, %v2481
    %v2518 = vpop.permute.xlu0 %2517
    %v2520 = vmul.f32 %v2518, %v2515
    %v2521 = vadd.f32 %v2511, %v2520
    %v2522 = vadd.s32 %v2266, 4
    %vm2523 = vcmp.eq.s32.totalorder %v55, %v2522
    %v2524 = vsel %vm2523, 1, 0
    %v2525 = vcvt.s32.f32 %v2524
    %2526 = vset.pattern.permute.xlu0 4
    %2527 = vperm.xlu0 %2526, %v2481
    %v2528 = vpop.permute.xlu0 %2527
    %v2530 = vmul.f32 %v2528, %v2525
    %v2531 = vadd.f32 %v2521, %v2530
    %v2532 = vadd.s32 %v2266, 5
    %vm2533 = vcmp.eq.s32.totalorder %v55, %v2532
    %v2534 = vsel %vm2533, 1, 0
    %v2535 = vcvt.s32.f32 %v2534
    %2536 = vset.pattern.permute.xlu0 5
    %2537 = vperm.xlu0 %2536, %v2481
    %v2538 = vpop.permute.xlu0 %2537
    %v2540 = vmul.f32 %v2538, %v2535
    %v2541 = vadd.f32 %v2531, %v2540
    %v2542 = vadd.s32 %v2266, 6
    %vm2543 = vcmp.eq.s32.totalorder %v55, %v2542
    %v2544 = vsel %vm2543, 1, 0
    %v2545 = vcvt.s32.f32 %v2544
    %2546 = vset.pattern.permute.xlu0 6
    %2547 = vperm.xlu0 %2546, %v2481
    %v2548 = vpop.permute.xlu0 %2547
    %v2550 = vmul.f32 %v2548, %v2545
    %v2551 = vadd.f32 %v2541, %v2550
    %vm2552 = vcmp.ge.s32.totalorder %v55, %v2266
    %v2553 = vsel %vm2267, 1, 0
    %vm2554 = vcmp.eq.s32.totalorder %v2553, 1
    %vm2555 = vmand %vm2554, %vm2552
    %v2556 = vadd.s32 %v2266, %v2369
    %vm2557 = vcmp.lt.s32.totalorder %v55, %v2556
    %vm2558 = vmand %vm2555, %vm2557
    %v2559 = vsel %vm2558, %v2551, %v2195
    %2561 = vrot.lane.b32.xlu0 %v2265, 121
    %v2562 = vpop.permute.xlu0 %2561
    %2564 = vrot.lane.b32.xlu0 %v2481, 16
    %v2565 = vpop.permute.xlu0 %2564
    %v2567 = vsel %vm66, %v2562, %v2565
    %vm2568 = vcmp.eq.s32.totalorder %v2369, 1
    %vm2569 = vmand %vm2267, %vm2568
    %v2570 = vsel %vm2569, 1, 0
    %vm2571 = vcmp.eq.s32.totalorder %v2570, 1
    %2572 = vrot.lane.b32.xlu0 %v2265, 122
    %v2573 = vpop.permute.xlu0 %2572
    %v2575 = vsel %vm2571, %v2567, %v2573
    %vm2576 = vcmp.eq.s32.totalorder %v2369, 2
    %vm2577 = vmand %vm2267, %vm2576
    %v2578 = vsel %vm2577, 1, 0
    %vm2579 = vcmp.eq.s32.totalorder %v2578, 1
    %2581 = vrot.lane.b32.xlu0 %v2575, 1
    %v2582 = vpop.permute.xlu0 %2581
    %v2584 = vsel %vm2579, %v2567, %v2582
    %vm2585 = vcmp.eq.s32.totalorder %v2369, 3
    %vm2586 = vmand %vm2267, %vm2585
    %v2587 = vsel %vm2586, 1, 0
    %vm2588 = vcmp.eq.s32.totalorder %v2587, 1
    %2590 = vrot.lane.b32.xlu0 %v2584, 1
    %v2591 = vpop.permute.xlu0 %2590
    %v2593 = vsel %vm2588, %v2567, %v2591
    %vm2594 = vcmp.eq.s32.totalorder %v2369, 4
    %vm2595 = vmand %vm2267, %vm2594
    %v2596 = vsel %vm2595, 1, 0
    %vm2597 = vcmp.eq.s32.totalorder %v2596, 1
    %2599 = vrot.lane.b32.xlu0 %v2593, 1
    %v2600 = vpop.permute.xlu0 %2599
    %v2602 = vsel %vm2597, %v2567, %v2600
    %vm2603 = vcmp.eq.s32.totalorder %v2369, 5
    %vm2604 = vmand %vm2267, %vm2603
    %v2605 = vsel %vm2604, 1, 0
    %vm2606 = vcmp.eq.s32.totalorder %v2605, 1
    %2608 = vrot.lane.b32.xlu0 %v2602, 1
    %v2609 = vpop.permute.xlu0 %2608
    %v2611 = vsel %vm2606, %v2567, %v2609
    %vm2612 = vcmp.eq.s32.totalorder %v2369, 6
    %vm2613 = vmand %vm2267, %vm2612
    %v2614 = vsel %vm2613, 1, 0
    %vm2615 = vcmp.eq.s32.totalorder %v2614, 1
    %2617 = vrot.lane.b32.xlu0 %v2611, 1
    %v2618 = vpop.permute.xlu0 %2617
    %v2620 = vsel %vm2615, %v2567, %v2618
    %vm2621 = vcmp.eq.s32.totalorder %v2369, 7
    %vm2622 = vmand %vm2267, %vm2621
    %v2623 = vsel %vm2622, 1, 0
    %vm2624 = vcmp.eq.s32.totalorder %v2623, 1
    %2626 = vrot.lane.b32.xlu0 %v2620, 1
    %v2627 = vpop.permute.xlu0 %2626
    %v2629 = vsel %vm2624, %v2567, %v2627
    %v2630 = vsel %vm2267, %v2556, %v2266
    %vm2631 = vcmp.lt.s32.totalorder %v2630, 8
    %v2632 = vpack.c.bf16 %v2629, %v2629
    %2634 = vrot.lane.b32.xlu0 %v2632, 121
    %v2635 = vpop.permute.xlu0 %2634
    %v2637 = vsel %vm66, %v2635, 0
    %2639 = vmatpush.bf16.msra.mxu0 0
    %2640 = vmatpush.bf16.msra.mxu0 0
    %2641 = vmatpush.bf16.msra.mxu0 0
    %2642 = vmatpush.bf16.msra.mxu0 0
    %2643 = vmatpush.bf16.msra.mxu0 0
    %2644 = vmatpush.bf16.msra.mxu0 0
    %2645 = vmatpush.bf16.msra.mxu0 0
    %2646 = vmatpush.bf16.msra.mxu0 %v64
    %2647 = vmatmul.bf16.gmra.mxu0 %v2637
    %v2648 = vpop.f32.mrf.mxu0
    %v2649 = vadd.f32 %v58, %v2648
    %v2650 = vpop.f32.mrf.mxu0
    %2651 = vdwg.mxu0
    %v2652 = vmul.f32 %v2649, 0.5
    %v2653 = vmul.f32 %v2649, 0.70710677
    %v2654 = vmul.f32 %v2653, %v2653
    %v2655 = vmin.f32 16.0, %v2654
    %v2656 = vmul.f32 %v2655, 2.1237322e-06
    %v2657 = vadd.f32 %v2656, 0.00028619796
    %v2658 = vmul.f32 %v2655, %v2657
    %v2659 = vadd.f32 %v2658, 0.0036580483
    %v2660 = vmul.f32 %v2655, %v2659
    %v2661 = vadd.f32 %v2660, 0.05243302
    %v2662 = vmul.f32 %v2655, %v2661
    %v2663 = vadd.f32 %v2662, 0.18741608
    %v2664 = vmul.f32 %v2655, %v2663
    %v2665 = vadd.f32 %v2664, 1.1283791
    %v2666 = vmul.f32 %v2653, %v2665
    %v2667 = vmul.f32 %v2655, 3.8918573e-05
    %v2668 = vadd.f32 %v2667, 0.001143296
    %v2669 = vmul.f32 %v2655, %v2668
    %v2670 = vadd.f32 %v2669, 0.014752088
    %v2671 = vmul.f32 %v2655, %v2670
    %v2672 = vadd.f32 %v2671, 0.112945676
    %v2673 = vmul.f32 %v2655, %v2672
    %v2674 = vadd.f32 %v2673, 0.4994258
    %v2675 = vmul.f32 %v2655, %v2674
    %v2676 = vadd.f32 %v2675, 1.0
    %v2677 = vrcp.pop %v2676
    %v2678 = vmul.f32 %v2676, %v2677
    %v2679 = vsub.f32 1.0, %v2678
    %v2680 = vmul.f32 %v2677, %v2679
    %v2681 = vadd.f32 %v2677, %v2680
    %vm2682 = vweird.f32 %v2676
    %vm2683 = vweird.f32 %v2677
    %vm2684 = vmor %vm2682, %vm2683
    %v2685 = vsel %vm2684, %v2677, %v2681
    %v2686 = vand.u32 2147483647, %v2676
    %vm2687 = vcmp.eq.f32.partialorder %v2686, 8.507059e+37
    %v2688 = vand.u32 %v2676, 2147483648
    %v2689 = vor.u32 1.1754944e-38, %v2688
    %v2690 = vsel %vm2687, %v2689, %v2685
    %v2691 = vmul.f32 %v2666, %v2690
    %v2692 = vmin.f32 %v2691, 1.0
    %v2693 = vmax.f32 %v2692, -1.0
    %v2694 = vadd.f32 %v2693, 1.0
    %v2695 = vmul.f32 %v2652, %v2694
    %v2696 = vpack.c.bf16 %v2695, %v2695
    %v2698 = vsel %vm136, %v2696, 0
    %2700 = vmatpush.bf16.msra.mxu0 0
    %2701 = vmatpush.bf16.msra.mxu0 0
    %2702 = vmatpush.bf16.msra.mxu0 0
    %2703 = vmatpush.bf16.msra.mxu0 0
    %2704 = vmatpush.bf16.msra.mxu0 0
    %2705 = vmatpush.bf16.msra.mxu0 0
    %2706 = vmatpush.bf16.msra.mxu0 0
    %2707 = vmatpush.bf16.msra.mxu0 %v145
    %2708 = vmatmul.bf16.gmra.mxu0 %v2698
    %v2709 = vpop.f32.mrf.mxu0
    %v2710 = vadd.f32 %v129, %v2709
    %v2711 = vpop.f32.mrf.mxu0
    %2712 = vdwg.mxu0
    %v2713 = vsel %vm160, %v2710, -inf
    %2714 = vmax.xlane.f32.xlu0 %v2713
    %v2715 = vpop.xlane.xlu0 %2714
    %vm2716 = vcmp.eq.f32.partialorder %v2710, %v2715
    %v2717 = vsel %vm2716, %v55, 7
    %v2718 = vsel %vm160, %v2717, 2147483647
    %v2719 = vand.u32 %v2718, 65535
    %v2720 = vshra.s32 %v2718, 16
    %v2721 = vcvt.s32.f32 %v2719
    %v2722 = vcvt.s32.f32 %v2720
    %2723 = vmin.xlane.f32.xlu0 %v2722
    %v2724 = vpop.xlane.xlu0 %2723
    %vm2725 = vcmp.eq.f32.partialorder %v2722, %v2724
    %v2726 = vsel %vm2725, %v2721, inf
    %2727 = vmin.xlane.f32.xlu0 %v2726
    %v2728 = vpop.xlane.xlu0 %2727
    %v2729 = vcvt.f32.s32 %v2728
    %v2730 = vcvt.f32.s32 %v2724
    %v2731 = vshll.u32 %v2730, 16
    %v2732 = vadd.s32 %v2731, %v2729
    %v2733 = vadd.s32 %v2732, 1
    %v2734 = vpack.c.bf16 %v2649, %v2649
    %2736 = vrot.lane.b32.xlu0 %v2734, 117
    %v2737 = vpop.permute.xlu0 %2736
    %v2739 = vsel %vm191, %v2737, 0
    %2741 = vmatpush.bf16.msra.mxu0 0
    %2742 = vmatpush.bf16.msra.mxu0 0
    %2743 = vmatpush.bf16.msra.mxu0 0
    %2744 = vmatpush.bf16.msra.mxu0 0
    %2745 = vmatpush.bf16.msra.mxu0 0
    %2746 = vmatpush.bf16.msra.mxu0 0
    %2747 = vmatpush.bf16.msra.mxu0 0
    %2748 = vmatpush.bf16.msra.mxu0 %v196
    %2749 = vmatmul.bf16.gmra.mxu0 %v2739
    %v2750 = vpop.f32.mrf.mxu0
    %v2751 = vadd.f32 0.0, %v2750
    %v2752 = vpop.f32.mrf.mxu0
    %2753 = vdwg.mxu0
    %v2754 = vmul.f32 %v2751, %v212
    %v2755 = vsel %vm215, %v2754, 0.0
    %2756 = vadd.xlane.f32.xlu0 %v2755
    %v2757 = vpop.xlane.xlu0 %2756
    %v2758 = vadd.f32 %v2757, %v220
    %v2759 = vmul.f32 %v2751, %v224
    %2761 = vrot.lane.b32.xlu0 %v2759, 120
    %v2762 = vpop.permute.xlu0 %2761
    %v2764 = vsel %vm215, %v2762, 0.0
    %2765 = vadd.xlane.f32.xlu0 %v2764
    %v2766 = vpop.xlane.xlu0 %2765
    %v2767 = vadd.f32 %v2766, %v220
    %vm2768 = vcmp.gt.f32.partialorder %v2767, %v2758
    %v2769 = vsel %vm2768, %v2767, %v2758
    %v2770 = vsel %vm2768, 1, 0
    %v2771 = vmul.f32 %v2751, %v239
    %2773 = vrot.lane.b32.xlu0 %v2771, 112
    %v2774 = vpop.permute.xlu0 %2773
    %v2776 = vsel %vm215, %v2774, 0.0
    %2777 = vadd.xlane.f32.xlu0 %v2776
    %v2778 = vpop.xlane.xlu0 %2777
    %v2779 = vadd.f32 %v2778, %v220
    %vm2780 = vcmp.gt.f32.partialorder %v2779, %v2769
    %v2781 = vsel %vm2780, %v2779, %v2769
    %v2782 = vsel %vm2780, 2, %v2770
    %v2783 = vmul.f32 %v2751, %v254
    %2785 = vrot.lane.b32.xlu0 %v2783, 104
    %v2786 = vpop.permute.xlu0 %2785
    %v2788 = vsel %vm215, %v2786, 0.0
    %2789 = vadd.xlane.f32.xlu0 %v2788
    %v2790 = vpop.xlane.xlu0 %2789
    %v2791 = vadd.f32 %v2790, %v220
    %vm2792 = vcmp.gt.f32.partialorder %v2791, %v2781
    %v2793 = vsel %vm2792, 3, %v2782
    %vm2794 = vcmp.eq.s32.totalorder %v2793, 0
    %v2795 = vsel %vm2794, 1, 0
    %v2796 = vcvt.s32.f32 %v2795
    %2798 = vset.pattern.permute.xlu0 0
    %2799 = vperm.xlu0 %2798, %v2796
    %v2800 = vpop.permute.xlu0 %2799
    %v2802 = vmul.f32 %v2751, %v2800
    %v2803 = vadd.f32 %v2802, 0.0
    %vm2804 = vcmp.eq.s32.totalorder %v2793, 1
    %v2805 = vsel %vm2804, 1, 0
    %v2806 = vcvt.s32.f32 %v2805
    %2808 = vset.pattern.permute.xlu0 0
    %2809 = vperm.xlu0 %2808, %v2806
    %v2810 = vpop.permute.xlu0 %2809
    %v2812 = vmul.f32 %v2751, %v2810
    %2814 = vrot.lane.b32.xlu0 %v2812, 120
    %v2815 = vpop.permute.xlu0 %2814
    %v2817 = vadd.f32 %v2803, %v2815
    %vm2818 = vcmp.eq.s32.totalorder %v2793, 2
    %v2819 = vsel %vm2818, 1, 0
    %v2820 = vcvt.s32.f32 %v2819
    %2822 = vset.pattern.permute.xlu0 0
    %2823 = vperm.xlu0 %2822, %v2820
    %v2824 = vpop.permute.xlu0 %2823
    %v2826 = vmul.f32 %v2751, %v2824
    %2828 = vrot.lane.b32.xlu0 %v2826, 112
    %v2829 = vpop.permute.xlu0 %2828
    %v2831 = vadd.f32 %v2817, %v2829
    %vm2832 = vcmp.eq.s32.totalorder %v2793, 3
    %v2833 = vsel %vm2832, 1, 0
    %v2834 = vcvt.s32.f32 %v2833
    %2836 = vset.pattern.permute.xlu0 0
    %2837 = vperm.xlu0 %2836, %v2834
    %v2838 = vpop.permute.xlu0 %2837
    %v2840 = vmul.f32 %v2751, %v2838
    %2842 = vrot.lane.b32.xlu0 %v2840, 104
    %v2843 = vpop.permute.xlu0 %2842
    %v2845 = vadd.f32 %v2831, %v2843
    %vm2846 = vcmp.eq.s32.totalorder %v55, %v2630
    %v2847 = vsel %vm2846, 1, 0
    %v2848 = vcvt.s32.f32 %v2847
    %2850 = vset.pattern.permute.xlu0 0
    %2851 = vperm.xlu0 %2850, %v2845
    %v2852 = vpop.permute.xlu0 %2851
    %v2854 = vmul.f32 %v2852, %v2848
    %v2855 = vadd.f32 %v2854, 0.0
    %v2856 = vadd.s32 %v2630, 1
    %vm2857 = vcmp.eq.s32.totalorder %v55, %v2856
    %v2858 = vsel %vm2857, 1, 0
    %v2859 = vcvt.s32.f32 %v2858
    %2860 = vset.pattern.permute.xlu0 1
    %2861 = vperm.xlu0 %2860, %v2845
    %v2862 = vpop.permute.xlu0 %2861
    %v2864 = vmul.f32 %v2862, %v2859
    %v2865 = vadd.f32 %v2855, %v2864
    %v2866 = vadd.s32 %v2630, 2
    %vm2867 = vcmp.eq.s32.totalorder %v55, %v2866
    %v2868 = vsel %vm2867, 1, 0
    %v2869 = vcvt.s32.f32 %v2868
    %2870 = vset.pattern.permute.xlu0 2
    %2871 = vperm.xlu0 %2870, %v2845
    %v2872 = vpop.permute.xlu0 %2871
    %v2874 = vmul.f32 %v2872, %v2869
    %v2875 = vadd.f32 %v2865, %v2874
    %v2876 = vadd.s32 %v2630, 3
    %vm2877 = vcmp.eq.s32.totalorder %v55, %v2876
    %v2878 = vsel %vm2877, 1, 0
    %v2879 = vcvt.s32.f32 %v2878
    %2880 = vset.pattern.permute.xlu0 3
    %2881 = vperm.xlu0 %2880, %v2845
    %v2882 = vpop.permute.xlu0 %2881
    %v2884 = vmul.f32 %v2882, %v2879
    %v2885 = vadd.f32 %v2875, %v2884
    %v2886 = vadd.s32 %v2630, 4
    %vm2887 = vcmp.eq.s32.totalorder %v55, %v2886
    %v2888 = vsel %vm2887, 1, 0
    %v2889 = vcvt.s32.f32 %v2888
    %2890 = vset.pattern.permute.xlu0 4
    %2891 = vperm.xlu0 %2890, %v2845
    %v2892 = vpop.permute.xlu0 %2891
    %v2894 = vmul.f32 %v2892, %v2889
    %v2895 = vadd.f32 %v2885, %v2894
    %v2896 = vadd.s32 %v2630, 5
    %vm2897 = vcmp.eq.s32.totalorder %v55, %v2896
    %v2898 = vsel %vm2897, 1, 0
    %v2899 = vcvt.s32.f32 %v2898
    %2900 = vset.pattern.permute.xlu0 5
    %2901 = vperm.xlu0 %2900, %v2845
    %v2902 = vpop.permute.xlu0 %2901
    %v2904 = vmul.f32 %v2902, %v2899
    %v2905 = vadd.f32 %v2895, %v2904
    %v2906 = vadd.s32 %v2630, 6
    %vm2907 = vcmp.eq.s32.totalorder %v55, %v2906
    %v2908 = vsel %vm2907, 1, 0
    %v2909 = vcvt.s32.f32 %v2908
    %2910 = vset.pattern.permute.xlu0 6
    %2911 = vperm.xlu0 %2910, %v2845
    %v2912 = vpop.permute.xlu0 %2911
    %v2914 = vmul.f32 %v2912, %v2909
    %v2915 = vadd.f32 %v2905, %v2914
    %vm2916 = vcmp.ge.s32.totalorder %v55, %v2630
    %v2917 = vsel %vm2631, 1, 0
    %vm2918 = vcmp.eq.s32.totalorder %v2917, 1
    %vm2919 = vmand %vm2918, %vm2916
    %v2920 = vadd.s32 %v2630, %v2733
    %vm2921 = vcmp.lt.s32.totalorder %v55, %v2920
    %vm2922 = vmand %vm2919, %vm2921
    %v2923 = vsel %vm2922, %v2915, %v2559
    %v2924 = vld [vmem:[%s8] sm:$0xf]
    %v2925 = vld [vmem:[%s8 + $0x4] sm:$0xf]
    %v2926 = vld [vmem:[%s9] sm:$0x1]
    %v2928 = vperm.slane %v2926, 0
    %v2932 = vunpack.c.l.b16 %v2924
    %v2933 = vunpack.c.l.b16 %v2925
    %v2934 = vpack.c.b16 %v2933, %v2932
    %2936 = vmatpush.bf16.msra.mxu0 0
    %2937 = vmatpush.bf16.msra.mxu0 0
    %2938 = vmatpush.bf16.msra.mxu0 0
    %2939 = vmatpush.bf16.msra.mxu0 0
    %2940 = vmatpush.bf16.msra.mxu0 0
    %2941 = vmatpush.bf16.msra.mxu0 0
    %2942 = vmatpush.bf16.msra.mxu0 0
    %2943 = vmatpush.bf16.msra.mxu0 %v2934
    %2944 = vmatmul.bf16.gmra.mxu0 %v68
    %v2945 = vpop.f32.mrf.mxu0
    %v2946 = vadd.f32 %v2928, %v2945
    %v2947 = vpop.f32.mrf.mxu0
    %2948 = vdwg.mxu0
    %v2949 = vsub.f32 1.0, %v53
    %v2951 = vperm.slane %v2949, 0
    %v2953 = vmul.f32 %v2951, %v2923
    %v2955 = vperm.slane %v53, 0
    %v2957 = vmul.f32 %v2955, %v2946
    %v2958 = vadd.f32 %v2953, %v2957
    %2959 = vst.msk [vmem:[#allocation3] sm:$0x3] %vm215, %v2958
    // Predicated region
    $region46: #{_forward_call.1} parent=1 // pred_check
      _
    $region47: #{_forward_call.1} parent=1 // pred_check_branch
      %2961 = sbr.rel (0) target = $region49
    $region48: #{_forward_call.1} parent=1 // pred_region
      %2963 = vsyncadd [#allocation4], 0
      %s2965 = sshll.u32 [#allocation3], 4
      %s2966 = int_to_ptr.vmem [resolvable:$true] %s2965
      %s2967 = sshll.u32 %s11, 4
      %s2968 = int_to_ptr.hbm [resolvable:$true] %s2967
      %2970 = dma.vmem_to_hbm [thread:$0]  %s2966, 32, %s2968, [#allocation4]
    $region49: #{_forward_call.1} parent=1 // pred_fallthru
      _
    // Predicated region
    $region50: #{_forward_call.1} parent=1 // pred_check
      _
    $region51: #{_forward_call.1} parent=1 // pred_check_branch
      %2972 = sbr.rel (0) target = $region53
    $region52: #{_forward_call.1} parent=1 // pred_region
      %2974 = dma.done [#allocation4], 32
    $region53: #{_forward_call.1} parent=1 // pred_fallthru
      _
    %2975 = vsyncpa [#allocation4], 1

</llo_original>
